<compile_context>
chip_gen: v7x
topology: tpu7x:2x2x1
jax: 0.10.0
libtpu: 0.0.40
codegen_flags: <defaults>
</compile_context>

<pallas_src>
import functools

import jax
import jax.numpy as jnp
from jax import lax
from jax.experimental import pallas as pl
from jax.experimental.pallas import tpu as pltpu


def _round_up(a, b):
    return (a + b - 1) // b * b


def _cdiv(a, b):
    return (a + b - 1) // b


def _balanced_tm(m, tm_max=1024, two_step_min=512):
    """Balanced row tiles: big tiles, zero/tiny padding.  For m >= two_step_min
    force >=2 grid steps so v7x's two TensorCores both get work (costs one
    ~0.35us step on single-TC v5e/v6e)."""
    steps = _cdiv(m, tm_max)
    if m >= two_step_min:
        steps = max(steps, 2)
    tm = _round_up(_cdiv(m, steps), 8)
    grid = _cdiv(m, tm)
    return tm, grid


# ----------------------------------------------------------------------------
# Pallas kernels
# ----------------------------------------------------------------------------
def _matmul_stats_kernel(x_ref, w_ref, o_ref, stats_ref, *, relu_input):
    """o = (relu?)(x) @ w  (bf16 MXU, f32 accumulation) + per-tile column
    sums / sums-of-squares of the f32 result for BatchNorm batch stats."""
    x = x_ref[...]
    if relu_input:
        x = jnp.maximum(x, 0)
    acc = jnp.dot(x, w_ref[...], preferred_element_type=jnp.float32)
    o_ref[...] = acc.astype(o_ref.dtype)
    stats_ref[0, 0:1, :] = jnp.sum(acc, axis=0, keepdims=True)
    stats_ref[0, 1:2, :] = jnp.sum(acc * acc, axis=0, keepdims=True)


def matmul_with_bn_stats(x, w, *, relu_input, out_dtype=jnp.bfloat16):
    """x: [M, K] bf16, w: [K, N] bf16 -> (y [M, N], stats [2, N] f32).
    Zero-padded rows (balanced-tile remainder) contribute zero to both the
    matmul and the statistics."""
    M, K = x.shape
    K2, N = w.shape
    assert K == K2
    tm, grid_m = _balanced_tm(M)
    Mp = grid_m * tm
    if Mp != M:
        x = jnp.pad(x, ((0, Mp - M), (0, 0)))

    y, stats = pl.pallas_call(
        functools.partial(_matmul_stats_kernel, relu_input=relu_input),
        out_shape=(
            jax.ShapeDtypeStruct((Mp, N), out_dtype),
            jax.ShapeDtypeStruct((grid_m, 2, N), jnp.float32),
        ),
        grid=(grid_m,),
        in_specs=[
            pl.BlockSpec((tm, K), lambda i: (i, 0)),     # x tile
            pl.BlockSpec((K, N), lambda i: (0, 0)),      # weights (resident)
        ],
        out_specs=(
            pl.BlockSpec((tm, N), lambda i: (i, 0)),
            pl.BlockSpec((1, 2, N), lambda i: (i, 0, 0)),
        ),
        compiler_params=pltpu.CompilerParams(
            dimension_semantics=("parallel",)),
    )(x, w)
    if Mp != M:
        y = y[:M]
    return y, jnp.sum(stats, axis=0)


def _conv3x3s2_stats_kernel(z00, z01, z02, z10, z11, z12,
                            w_ref, o_ref, stats_ref, *, th, wo_pad):
    """3x3/stride-2 conv over phase-split inputs: 9 accumulated MXU matmuls.
    Phase array A[p][kw][n, i*wo_pad + j, c] == zpad[n, 2i+p, 2j+kw, c]
    (zero beyond the real output width), so tap (kh, kw) for output rows
    [t*th, t*th+th) is one contiguous aligned 2-D slice."""
    t = pl.program_id(1)
    phases = ((z00, z01, z02), (z10, z11, z12))
    rows = th * wo_pad
    acc = None
    for kh in range(3):
        p, dr = kh % 2, kh // 2
        for kw in range(3):
            start = pl.multiple_of((t * th + dr) * wo_pad, wo_pad)
            x = phases[p][kw][0, pl.ds(start, rows), :]
            part = jnp.dot(x, w_ref[kh * 3 + kw],
                           preferred_element_type=jnp.float32)
            acc = part if acc is None else acc + part
    o_ref[...] = acc.astype(o_ref.dtype)
    stats_ref[0, 0:1, :] = jnp.sum(acc, axis=0, keepdims=True)
    stats_ref[0, 1:2, :] = jnp.sum(acc * acc, axis=0, keepdims=True)


def conv3x3_s2_with_bn_stats(phases, w9, N, Ho, Wo_pad,
                             out_dtype=jnp.bfloat16):
    """phases: 6 arrays [N, rows_p*Wo_pad, C] bf16; w9: [9, C, Co] bf16.
    Returns (y2 [N*Ho*Wo_pad, Co] bf16, stats [2, Co] f32)."""
    C, Co = w9.shape[1], w9.shape[2]
    T = 2 if (N == 1 and Ho % 2 == 0 and Ho >= 2) else 1   # feed both v7x TCs
    th = Ho // T

    in_specs = []
    for a in phases:   # whole phase image resident per batch element (small)
        rows_flat = a.shape[1]
        in_specs.append(
            pl.BlockSpec((1, rows_flat, C), lambda n, t: (n, 0, 0)))
    in_specs.append(pl.BlockSpec((9, C, Co), lambda n, t: (0, 0, 0)))

    y2, stats = pl.pallas_call(
        functools.partial(_conv3x3s2_stats_kernel, th=th, wo_pad=Wo_pad),
        out_shape=(
            jax.ShapeDtypeStruct((N * Ho * Wo_pad, Co), out_dtype),
            jax.ShapeDtypeStruct((N * T, 2, Co), jnp.float32),
        ),
        grid=(N, T),
        in_specs=in_specs,
        out_specs=(
            pl.BlockSpec((th * Wo_pad, Co), lambda n, t: (n * T + t, 0)),
            pl.BlockSpec((1, 2, Co), lambda n, t: (n * T + t, 0, 0)),
        ),
        compiler_params=pltpu.CompilerParams(
            dimension_semantics=("parallel", "parallel")),
    )(*phases, w9)
    return y2, jnp.sum(stats, axis=0)


def _affine_relu_matmul_kernel(scale_ref, shift_ref, x_ref, w_ref, o_ref):
    """o = relu(x * scale + shift) @ w ; affine/ReLU in f32, matmul in bf16."""
    x = x_ref[...].astype(jnp.float32) * scale_ref[...] + shift_ref[...]
    x = jnp.maximum(x, 0.0).astype(w_ref.dtype)
    o_ref[...] = jnp.dot(
        x, w_ref[...], preferred_element_type=jnp.float32).astype(o_ref.dtype)


def affine_relu_matmul(x, w, scale, shift, *, out_dtype=jnp.float32):
    """x: [M, K] bf16, w: [K, N] bf16, scale/shift: [K] f32 -> [M, N]."""
    M, K = x.shape
    K2, N = w.shape
    assert K == K2
    tm, grid_m = _balanced_tm(M)
    Mp = grid_m * tm
    if Mp != M:
        x = jnp.pad(x, ((0, Mp - M), (0, 0)))
    scale2 = scale.reshape(1, K).astype(jnp.float32)
    shift2 = shift.reshape(1, K).astype(jnp.float32)

    y = pl.pallas_call(
        _affine_relu_matmul_kernel,
        out_shape=jax.ShapeDtypeStruct((Mp, N), out_dtype),
        grid=(grid_m,),
        in_specs=[
            pl.BlockSpec((1, K), lambda i: (0, 0)),      # scale
            pl.BlockSpec((1, K), lambda i: (0, 0)),      # shift
            pl.BlockSpec((tm, K), lambda i: (i, 0)),     # x tile
            pl.BlockSpec((K, N), lambda i: (0, 0)),      # weights (resident)
        ],
        out_specs=pl.BlockSpec((tm, N), lambda i: (i, 0)),
        compiler_params=pltpu.CompilerParams(
            dimension_semantics=("parallel",)),
    )(scale2, shift2, x, w)
    if Mp != M:
        y = y[:M]
    return y


# ----------------------------------------------------------------------------
# JAX glue
# ----------------------------------------------------------------------------
def _bn_scale_shift_from_stats(stats, n_rows, gamma, beta, eps=1e-5):
    """Training-mode BatchNorm folded to per-channel (scale, shift) from the
    in-kernel (sum, sum-of-squares) reduction (biased variance)."""
    mean = stats[0] / n_rows
    var = jnp.maximum(stats[1] / n_rows - mean * mean, 0.0)
    inv = gamma.astype(jnp.float32) / jnp.sqrt(var + eps)
    return inv, beta.astype(jnp.float32) - mean * inv


def _bn_relu_phase_split(y1_rows, scale, shift, N, H, W, Ho, Wo, Wo_pad):
    """Apply BN1 scale/shift + ReLU to y1 and emit six stride-2 phase views of
    the conv-padded result (row parity p in {0,1} x column tap kw in {0,1,2}),
    each stored flat as [N, rows_p*Wo_pad, C] bf16.  Columns beyond the real
    output width Wo are exact zeros, so they contribute nothing downstream."""
    C = y1_rows.shape[1]
    z = jnp.maximum(y1_rows.astype(jnp.float32) * scale + shift, 0.0)
    z = z.astype(jnp.bfloat16).reshape(N, H, W, C)
    zp = jnp.pad(z, ((0, 0), (1, 1), (1, 1), (0, 0)))     # conv padding=1
    phases = []
    for p in (0, 1):
        rows = Ho + 1 if p == 0 else Ho
        for kw in range(3):
            a = zp[:, p::2, kw::2, :][:, :rows, :Wo, :]
            if Wo_pad != Wo:
                a = jnp.pad(a, ((0, 0), (0, 0), (0, Wo_pad - Wo), (0, 0)))
            phases.append(a.reshape(N, rows * Wo_pad, C))
    return phases


def forward(x_nchw, params):
    w1, g1, b1 = params['w1'], params['g1'], params['b1']
    w2, g2, b2 = params['w2'], params['g2'], params['b2']
    w3 = params['w3']

    N, C, H, W = x_nchw.shape
    Cmid = w1.shape[0]
    Cout = w3.shape[0]
    Ho = (H - 1) // 2 + 1
    Wo = (W - 1) // 2 + 1
    Wo_pad = _round_up(Wo, 8)

    # channels-last rows; activations kept in bf16 in HBM.
    x = jnp.transpose(x_nchw, (0, 2, 3, 1)).reshape(N * H * W, C)
    x = x.astype(jnp.bfloat16)

    w1m = jnp.transpose(w1[:, :, 0, 0]).astype(jnp.bfloat16)          # [256,128]
    w2m = jnp.transpose(w2, (2, 3, 1, 0)).reshape(9, Cmid, w2.shape[0])
    w2m = w2m.astype(jnp.bfloat16)                                     # [9,128,128]
    w3m = jnp.transpose(w3[:, :, 0, 0]).astype(jnp.bfloat16)          # [128,512]

    # relu7 + conv2d11 (1x1, 256->128) with BN1 batch stats fused in-kernel.
    y1, stats1 = matmul_with_bn_stats(x, w1m, relu_input=True)
    s1, t1 = _bn_scale_shift_from_stats(stats1, N * H * W, g1, b1)

    # batchnorm2d11 + relu10 fused into the phase-split producer (y1 read
    # once, no im2col buffer); conv2d12 (3x3/s2/p1) as 9 accumulated matmuls
    # with BN2 stats fused in-kernel.
    phases = _bn_relu_phase_split(y1, s1, t1, N, H, W, Ho, Wo, Wo_pad)
    y2, stats2 = conv3x3_s2_with_bn_stats(phases, w2m, N, Ho, Wo_pad)
    s2, t2 = _bn_scale_shift_from_stats(stats2, N * Ho * Wo, g2, b2)

    # batchnorm2d12 + relu10 + conv2d13 (1x1, 128->512) fused in one kernel.
    y3 = affine_relu_matmul(y2, w3m, s2, t2, out_dtype=jnp.float32)

    out = y3.reshape(N, Ho, Wo_pad, Cout)[:, :, :Wo, :]
    return jnp.transpose(out, (0, 3, 1, 2))                   # NCHW


# ----------------------------------------------------------------------------
# Pure-JAX reference (same semantics as the PyTorch module in training mode)
# ----------------------------------------------------------------------------
def reference(x, params, eps=1e-5):
    dn = ('NCHW', 'OIHW', 'NCHW')
    hp = lax.Precision.HIGHEST

    def bn(y, g, b):
        m = y.mean(axis=(0, 2, 3), keepdims=True)
        v = ((y - m) ** 2).mean(axis=(0, 2, 3), keepdims=True)
        return (y - m) / jnp.sqrt(v + eps) * g[None, :, None, None] \
            + b[None, :, None, None]

    y = jnp.maximum(x, 0.0)
    y = lax.conv_general_dilated(y, params['w1'], (1, 1), 'VALID',
                                 dimension_numbers=dn, precision=hp)
    y = jnp.maximum(bn(y, params['g1'], params['b1']), 0.0)
    y = lax.conv_general_dilated(y, params['w2'], (2, 2), ((1, 1), (1, 1)),
                                 dimension_numbers=dn, precision=hp)
    y = jnp.maximum(bn(y, params['g2'], params['b2']), 0.0)
    y = lax.conv_general_dilated(y, params['w3'], (1, 1), 'VALID',
                                 dimension_numbers=dn, precision=hp)
    return y


# ----------------------------------------------------------------------------
if __name__ == "__main__":
    key = jax.random.PRNGKey(0)
    ks = jax.random.split(key, 8)

    # Small but module-consistent shapes: channels fixed by the module
    # (256 -> 128 -> 128 -> 512), spatial shrunk from 56 to 16.
    N, Cin, H, W = 1, 256, 16, 16
    Cmid, Cout = 128, 512

    x = jax.random.normal(ks[0], (N, Cin, H, W), jnp.float32)
    params = {
        'w1': jax.random.normal(ks[1], (Cmid, Cin, 1, 1), jnp.float32)
              / jnp.sqrt(float(Cin)),
        'g1': 1.0 + 0.1 * jax.random.normal(ks[2], (Cmid,), jnp.float32),
        'b1': 0.1 * jax.random.normal(ks[3], (Cmid,), jnp.float32),
        'w2': jax.random.normal(ks[4], (Cmid, Cmid, 3, 3), jnp.float32)
              / jnp.sqrt(9.0 * Cmid),
        'g2': 1.0 + 0.1 * jax.random.normal(ks[5], (Cmid,), jnp.float32),
        'b2': 0.1 * jax.random.normal(ks[6], (Cmid,), jnp.float32),
        'w3': jax.random.normal(ks[7], (Cout, Cmid, 1, 1), jnp.float32)
              / jnp.sqrt(float(Cmid)),
    }

    out = jax.jit(forward)(x, params)
    out = jax.block_until_ready(out)
    assert out.shape == (N, Cout, H // 2, W // 2), out.shape

    ref = reference(x, params)
    # bf16 MXU inputs (f32 accumulation) -> looser tolerance than pure f32.
    tol = 5e-2 * (1.0 + float(jnp.max(jnp.abs(ref))))
    err = float(jnp.max(jnp.abs(out - ref)))
    if not err < tol:
        raise AssertionError(f"mismatch vs reference: max|diff|={err} tol={tol}")

    print("KERNEL_OK")
</pallas_src>

<mosaic_0001>
module attributes {stable_mosaic.version = 11 : i64} {
  func.func @_matmul_stats_kernel(%arg0: i32, %arg1: memref<256x256xbf16, #tpu.memory_space<vmem>>, %arg2: memref<256x128xbf16, #tpu.memory_space<vmem>>, %arg3: memref<256x128xbf16, #tpu.memory_space<vmem>>, %arg4: memref<1x2x128xf32, #tpu.memory_space<vmem>>) attributes {dimension_semantics = [#tpu.dimension_semantics<parallel>], iteration_bounds = array<i64: 1>, scalar_prefetch = 0 : i64, scratch_operands = 0 : i64, tpu.core_type = #tpu.core_type<tc>, window_params = [{transform_indices = @transform_0, window_bounds = array<i64: 256, 256>}, {pipeline_mode = #tpu.pipeline_mode<synchronous>, transform_indices = @transform_1, window_bounds = array<i64: 256, 128>}, {transform_indices = @transform_2, window_bounds = array<i64: 256, 128>}, {transform_indices = @transform_3, window_bounds = array<i64: 1, 2, 128>}]} {
    %c0 = arith.constant 0 : index
    %c0_0 = arith.constant 0 : index
    %0 = vector.load %arg1[%c0, %c0_0] : memref<256x256xbf16, #tpu.memory_space<vmem>>, vector<256x256xbf16>
    %cst = arith.constant 0.000000e+00 : bf16
    %1 = vector.broadcast %cst : bf16 to vector<256x256xbf16>
    %2 = arith.maximumf %0, %1 : vector<256x256xbf16>
    %c0_1 = arith.constant 0 : index
    %c0_2 = arith.constant 0 : index
    %3 = vector.load %arg2[%c0_1, %c0_2] : memref<256x128xbf16, #tpu.memory_space<vmem>>, vector<256x128xbf16>
    %cst_3 = arith.constant dense<0.000000e+00> : vector<256x128xf32>
    %4 = tpu.matmul %2, %3, %cst_3 {dimension_numbers = #tpu.dot_dimension_numbers<[1], [0], [0], [1], [0, 0, 1, 1], [], []>} : vector<256x256xbf16>, vector<256x128xbf16>, vector<256x128xf32> -> vector<256x128xf32>
    %5 = arith.truncf %4 : vector<256x128xf32> to vector<256x128xbf16>
    %c0_4 = arith.constant 0 : index
    %c0_5 = arith.constant 0 : index
    %6 = vector.load %arg3[%c0_4, %c0_5] : memref<256x128xbf16, #tpu.memory_space<vmem>>, vector<256x128xbf16>
    tpu.vector_store %arg3[%c0_4, %c0_5], %5 {strides = array<i32>} : memref<256x128xbf16, #tpu.memory_space<vmem>>, vector<256x128xbf16>,
    %cst_6 = arith.constant dense<0.000000e+00> : vector<128xf32>
    %7 = vector.multi_reduction <add>, %4, %cst_6 [0] : vector<256x128xf32> to vector<128xf32>
    %8 = vector.shape_cast %7 : vector<128xf32> to vector<1x128xf32>
    %c0_7 = arith.constant 0 : index
    %c0_8 = arith.constant 0 : index
    %c0_9 = arith.constant 0 : index
    %9 = vector.load %arg4[%c0_7, %c0_8, %c0_9] : memref<1x2x128xf32, #tpu.memory_space<vmem>>, vector<1x1x128xf32>
    %10 = vector.shape_cast %9 : vector<1x1x128xf32> to vector<1x128xf32>
    %11 = vector.shape_cast %8 : vector<1x128xf32> to vector<1x1x128xf32>
    tpu.vector_store %arg4[%c0_7, %c0_8, %c0_9], %11 {strides = array<i32>} : memref<1x2x128xf32, #tpu.memory_space<vmem>>, vector<1x1x128xf32>,
    %12 = arith.mulf %4, %4 : vector<256x128xf32>
    %cst_10 = arith.constant dense<0.000000e+00> : vector<128xf32>
    %13 = vector.multi_reduction <add>, %12, %cst_10 [0] : vector<256x128xf32> to vector<128xf32>
    %14 = vector.shape_cast %13 : vector<128xf32> to vector<1x128xf32>
    %c0_11 = arith.constant 0 : index
    %c1 = arith.constant 1 : index
    %c0_12 = arith.constant 0 : index
    %15 = vector.load %arg4[%c0_11, %c1, %c0_12] : memref<1x2x128xf32, #tpu.memory_space<vmem>>, vector<1x1x128xf32>
    %16 = vector.shape_cast %15 : vector<1x1x128xf32> to vector<1x128xf32>
    %17 = vector.shape_cast %14 : vector<1x128xf32> to vector<1x1x128xf32>
    tpu.vector_store %arg4[%c0_11, %c1, %c0_12], %17 {strides = array<i32>} : memref<1x2x128xf32, #tpu.memory_space<vmem>>, vector<1x1x128xf32>,
    return
  }
  func.func @transform_0(%arg0: i32) -> (i32, i32) {
    %c0_i32 = arith.constant 0 : i32
    %c0_i32_0 = arith.constant 0 : i32
    return %arg0, %c0_i32 : i32, i32
  }
  func.func @transform_1(%arg0: i32) -> (i32, i32) {
    %c0_i32 = arith.constant 0 : i32
    %c0_i32_0 = arith.constant 0 : i32
    %c0_i32_1 = arith.constant 0 : i32
    return %c0_i32, %c0_i32_0 : i32, i32
  }
  func.func @transform_2(%arg0: i32) -> (i32, i32) {
    %c0_i32 = arith.constant 0 : i32
    %c0_i32_0 = arith.constant 0 : i32
    return %arg0, %c0_i32 : i32, i32
  }
  func.func @transform_3(%arg0: i32) -> (i32, i32, i32) {
    %c0_i32 = arith.constant 0 : i32
    %c0_i32_0 = arith.constant 0 : i32
    %c0_i32_1 = arith.constant 0 : i32
    return %arg0, %c0_i32, %c0_i32_0 : i32, i32, i32
  }
}

module attributes {stable_mosaic.version = 11 : i64} {
  func.func @_conv3x3s2_stats_kernel(%arg0: i32, %arg1: i32, %arg2: memref<1x72x128xbf16, #tpu.memory_space<vmem>>, %arg3: memref<1x72x128xbf16, #tpu.memory_space<vmem>>, %arg4: memref<1x72x128xbf16, #tpu.memory_space<vmem>>, %arg5: memref<1x64x128xbf16, #tpu.memory_space<vmem>>, %arg6: memref<1x64x128xbf16, #tpu.memory_space<vmem>>, %arg7: memref<1x64x128xbf16, #tpu.memory_space<vmem>>, %arg8: memref<9x128x128xbf16, #tpu.memory_space<vmem>>, %arg9: memref<32x128xbf16, #tpu.memory_space<vmem>>, %arg10: memref<1x2x128xf32, #tpu.memory_space<vmem>>) attributes {dimension_semantics = [#tpu.dimension_semantics<parallel>, #tpu.dimension_semantics<parallel>], iteration_bounds = array<i64: 1, 2>, scalar_prefetch = 0 : i64, scratch_operands = 0 : i64, tpu.core_type = #tpu.core_type<tc>, window_params = [{transform_indices = @transform_0, window_bounds = array<i64: 1, 72, 128>}, {transform_indices = @transform_1, window_bounds = array<i64: 1, 72, 128>}, {transform_indices = @transform_2, window_bounds = array<i64: 1, 72, 128>}, {transform_indices = @transform_3, window_bounds = array<i64: 1, 64, 128>}, {transform_indices = @transform_4, window_bounds = array<i64: 1, 64, 128>}, {transform_indices = @transform_5, window_bounds = array<i64: 1, 64, 128>}, {pipeline_mode = #tpu.pipeline_mode<synchronous>, transform_indices = @transform_6, window_bounds = array<i64: 9, 128, 128>}, {transform_indices = @transform_7, window_bounds = array<i64: 32, 128>}, {transform_indices = @transform_8, window_bounds = array<i64: 1, 2, 128>}]} {
    %c4_i32 = arith.constant 4 : i32
    %0 = arith.muli %arg1, %c4_i32 : i32
    %c0_i32 = arith.constant 0 : i32
    %1 = arith.addi %0, %c0_i32 : i32
    %c8_i32 = arith.constant 8 : i32
    %2 = arith.muli %1, %c8_i32 : i32
    %3 = tpu.assume_multiple %2, 8 : i32
    %c0 = arith.constant 0 : index
    %4 = arith.index_cast %3 : i32 to index
    %c0_0 = arith.constant 0 : index
    %5 = vector.load %arg2[%c0, %4, %c0_0] : memref<1x72x128xbf16, #tpu.memory_space<vmem>>, vector<1x32x128xbf16>
    %6 = vector.shape_cast %5 : vector<1x32x128xbf16> to vector<32x128xbf16>
    %c0_1 = arith.constant 0 : index
    %c0_2 = arith.constant 0 : index
    %c0_3 = arith.constant 0 : index
    %7 = vector.load %arg8[%c0_1, %c0_2, %c0_3] : memref<9x128x128xbf16, #tpu.memory_space<vmem>>, vector<1x128x128xbf16>
    %8 = vector.shape_cast %7 : vector<1x128x128xbf16> to vector<128x128xbf16>
    %cst = arith.constant dense<0.000000e+00> : vector<32x128xf32>
    %9 = tpu.matmul %6, %8, %cst {dimension_numbers = #tpu.dot_dimension_numbers<[1], [0], [0], [1], [0, 0, 1, 1], [], []>} : vector<32x128xbf16>, vector<128x128xbf16>, vector<32x128xf32> -> vector<32x128xf32>
    %c4_i32_4 = arith.constant 4 : i32
    %10 = arith.muli %arg1, %c4_i32_4 : i32
    %c0_i32_5 = arith.constant 0 : i32
    %11 = arith.addi %10, %c0_i32_5 : i32
    %c8_i32_6 = arith.constant 8 : i32
    %12 = arith.muli %11, %c8_i32_6 : i32
    %13 = tpu.assume_multiple %12, 8 : i32
    %c0_7 = arith.constant 0 : index
    %14 = arith.index_cast %13 : i32 to index
    %c0_8 = arith.constant 0 : index
    %15 = vector.load %arg3[%c0_7, %14, %c0_8] : memref<1x72x128xbf16, #tpu.memory_space<vmem>>, vector<1x32x128xbf16>
    %16 = vector.shape_cast %15 : vector<1x32x128xbf16> to vector<32x128xbf16>
    %c1 = arith.constant 1 : index
    %c0_9 = arith.constant 0 : index
    %c0_10 = arith.constant 0 : index
    %17 = vector.load %arg8[%c1, %c0_9, %c0_10] : memref<9x128x128xbf16, #tpu.memory_space<vmem>>, vector<1x128x128xbf16>
    %18 = vector.shape_cast %17 : vector<1x128x128xbf16> to vector<128x128xbf16>
    %cst_11 = arith.constant dense<0.000000e+00> : vector<32x128xf32>
    %19 = tpu.matmul %16, %18, %cst_11 {dimension_numbers = #tpu.dot_dimension_numbers<[1], [0], [0], [1], [0, 0, 1, 1], [], []>} : vector<32x128xbf16>, vector<128x128xbf16>, vector<32x128xf32> -> vector<32x128xf32>
    %20 = arith.addf %9, %19 : vector<32x128xf32>
    %c4_i32_12 = arith.constant 4 : i32
    %21 = arith.muli %arg1, %c4_i32_12 : i32
    %c0_i32_13 = arith.constant 0 : i32
    %22 = arith.addi %21, %c0_i32_13 : i32
    %c8_i32_14 = arith.constant 8 : i32
    %23 = arith.muli %22, %c8_i32_14 : i32
    %24 = tpu.assume_multiple %23, 8 : i32
    %c0_15 = arith.constant 0 : index
    %25 = arith.index_cast %24 : i32 to index
    %c0_16 = arith.constant 0 : index
    %26 = vector.load %arg4[%c0_15, %25, %c0_16] : memref<1x72x128xbf16, #tpu.memory_space<vmem>>, vector<1x32x128xbf16>
    %27 = vector.shape_cast %26 : vector<1x32x128xbf16> to vector<32x128xbf16>
    %c2 = arith.constant 2 : index
    %c0_17 = arith.constant 0 : index
    %c0_18 = arith.constant 0 : index
    %28 = vector.load %arg8[%c2, %c0_17, %c0_18] : memref<9x128x128xbf16, #tpu.memory_space<vmem>>, vector<1x128x128xbf16>
    %29 = vector.shape_cast %28 : vector<1x128x128xbf16> to vector<128x128xbf16>
    %cst_19 = arith.constant dense<0.000000e+00> : vector<32x128xf32>
    %30 = tpu.matmul %27, %29, %cst_19 {dimension_numbers = #tpu.dot_dimension_numbers<[1], [0], [0], [1], [0, 0, 1, 1], [], []>} : vector<32x128xbf16>, vector<128x128xbf16>, vector<32x128xf32> -> vector<32x128xf32>
    %31 = arith.addf %20, %30 : vector<32x128xf32>
    %c4_i32_20 = arith.constant 4 : i32
    %32 = arith.muli %arg1, %c4_i32_20 : i32
    %c0_i32_21 = arith.constant 0 : i32
    %33 = arith.addi %32, %c0_i32_21 : i32
    %c8_i32_22 = arith.constant 8 : i32
    %34 = arith.muli %33, %c8_i32_22 : i32
    %35 = tpu.assume_multiple %34, 8 : i32
    %c0_23 = arith.constant 0 : index
    %36 = arith.index_cast %35 : i32 to index
    %c0_24 = arith.constant 0 : index
    %37 = vector.load %arg5[%c0_23, %36, %c0_24] : memref<1x64x128xbf16, #tpu.memory_space<vmem>>, vector<1x32x128xbf16>
    %38 = vector.shape_cast %37 : vector<1x32x128xbf16> to vector<32x128xbf16>
    %c3 = arith.constant 3 : index
    %c0_25 = arith.constant 0 : index
    %c0_26 = arith.constant 0 : index
    %39 = vector.load %arg8[%c3, %c0_25, %c0_26] : memref<9x128x128xbf16, #tpu.memory_space<vmem>>, vector<1x128x128xbf16>
    %40 = vector.shape_cast %39 : vector<1x128x128xbf16> to vector<128x128xbf16>
    %cst_27 = arith.constant dense<0.000000e+00> : vector<32x128xf32>
    %41 = tpu.matmul %38, %40, %cst_27 {dimension_numbers = #tpu.dot_dimension_numbers<[1], [0], [0], [1], [0, 0, 1, 1], [], []>} : vector<32x128xbf16>, vector<128x128xbf16>, vector<32x128xf32> -> vector<32x128xf32>
    %42 = arith.addf %31, %41 : vector<32x128xf32>
    %c4_i32_28 = arith.constant 4 : i32
    %43 = arith.muli %arg1, %c4_i32_28 : i32
    %c0_i32_29 = arith.constant 0 : i32
    %44 = arith.addi %43, %c0_i32_29 : i32
    %c8_i32_30 = arith.constant 8 : i32
    %45 = arith.muli %44, %c8_i32_30 : i32
    %46 = tpu.assume_multiple %45, 8 : i32
    %c0_31 = arith.constant 0 : index
    %47 = arith.index_cast %46 : i32 to index
    %c0_32 = arith.constant 0 : index
    %48 = vector.load %arg6[%c0_31, %47, %c0_32] : memref<1x64x128xbf16, #tpu.memory_space<vmem>>, vector<1x32x128xbf16>
    %49 = vector.shape_cast %48 : vector<1x32x128xbf16> to vector<32x128xbf16>
    %c4 = arith.constant 4 : index
    %c0_33 = arith.constant 0 : index
    %c0_34 = arith.constant 0 : index
    %50 = vector.load %arg8[%c4, %c0_33, %c0_34] : memref<9x128x128xbf16, #tpu.memory_space<vmem>>, vector<1x128x128xbf16>
    %51 = vector.shape_cast %50 : vector<1x128x128xbf16> to vector<128x128xbf16>
    %cst_35 = arith.constant dense<0.000000e+00> : vector<32x128xf32>
    %52 = tpu.matmul %49, %51, %cst_35 {dimension_numbers = #tpu.dot_dimension_numbers<[1], [0], [0], [1], [0, 0, 1, 1], [], []>} : vector<32x128xbf16>, vector<128x128xbf16>, vector<32x128xf32> -> vector<32x128xf32>
    %53 = arith.addf %42, %52 : vector<32x128xf32>
    %c4_i32_36 = arith.constant 4 : i32
    %54 = arith.muli %arg1, %c4_i32_36 : i32
    %c0_i32_37 = arith.constant 0 : i32
    %55 = arith.addi %54, %c0_i32_37 : i32
    %c8_i32_38 = arith.constant 8 : i32
    %56 = arith.muli %55, %c8_i32_38 : i32
    %57 = tpu.assume_multiple %56, 8 : i32
    %c0_39 = arith.constant 0 : index
    %58 = arith.index_cast %57 : i32 to index
    %c0_40 = arith.constant 0 : index
    %59 = vector.load %arg7[%c0_39, %58, %c0_40] : memref<1x64x128xbf16, #tpu.memory_space<vmem>>, vector<1x32x128xbf16>
    %60 = vector.shape_cast %59 : vector<1x32x128xbf16> to vector<32x128xbf16>
    %c5 = arith.constant 5 : index
    %c0_41 = arith.constant 0 : index
    %c0_42 = arith.constant 0 : index
    %61 = vector.load %arg8[%c5, %c0_41, %c0_42] : memref<9x128x128xbf16, #tpu.memory_space<vmem>>, vector<1x128x128xbf16>
    %62 = vector.shape_cast %61 : vector<1x128x128xbf16> to vector<128x128xbf16>
    %cst_43 = arith.constant dense<0.000000e+00> : vector<32x128xf32>
    %63 = tpu.matmul %60, %62, %cst_43 {dimension_numbers = #tpu.dot_dimension_numbers<[1], [0], [0], [1], [0, 0, 1, 1], [], []>} : vector<32x128xbf16>, vector<128x128xbf16>, vector<32x128xf32> -> vector<32x128xf32>
    %64 = arith.addf %53, %63 : vector<32x128xf32>
    %c4_i32_44 = arith.constant 4 : i32
    %65 = arith.muli %arg1, %c4_i32_44 : i32
    %c1_i32 = arith.constant 1 : i32
    %66 = arith.addi %65, %c1_i32 : i32
    %c8_i32_45 = arith.constant 8 : i32
    %67 = arith.muli %66, %c8_i32_45 : i32
    %68 = tpu.assume_multiple %67, 8 : i32
    %c0_46 = arith.constant 0 : index
    %69 = arith.index_cast %68 : i32 to index
    %c0_47 = arith.constant 0 : index
    %70 = vector.load %arg2[%c0_46, %69, %c0_47] : memref<1x72x128xbf16, #tpu.memory_space<vmem>>, vector<1x32x128xbf16>
    %71 = vector.shape_cast %70 : vector<1x32x128xbf16> to vector<32x128xbf16>
    %c6 = arith.constant 6 : index
    %c0_48 = arith.constant 0 : index
    %c0_49 = arith.constant 0 : index
    %72 = vector.load %arg8[%c6, %c0_48, %c0_49] : memref<9x128x128xbf16, #tpu.memory_space<vmem>>, vector<1x128x128xbf16>
    %73 = vector.shape_cast %72 : vector<1x128x128xbf16> to vector<128x128xbf16>
    %cst_50 = arith.constant dense<0.000000e+00> : vector<32x128xf32>
    %74 = tpu.matmul %71, %73, %cst_50 {dimension_numbers = #tpu.dot_dimension_numbers<[1], [0], [0], [1], [0, 0, 1, 1], [], []>} : vector<32x128xbf16>, vector<128x128xbf16>, vector<32x128xf32> -> vector<32x128xf32>
    %75 = arith.addf %64, %74 : vector<32x128xf32>
    %c4_i32_51 = arith.constant 4 : i32
    %76 = arith.muli %arg1, %c4_i32_51 : i32
    %c1_i32_52 = arith.constant 1 : i32
    %77 = arith.addi %76, %c1_i32_52 : i32
    %c8_i32_53 = arith.constant 8 : i32
    %78 = arith.muli %77, %c8_i32_53 : i32
    %79 = tpu.assume_multiple %78, 8 : i32
    %c0_54 = arith.constant 0 : index
    %80 = arith.index_cast %79 : i32 to index
    %c0_55 = arith.constant 0 : index
    %81 = vector.load %arg3[%c0_54, %80, %c0_55] : memref<1x72x128xbf16, #tpu.memory_space<vmem>>, vector<1x32x128xbf16>
    %82 = vector.shape_cast %81 : vector<1x32x128xbf16> to vector<32x128xbf16>
    %c7 = arith.constant 7 : index
    %c0_56 = arith.constant 0 : index
    %c0_57 = arith.constant 0 : index
    %83 = vector.load %arg8[%c7, %c0_56, %c0_57] : memref<9x128x128xbf16, #tpu.memory_space<vmem>>, vector<1x128x128xbf16>
    %84 = vector.shape_cast %83 : vector<1x128x128xbf16> to vector<128x128xbf16>
    %cst_58 = arith.constant dense<0.000000e+00> : vector<32x128xf32>
    %85 = tpu.matmul %82, %84, %cst_58 {dimension_numbers = #tpu.dot_dimension_numbers<[1], [0], [0], [1], [0, 0, 1, 1], [], []>} : vector<32x128xbf16>, vector<128x128xbf16>, vector<32x128xf32> -> vector<32x128xf32>
    %86 = arith.addf %75, %85 : vector<32x128xf32>
    %c4_i32_59 = arith.constant 4 : i32
    %87 = arith.muli %arg1, %c4_i32_59 : i32
    %c1_i32_60 = arith.constant 1 : i32
    %88 = arith.addi %87, %c1_i32_60 : i32
    %c8_i32_61 = arith.constant 8 : i32
    %89 = arith.muli %88, %c8_i32_61 : i32
    %90 = tpu.assume_multiple %89, 8 : i32
    %c0_62 = arith.constant 0 : index
    %91 = arith.index_cast %90 : i32 to index
    %c0_63 = arith.constant 0 : index
    %92 = vector.load %arg4[%c0_62, %91, %c0_63] : memref<1x72x128xbf16, #tpu.memory_space<vmem>>, vector<1x32x128xbf16>
    %93 = vector.shape_cast %92 : vector<1x32x128xbf16> to vector<32x128xbf16>
    %c8 = arith.constant 8 : index
    %c0_64 = arith.constant 0 : index
    %c0_65 = arith.constant 0 : index
    %94 = vector.load %arg8[%c8, %c0_64, %c0_65] : memref<9x128x128xbf16, #tpu.memory_space<vmem>>, vector<1x128x128xbf16>
    %95 = vector.shape_cast %94 : vector<1x128x128xbf16> to vector<128x128xbf16>
    %cst_66 = arith.constant dense<0.000000e+00> : vector<32x128xf32>
    %96 = tpu.matmul %93, %95, %cst_66 {dimension_numbers = #tpu.dot_dimension_numbers<[1], [0], [0], [1], [0, 0, 1, 1], [], []>} : vector<32x128xbf16>, vector<128x128xbf16>, vector<32x128xf32> -> vector<32x128xf32>
    %97 = arith.addf %86, %96 : vector<32x128xf32>
    %98 = arith.truncf %97 : vector<32x128xf32> to vector<32x128xbf16>
    %c0_67 = arith.constant 0 : index
    %c0_68 = arith.constant 0 : index
    %99 = vector.load %arg9[%c0_67, %c0_68] : memref<32x128xbf16, #tpu.memory_space<vmem>>, vector<32x128xbf16>
    tpu.vector_store %arg9[%c0_67, %c0_68], %98 {strides = array<i32>} : memref<32x128xbf16, #tpu.memory_space<vmem>>, vector<32x128xbf16>,
    %cst_69 = arith.constant dense<0.000000e+00> : vector<128xf32>
    %100 = vector.multi_reduction <add>, %97, %cst_69 [0] : vector<32x128xf32> to vector<128xf32>
    %101 = vector.shape_cast %100 : vector<128xf32> to vector<1x128xf32>
    %c0_70 = arith.constant 0 : index
    %c0_71 = arith.constant 0 : index
    %c0_72 = arith.constant 0 : index
    %102 = vector.load %arg10[%c0_70, %c0_71, %c0_72] : memref<1x2x128xf32, #tpu.memory_space<vmem>>, vector<1x1x128xf32>
    %103 = vector.shape_cast %102 : vector<1x1x128xf32> to vector<1x128xf32>
    %104 = vector.shape_cast %101 : vector<1x128xf32> to vector<1x1x128xf32>
    tpu.vector_store %arg10[%c0_70, %c0_71, %c0_72], %104 {strides = array<i32>} : memref<1x2x128xf32, #tpu.memory_space<vmem>>, vector<1x1x128xf32>,
    %105 = arith.mulf %97, %97 : vector<32x128xf32>
    %cst_73 = arith.constant dense<0.000000e+00> : vector<128xf32>
    %106 = vector.multi_reduction <add>, %105, %cst_73 [0] : vector<32x128xf32> to vector<128xf32>
    %107 = vector.shape_cast %106 : vector<128xf32> to vector<1x128xf32>
    %c0_74 = arith.constant 0 : index
    %c1_75 = arith.constant 1 : index
    %c0_76 = arith.constant 0 : index
    %108 = vector.load %arg10[%c0_74, %c1_75, %c0_76] : memref<1x2x128xf32, #tpu.memory_space<vmem>>, vector<1x1x128xf32>
    %109 = vector.shape_cast %108 : vector<1x1x128xf32> to vector<1x128xf32>
    %110 = vector.shape_cast %107 : vector<1x128xf32> to vector<1x1x128xf32>
    tpu.vector_store %arg10[%c0_74, %c1_75, %c0_76], %110 {strides = array<i32>} : memref<1x2x128xf32, #tpu.memory_space<vmem>>, vector<1x1x128xf32>,
    return
  }
  func.func @transform_0(%arg0: i32, %arg1: i32) -> (i32, i32, i32) {
    %c0_i32 = arith.constant 0 : i32
    %c0_i32_0 = arith.constant 0 : i32
    %c0_i32_1 = arith.constant 0 : i32
    return %arg0, %c0_i32, %c0_i32_0 : i32, i32, i32
  }
  func.func @transform_1(%arg0: i32, %arg1: i32) -> (i32, i32, i32) {
    %c0_i32 = arith.constant 0 : i32
    %c0_i32_0 = arith.constant 0 : i32
    %c0_i32_1 = arith.constant 0 : i32
    return %arg0, %c0_i32, %c0_i32_0 : i32, i32, i32
  }
  func.func @transform_2(%arg0: i32, %arg1: i32) -> (i32, i32, i32) {
    %c0_i32 = arith.constant 0 : i32
    %c0_i32_0 = arith.constant 0 : i32
    %c0_i32_1 = arith.constant 0 : i32
    return %arg0, %c0_i32, %c0_i32_0 : i32, i32, i32
  }
  func.func @transform_3(%arg0: i32, %arg1: i32) -> (i32, i32, i32) {
    %c0_i32 = arith.constant 0 : i32
    %c0_i32_0 = arith.constant 0 : i32
    %c0_i32_1 = arith.constant 0 : i32
    return %arg0, %c0_i32, %c0_i32_0 : i32, i32, i32
  }
  func.func @transform_4(%arg0: i32, %arg1: i32) -> (i32, i32, i32) {
    %c0_i32 = arith.constant 0 : i32
    %c0_i32_0 = arith.constant 0 : i32
    %c0_i32_1 = arith.constant 0 : i32
    return %arg0, %c0_i32, %c0_i32_0 : i32, i32, i32
  }
  func.func @transform_5(%arg0: i32, %arg1: i32) -> (i32, i32, i32) {
    %c0_i32 = arith.constant 0 : i32
    %c0_i32_0 = arith.constant 0 : i32
    %c0_i32_1 = arith.constant 0 : i32
    return %arg0, %c0_i32, %c0_i32_0 : i32, i32, i32
  }
  func.func @transform_6(%arg0: i32, %arg1: i32) -> (i32, i32, i32) {
    %c0_i32 = arith.constant 0 : i32
    %c0_i32_0 = arith.constant 0 : i32
    %c0_i32_1 = arith.constant 0 : i32
    %c0_i32_2 = arith.constant 0 : i32
    return %c0_i32, %c0_i32_0, %c0_i32_1 : i32, i32, i32
  }
  func.func @transform_7(%arg0: i32, %arg1: i32) -> (i32, i32) {
    %c2_i32 = arith.constant 2 : i32
    %0 = arith.muli %arg0, %c2_i32 : i32
    %1 = arith.addi %0, %arg1 : i32
    %c0_i32 = arith.constant 0 : i32
    %c0_i32_0 = arith.constant 0 : i32
    return %1, %c0_i32 : i32, i32
  }
  func.func @transform_8(%arg0: i32, %arg1: i32) -> (i32, i32, i32) {
    %c2_i32 = arith.constant 2 : i32
    %0 = arith.muli %arg0, %c2_i32 : i32
    %1 = arith.addi %0, %arg1 : i32
    %c0_i32 = arith.constant 0 : i32
    %c0_i32_0 = arith.constant 0 : i32
    %c0_i32_1 = arith.constant 0 : i32
    return %1, %c0_i32, %c0_i32_0 : i32, i32, i32
  }
}

module attributes {stable_mosaic.version = 11 : i64} {
  func.func @_affine_relu_matmul_kernel(%arg0: i32, %arg1: memref<1x128xf32, #tpu.memory_space<vmem>>, %arg2: memref<1x128xf32, #tpu.memory_space<vmem>>, %arg3: memref<64x128xbf16, #tpu.memory_space<vmem>>, %arg4: memref<128x512xbf16, #tpu.memory_space<vmem>>, %arg5: memref<64x512xf32, #tpu.memory_space<vmem>>) attributes {dimension_semantics = [#tpu.dimension_semantics<parallel>], iteration_bounds = array<i64: 1>, scalar_prefetch = 0 : i64, scratch_operands = 0 : i64, tpu.core_type = #tpu.core_type<tc>, window_params = [{pipeline_mode = #tpu.pipeline_mode<synchronous>, transform_indices = @transform_0, window_bounds = array<i64: 1, 128>}, {pipeline_mode = #tpu.pipeline_mode<synchronous>, transform_indices = @transform_1, window_bounds = array<i64: 1, 128>}, {transform_indices = @transform_2, window_bounds = array<i64: 64, 128>}, {pipeline_mode = #tpu.pipeline_mode<synchronous>, transform_indices = @transform_3, window_bounds = array<i64: 128, 512>}, {transform_indices = @transform_4, window_bounds = array<i64: 64, 512>}]} {
    %c0 = arith.constant 0 : index
    %c0_0 = arith.constant 0 : index
    %0 = vector.load %arg3[%c0, %c0_0] : memref<64x128xbf16, #tpu.memory_space<vmem>>, vector<64x128xbf16>
    %1 = arith.extf %0 : vector<64x128xbf16> to vector<64x128xf32>
    %c0_1 = arith.constant 0 : index
    %c0_2 = arith.constant 0 : index
    %2 = vector.load %arg1[%c0_1, %c0_2] : memref<1x128xf32, #tpu.memory_space<vmem>>, vector<1x128xf32>
    %3 = vector.broadcast %2 : vector<1x128xf32> to vector<64x128xf32>
    %4 = arith.mulf %1, %3 : vector<64x128xf32>
    %c0_3 = arith.constant 0 : index
    %c0_4 = arith.constant 0 : index
    %5 = vector.load %arg2[%c0_3, %c0_4] : memref<1x128xf32, #tpu.memory_space<vmem>>, vector<1x128xf32>
    %6 = vector.broadcast %5 : vector<1x128xf32> to vector<64x128xf32>
    %7 = arith.addf %4, %6 : vector<64x128xf32>
    %cst = arith.constant 0.000000e+00 : f32
    %8 = vector.broadcast %cst : f32 to vector<64x128xf32>
    %9 = arith.maximumf %7, %8 : vector<64x128xf32>
    %10 = arith.truncf %9 : vector<64x128xf32> to vector<64x128xbf16>
    %c0_5 = arith.constant 0 : index
    %c0_6 = arith.constant 0 : index
    %11 = vector.load %arg4[%c0_5, %c0_6] : memref<128x512xbf16, #tpu.memory_space<vmem>>, vector<128x512xbf16>
    %cst_7 = arith.constant dense<0.000000e+00> : vector<64x512xf32>
    %12 = tpu.matmul %10, %11, %cst_7 {dimension_numbers = #tpu.dot_dimension_numbers<[1], [0], [0], [1], [0, 0, 1, 1], [], []>} : vector<64x128xbf16>, vector<128x512xbf16>, vector<64x512xf32> -> vector<64x512xf32>
    %c0_8 = arith.constant 0 : index
    %c0_9 = arith.constant 0 : index
    %13 = vector.load %arg5[%c0_8, %c0_9] : memref<64x512xf32, #tpu.memory_space<vmem>>, vector<64x512xf32>
    tpu.vector_store %arg5[%c0_8, %c0_9], %12 {strides = array<i32>} : memref<64x512xf32, #tpu.memory_space<vmem>>, vector<64x512xf32>,
    return
  }
  func.func @transform_0(%arg0: i32) -> (i32, i32) {
    %c0_i32 = arith.constant 0 : i32
    %c0_i32_0 = arith.constant 0 : i32
    %c0_i32_1 = arith.constant 0 : i32
    return %c0_i32, %c0_i32_0 : i32, i32
  }
  func.func @transform_1(%arg0: i32) -> (i32, i32) {
    %c0_i32 = arith.constant 0 : i32
    %c0_i32_0 = arith.constant 0 : i32
    %c0_i32_1 = arith.constant 0 : i32
    return %c0_i32, %c0_i32_0 : i32, i32
  }
  func.func @transform_2(%arg0: i32) -> (i32, i32) {
    %c0_i32 = arith.constant 0 : i32
    %c0_i32_0 = arith.constant 0 : i32
    return %arg0, %c0_i32 : i32, i32
  }
  func.func @transform_3(%arg0: i32) -> (i32, i32) {
    %c0_i32 = arith.constant 0 : i32
    %c0_i32_0 = arith.constant 0 : i32
    %c0_i32_1 = arith.constant 0 : i32
    return %c0_i32, %c0_i32_0 : i32, i32
  }
  func.func @transform_4(%arg0: i32) -> (i32, i32) {
    %c0_i32 = arith.constant 0 : i32
    %c0_i32_0 = arith.constant 0 : i32
    return %arg0, %c0_i32 : i32, i32
  }
}

</mosaic_0001>

<llo_original>
// kernel: forward.3
$region0: #{forward.3}
  #allocation0 [shape = 'u32[]', space=smem, size = 0x4, offset = 0x4, fixed_abs, tag = 'smem constant byte address 0x4 - core index']
  #allocation1 [shape = 'u32[144,128]{1,0:T(1,128)}', space=vmem, size = 0x12000, scoped, tag = 'internal scratch']
  %s0 = inlined_call_operand.vmem [shape: bf16[256,256], index: 0, kind: input, shape index: {}]
  %s1 = inlined_call_operand.vmem [shape: bf16[256,128], index: 1, kind: input, shape index: {}]
  %s2 = inlined_call_operand.vmem [shape: bf16[256,128], index: 2, kind: output, shape index: {0}]
  %s3 = inlined_call_operand.vmem [shape: f32[1,2,128], index: 3, kind: output, shape index: {1}]
  %4 = xla_tuple %s2, %s3
  %s5 = sld [smem:[#allocation0]]
  $region26: #{forward.3} parent=0
    _
  %s7 = ssub.s32 1, %s5
  %s8 = scalar_select 0, %s7, %s5
  // Predicated region
  $region2: #{forward.3} parent=0 // pred_check
    _
  $region3: #{forward.3} parent=0 // pred_check_branch
    %10 = sbr.rel (0) target = $region5
  $region4: #{forward.3} parent=0 // pred_region
    _
  $region5: #{forward.3} parent=0 // pred_fallthru
    _
  // Predicated region
  $region6: #{forward.3} parent=0 // pred_check
    _
  $region7: #{forward.3} parent=0 // pred_check_branch
    %12 = sbr.rel (0) target = $region9
  $region8: #{forward.3} parent=0 // pred_region
    _
  $region9: #{forward.3} parent=0 // pred_fallthru
    _
  %v14 = vld [vmem:[%s0] sm:$0xff]
  %v15 = vld [vmem:[%s0 + $0x8] sm:$0xff]
  %v16 = vld [vmem:[%s0 + $0x10] sm:$0xff]
  %v17 = vld [vmem:[%s0 + $0x18] sm:$0xff]
  %v18 = vld [vmem:[%s0 + $0x20] sm:$0xff]
  %v19 = vld [vmem:[%s0 + $0x28] sm:$0xff]
  %v20 = vld [vmem:[%s0 + $0x30] sm:$0xff]
  %v21 = vld [vmem:[%s0 + $0x38] sm:$0xff]
  %v22 = vld [vmem:[%s0 + $0x40] sm:$0xff]
  %v23 = vld [vmem:[%s0 + $0x48] sm:$0xff]
  %v24 = vld [vmem:[%s0 + $0x50] sm:$0xff]
  %v25 = vld [vmem:[%s0 + $0x58] sm:$0xff]
  %v26 = vld [vmem:[%s0 + $0x60] sm:$0xff]
  %v27 = vld [vmem:[%s0 + $0x68] sm:$0xff]
  %v28 = vld [vmem:[%s0 + $0x70] sm:$0xff]
  %v29 = vld [vmem:[%s0 + $0x78] sm:$0xff]
  %v30 = vld [vmem:[%s0 + $0x80] sm:$0xff]
  %v31 = vld [vmem:[%s0 + $0x88] sm:$0xff]
  %v32 = vld [vmem:[%s0 + $0x90] sm:$0xff]
  %v33 = vld [vmem:[%s0 + $0x98] sm:$0xff]
  %v34 = vld [vmem:[%s0 + $0xa0] sm:$0xff]
  %v35 = vld [vmem:[%s0 + $0xa8] sm:$0xff]
  %v36 = vld [vmem:[%s0 + $0xb0] sm:$0xff]
  %v37 = vld [vmem:[%s0 + $0xb8] sm:$0xff]
  %v38 = vld [vmem:[%s0 + $0xc0] sm:$0xff]
  %v39 = vld [vmem:[%s0 + $0xc8] sm:$0xff]
  %v40 = vld [vmem:[%s0 + $0xd0] sm:$0xff]
  %v41 = vld [vmem:[%s0 + $0xd8] sm:$0xff]
  %v42 = vld [vmem:[%s0 + $0xe0] sm:$0xff]
  %v43 = vld [vmem:[%s0 + $0xe8] sm:$0xff]
  %v44 = vld [vmem:[%s0 + $0xf0] sm:$0xff]
  %v45 = vld [vmem:[%s0 + $0xf8] sm:$0xff]
  %v46 = vmax.bf16 %v14, 0
  %v47 = vmax.bf16 %v15, 0
  %v48 = vmax.bf16 %v16, 0
  %v49 = vmax.bf16 %v17, 0
  %v50 = vmax.bf16 %v18, 0
  %v51 = vmax.bf16 %v19, 0
  %v52 = vmax.bf16 %v20, 0
  %v53 = vmax.bf16 %v21, 0
  %v54 = vmax.bf16 %v22, 0
  %v55 = vmax.bf16 %v23, 0
  %v56 = vmax.bf16 %v24, 0
  %v57 = vmax.bf16 %v25, 0
  %v58 = vmax.bf16 %v26, 0
  %v59 = vmax.bf16 %v27, 0
  %v60 = vmax.bf16 %v28, 0
  %v61 = vmax.bf16 %v29, 0
  %v62 = vmax.bf16 %v30, 0
  %v63 = vmax.bf16 %v31, 0
  %v64 = vmax.bf16 %v32, 0
  %v65 = vmax.bf16 %v33, 0
  %v66 = vmax.bf16 %v34, 0
  %v67 = vmax.bf16 %v35, 0
  %v68 = vmax.bf16 %v36, 0
  %v69 = vmax.bf16 %v37, 0
  %v70 = vmax.bf16 %v38, 0
  %v71 = vmax.bf16 %v39, 0
  %v72 = vmax.bf16 %v40, 0
  %v73 = vmax.bf16 %v41, 0
  %v74 = vmax.bf16 %v42, 0
  %v75 = vmax.bf16 %v43, 0
  %v76 = vmax.bf16 %v44, 0
  %v77 = vmax.bf16 %v45, 0
  %v78 = vld [vmem:[%s1] sm:$0xf]
  %v79 = vld [vmem:[%s1 + $0x4] sm:$0xf]
  %v80 = vld [vmem:[%s1 + $0x8] sm:$0xf]
  %v81 = vld [vmem:[%s1 + $0xc] sm:$0xf]
  %v82 = vld [vmem:[%s1 + $0x10] sm:$0xf]
  %v83 = vld [vmem:[%s1 + $0x14] sm:$0xf]
  %v84 = vld [vmem:[%s1 + $0x18] sm:$0xf]
  %v85 = vld [vmem:[%s1 + $0x1c] sm:$0xf]
  %v86 = vld [vmem:[%s1 + $0x20] sm:$0xf]
  %v87 = vld [vmem:[%s1 + $0x24] sm:$0xf]
  %v88 = vld [vmem:[%s1 + $0x28] sm:$0xf]
  %v89 = vld [vmem:[%s1 + $0x2c] sm:$0xf]
  %v90 = vld [vmem:[%s1 + $0x30] sm:$0xf]
  %v91 = vld [vmem:[%s1 + $0x34] sm:$0xf]
  %v92 = vld [vmem:[%s1 + $0x38] sm:$0xf]
  %v93 = vld [vmem:[%s1 + $0x3c] sm:$0xf]
  %v94 = vld [vmem:[%s1 + $0x40] sm:$0xf]
  %v95 = vld [vmem:[%s1 + $0x44] sm:$0xf]
  %v96 = vld [vmem:[%s1 + $0x48] sm:$0xf]
  %v97 = vld [vmem:[%s1 + $0x4c] sm:$0xf]
  %v98 = vld [vmem:[%s1 + $0x50] sm:$0xf]
  %v99 = vld [vmem:[%s1 + $0x54] sm:$0xf]
  %v100 = vld [vmem:[%s1 + $0x58] sm:$0xf]
  %v101 = vld [vmem:[%s1 + $0x5c] sm:$0xf]
  %v102 = vld [vmem:[%s1 + $0x60] sm:$0xf]
  %v103 = vld [vmem:[%s1 + $0x64] sm:$0xf]
  %v104 = vld [vmem:[%s1 + $0x68] sm:$0xf]
  %v105 = vld [vmem:[%s1 + $0x6c] sm:$0xf]
  %v106 = vld [vmem:[%s1 + $0x70] sm:$0xf]
  %v107 = vld [vmem:[%s1 + $0x74] sm:$0xf]
  %v108 = vld [vmem:[%s1 + $0x78] sm:$0xf]
  %v109 = vld [vmem:[%s1 + $0x7c] sm:$0xf]
  %v142 = vunpack.c.l.b16 %v46
  %v143 = vunpack.c.h.b16 %v46
  %v144 = vunpack.c.l.b16 %v47
  %v145 = vunpack.c.h.b16 %v47
  %v146 = vunpack.c.l.b16 %v48
  %v147 = vunpack.c.h.b16 %v48
  %v148 = vunpack.c.l.b16 %v49
  %v149 = vunpack.c.h.b16 %v49
  %v150 = vunpack.c.l.b16 %v50
  %v151 = vunpack.c.h.b16 %v50
  %v152 = vunpack.c.l.b16 %v51
  %v153 = vunpack.c.h.b16 %v51
  %v154 = vunpack.c.l.b16 %v52
  %v155 = vunpack.c.h.b16 %v52
  %v156 = vunpack.c.l.b16 %v53
  %v157 = vunpack.c.h.b16 %v53
  %v158 = vunpack.c.l.b16 %v54
  %v159 = vunpack.c.h.b16 %v54
  %v160 = vunpack.c.l.b16 %v55
  %v161 = vunpack.c.h.b16 %v55
  %v162 = vunpack.c.l.b16 %v56
  %v163 = vunpack.c.h.b16 %v56
  %v164 = vunpack.c.l.b16 %v57
  %v165 = vunpack.c.h.b16 %v57
  %v166 = vunpack.c.l.b16 %v58
  %v167 = vunpack.c.h.b16 %v58
  %v168 = vunpack.c.l.b16 %v59
  %v169 = vunpack.c.h.b16 %v59
  %v170 = vunpack.c.l.b16 %v60
  %v171 = vunpack.c.h.b16 %v60
  %v172 = vunpack.c.l.b16 %v61
  %v173 = vunpack.c.h.b16 %v61
  %v174 = vunpack.c.l.b16 %v62
  %v175 = vunpack.c.h.b16 %v62
  %v176 = vunpack.c.l.b16 %v63
  %v177 = vunpack.c.h.b16 %v63
  %v178 = vunpack.c.l.b16 %v64
  %v179 = vunpack.c.h.b16 %v64
  %v180 = vunpack.c.l.b16 %v65
  %v181 = vunpack.c.h.b16 %v65
  %v182 = vunpack.c.l.b16 %v66
  %v183 = vunpack.c.h.b16 %v66
  %v184 = vunpack.c.l.b16 %v67
  %v185 = vunpack.c.h.b16 %v67
  %v186 = vunpack.c.l.b16 %v68
  %v187 = vunpack.c.h.b16 %v68
  %v188 = vunpack.c.l.b16 %v69
  %v189 = vunpack.c.h.b16 %v69
  %v190 = vunpack.c.l.b16 %v70
  %v191 = vunpack.c.h.b16 %v70
  %v192 = vunpack.c.l.b16 %v71
  %v193 = vunpack.c.h.b16 %v71
  %v194 = vunpack.c.l.b16 %v72
  %v195 = vunpack.c.h.b16 %v72
  %v196 = vunpack.c.l.b16 %v73
  %v197 = vunpack.c.h.b16 %v73
  %v198 = vunpack.c.l.b16 %v74
  %v199 = vunpack.c.h.b16 %v74
  %v200 = vunpack.c.l.b16 %v75
  %v201 = vunpack.c.h.b16 %v75
  %v202 = vunpack.c.l.b16 %v76
  %v203 = vunpack.c.h.b16 %v76
  %v204 = vunpack.c.l.b16 %v77
  %v205 = vunpack.c.h.b16 %v77
  %v206 = vpack.c.b16 %v144, %v142
  %v207 = vpack.c.b16 %v145, %v143
  %v208 = vpack.c.b16 %v148, %v146
  %v209 = vpack.c.b16 %v149, %v147
  %v210 = vpack.c.b16 %v152, %v150
  %v211 = vpack.c.b16 %v153, %v151
  %v212 = vpack.c.b16 %v156, %v154
  %v213 = vpack.c.b16 %v157, %v155
  %v214 = vpack.c.b16 %v160, %v158
  %v215 = vpack.c.b16 %v161, %v159
  %v216 = vpack.c.b16 %v164, %v162
  %v217 = vpack.c.b16 %v165, %v163
  %v218 = vpack.c.b16 %v168, %v166
  %v219 = vpack.c.b16 %v169, %v167
  %v220 = vpack.c.b16 %v172, %v170
  %v221 = vpack.c.b16 %v173, %v171
  %v222 = vpack.c.b16 %v176, %v174
  %v223 = vpack.c.b16 %v177, %v175
  %v224 = vpack.c.b16 %v180, %v178
  %v225 = vpack.c.b16 %v181, %v179
  %v226 = vpack.c.b16 %v184, %v182
  %v227 = vpack.c.b16 %v185, %v183
  %v228 = vpack.c.b16 %v188, %v186
  %v229 = vpack.c.b16 %v189, %v187
  %v230 = vpack.c.b16 %v192, %v190
  %v231 = vpack.c.b16 %v193, %v191
  %v232 = vpack.c.b16 %v196, %v194
  %v233 = vpack.c.b16 %v197, %v195
  %v234 = vpack.c.b16 %v200, %v198
  %v235 = vpack.c.b16 %v201, %v199
  %v236 = vpack.c.b16 %v204, %v202
  %v237 = vpack.c.b16 %v205, %v203
  %v302 = vunpack.c.l.b16 %v78
  %v303 = vunpack.c.l.b16 %v79
  %v304 = vunpack.c.l.b16 %v80
  %v305 = vunpack.c.l.b16 %v81
  %v306 = vunpack.c.l.b16 %v82
  %v307 = vunpack.c.l.b16 %v83
  %v308 = vunpack.c.l.b16 %v84
  %v309 = vunpack.c.l.b16 %v85
  %v310 = vunpack.c.l.b16 %v86
  %v311 = vunpack.c.l.b16 %v87
  %v312 = vunpack.c.l.b16 %v88
  %v313 = vunpack.c.l.b16 %v89
  %v314 = vunpack.c.l.b16 %v90
  %v315 = vunpack.c.l.b16 %v91
  %v316 = vunpack.c.l.b16 %v92
  %v317 = vunpack.c.l.b16 %v93
  %v318 = vunpack.c.l.b16 %v94
  %v319 = vunpack.c.l.b16 %v95
  %v320 = vunpack.c.l.b16 %v96
  %v321 = vunpack.c.l.b16 %v97
  %v322 = vunpack.c.l.b16 %v98
  %v323 = vunpack.c.l.b16 %v99
  %v324 = vunpack.c.l.b16 %v100
  %v325 = vunpack.c.l.b16 %v101
  %v326 = vunpack.c.l.b16 %v102
  %v327 = vunpack.c.l.b16 %v103
  %v328 = vunpack.c.l.b16 %v104
  %v329 = vunpack.c.l.b16 %v105
  %v330 = vunpack.c.l.b16 %v106
  %v331 = vunpack.c.l.b16 %v107
  %v332 = vunpack.c.l.b16 %v108
  %v333 = vunpack.c.l.b16 %v109
  %v334 = vpack.c.b16 %v303, %v302
  %v335 = vpack.c.b16 %v305, %v304
  %v336 = vpack.c.b16 %v307, %v306
  %v337 = vpack.c.b16 %v309, %v308
  %v338 = vpack.c.b16 %v311, %v310
  %v339 = vpack.c.b16 %v313, %v312
  %v340 = vpack.c.b16 %v315, %v314
  %v341 = vpack.c.b16 %v317, %v316
  %v342 = vpack.c.b16 %v319, %v318
  %v343 = vpack.c.b16 %v321, %v320
  %v344 = vpack.c.b16 %v323, %v322
  %v345 = vpack.c.b16 %v325, %v324
  %v346 = vpack.c.b16 %v327, %v326
  %v347 = vpack.c.b16 %v329, %v328
  %v348 = vpack.c.b16 %v331, %v330
  %v349 = vpack.c.b16 %v333, %v332
  %366 = vmatprep.subr.bf16.mxu0 0
  %367 = vmatpush1.bf16.msra.mxu0 %v334
  %368 = vmatprep.subr.bf16.mxu0 0
  %369 = vmatpush1.bf16.msra.mxu0 %v335
  %370 = vmatprep.subr.bf16.mxu0 0
  %371 = vmatpush1.bf16.msra.mxu0 %v336
  %372 = vmatprep.subr.bf16.mxu0 0
  %373 = vmatpush1.bf16.msra.mxu0 %v337
  %374 = vmatprep.subr.bf16.mxu0 0
  %375 = vmatpush1.bf16.msra.mxu0 %v338
  %376 = vmatprep.subr.bf16.mxu0 0
  %377 = vmatpush1.bf16.msra.mxu0 %v339
  %378 = vmatprep.subr.bf16.mxu0 0
  %379 = vmatpush1.bf16.msra.mxu0 %v340
  %380 = vmatprep.subr.bf16.mxu0 0
  %381 = vmatpush1.bf16.msra.mxu0 %v341
  %382 = vmatprep.subr.bf16.mxu0 0
  %383 = vmatpush1.bf16.msra.mxu0 %v342
  %384 = vmatprep.subr.bf16.mxu0 0
  %385 = vmatpush1.bf16.msra.mxu0 %v343
  %386 = vmatprep.subr.bf16.mxu0 0
  %387 = vmatpush1.bf16.msra.mxu0 %v344
  %388 = vmatprep.subr.bf16.mxu0 0
  %389 = vmatpush1.bf16.msra.mxu0 %v345
  %390 = vmatprep.subr.bf16.mxu0 0
  %391 = vmatpush1.bf16.msra.mxu0 %v346
  %392 = vmatprep.subr.bf16.mxu0 0
  %393 = vmatpush1.bf16.msra.mxu0 %v347
  %394 = vmatprep.subr.bf16.mxu0 0
  %395 = vmatpush1.bf16.msra.mxu0 %v348
  %396 = vmatprep.subr.bf16.mxu0 0
  %397 = vmatpush1.bf16.msra.mxu0 %v349
  %398 = vmatprep.mubr.bf16.mxu0 %v207
  %399 = vmatmul.mubr.bf16.gmra.mrb[0].mxu0 %v206
  %v400 = vpop.f32.mrb[0].mxu0
  %v401 = vadd.f32 0.0, %v400
  %v402 = vpop.f32.mrb[0].mxu0
  %v403 = vpop.f32.mrb[0].mxu0
  %v404 = vadd.f32 0.0, %v403
  %v405 = vpop.f32.mrb[0].mxu0
  %406 = vmatprep.mubr.bf16.mxu0 %v209
  %407 = vmatmul.mubr.bf16.gmra.mrb[0].mxu0 %v208
  %v408 = vpop.f32.mrb[0].mxu0
  %v409 = vadd.f32 0.0, %v408
  %v410 = vpop.f32.mrb[0].mxu0
  %v411 = vpop.f32.mrb[0].mxu0
  %v412 = vadd.f32 0.0, %v411
  %v413 = vpop.f32.mrb[0].mxu0
  %414 = vmatprep.mubr.bf16.mxu0 %v211
  %415 = vmatmul.mubr.bf16.gmra.mrb[0].mxu0 %v210
  %v416 = vpop.f32.mrb[0].mxu0
  %v417 = vadd.f32 0.0, %v416
  %v418 = vpop.f32.mrb[0].mxu0
  %v419 = vpop.f32.mrb[0].mxu0
  %v420 = vadd.f32 0.0, %v419
  %v421 = vpop.f32.mrb[0].mxu0
  %422 = vmatprep.mubr.bf16.mxu0 %v213
  %423 = vmatmul.mubr.bf16.gmra.mrb[0].mxu0 %v212
  %v424 = vpop.f32.mrb[0].mxu0
  %v425 = vadd.f32 0.0, %v424
  %v426 = vpop.f32.mrb[0].mxu0
  %v427 = vpop.f32.mrb[0].mxu0
  %v428 = vadd.f32 0.0, %v427
  %v429 = vpop.f32.mrb[0].mxu0
  %430 = vmatprep.mubr.bf16.mxu0 %v215
  %431 = vmatmul.mubr.bf16.gmra.mrb[0].mxu0 %v214
  %v432 = vpop.f32.mrb[0].mxu0
  %v433 = vadd.f32 0.0, %v432
  %v434 = vpop.f32.mrb[0].mxu0
  %v435 = vpop.f32.mrb[0].mxu0
  %v436 = vadd.f32 0.0, %v435
  %v437 = vpop.f32.mrb[0].mxu0
  %438 = vmatprep.mubr.bf16.mxu0 %v217
  %439 = vmatmul.mubr.bf16.gmra.mrb[0].mxu0 %v216
  %v440 = vpop.f32.mrb[0].mxu0
  %v441 = vadd.f32 0.0, %v440
  %v442 = vpop.f32.mrb[0].mxu0
  %v443 = vpop.f32.mrb[0].mxu0
  %v444 = vadd.f32 0.0, %v443
  %v445 = vpop.f32.mrb[0].mxu0
  %446 = vmatprep.mubr.bf16.mxu0 %v219
  %447 = vmatmul.mubr.bf16.gmra.mrb[0].mxu0 %v218
  %v448 = vpop.f32.mrb[0].mxu0
  %v449 = vadd.f32 0.0, %v448
  %v450 = vpop.f32.mrb[0].mxu0
  %v451 = vpop.f32.mrb[0].mxu0
  %v452 = vadd.f32 0.0, %v451
  %v453 = vpop.f32.mrb[0].mxu0
  %454 = vmatprep.mubr.bf16.mxu0 %v221
  %455 = vmatmul.mubr.bf16.gmra.mrb[0].mxu0 %v220
  %v456 = vpop.f32.mrb[0].mxu0
  %v457 = vadd.f32 0.0, %v456
  %v458 = vpop.f32.mrb[0].mxu0
  %v459 = vpop.f32.mrb[0].mxu0
  %v460 = vadd.f32 0.0, %v459
  %v461 = vpop.f32.mrb[0].mxu0
  %462 = vmatprep.mubr.bf16.mxu0 %v223
  %463 = vmatmul.mubr.bf16.gmra.mrb[0].mxu0 %v222
  %v464 = vpop.f32.mrb[0].mxu0
  %v465 = vadd.f32 0.0, %v464
  %v466 = vpop.f32.mrb[0].mxu0
  %v467 = vpop.f32.mrb[0].mxu0
  %v468 = vadd.f32 0.0, %v467
  %v469 = vpop.f32.mrb[0].mxu0
  %470 = vmatprep.mubr.bf16.mxu0 %v225
  %471 = vmatmul.mubr.bf16.gmra.mrb[0].mxu0 %v224
  %v472 = vpop.f32.mrb[0].mxu0
  %v473 = vadd.f32 0.0, %v472
  %v474 = vpop.f32.mrb[0].mxu0
  %v475 = vpop.f32.mrb[0].mxu0
  %v476 = vadd.f32 0.0, %v475
  %v477 = vpop.f32.mrb[0].mxu0
  %478 = vmatprep.mubr.bf16.mxu0 %v227
  %479 = vmatmul.mubr.bf16.gmra.mrb[0].mxu0 %v226
  %v480 = vpop.f32.mrb[0].mxu0
  %v481 = vadd.f32 0.0, %v480
  %v482 = vpop.f32.mrb[0].mxu0
  %v483 = vpop.f32.mrb[0].mxu0
  %v484 = vadd.f32 0.0, %v483
  %v485 = vpop.f32.mrb[0].mxu0
  %486 = vmatprep.mubr.bf16.mxu0 %v229
  %487 = vmatmul.mubr.bf16.gmra.mrb[0].mxu0 %v228
  %v488 = vpop.f32.mrb[0].mxu0
  %v489 = vadd.f32 0.0, %v488
  %v490 = vpop.f32.mrb[0].mxu0
  %v491 = vpop.f32.mrb[0].mxu0
  %v492 = vadd.f32 0.0, %v491
  %v493 = vpop.f32.mrb[0].mxu0
  %494 = vmatprep.mubr.bf16.mxu0 %v231
  %495 = vmatmul.mubr.bf16.gmra.mrb[0].mxu0 %v230
  %v496 = vpop.f32.mrb[0].mxu0
  %v497 = vadd.f32 0.0, %v496
  %v498 = vpop.f32.mrb[0].mxu0
  %v499 = vpop.f32.mrb[0].mxu0
  %v500 = vadd.f32 0.0, %v499
  %v501 = vpop.f32.mrb[0].mxu0
  %502 = vmatprep.mubr.bf16.mxu0 %v233
  %503 = vmatmul.mubr.bf16.gmra.mrb[0].mxu0 %v232
  %v504 = vpop.f32.mrb[0].mxu0
  %v505 = vadd.f32 0.0, %v504
  %v506 = vpop.f32.mrb[0].mxu0
  %v507 = vpop.f32.mrb[0].mxu0
  %v508 = vadd.f32 0.0, %v507
  %v509 = vpop.f32.mrb[0].mxu0
  %510 = vmatprep.mubr.bf16.mxu0 %v235
  %511 = vmatmul.mubr.bf16.gmra.mrb[0].mxu0 %v234
  %v512 = vpop.f32.mrb[0].mxu0
  %v513 = vadd.f32 0.0, %v512
  %v514 = vpop.f32.mrb[0].mxu0
  %v515 = vpop.f32.mrb[0].mxu0
  %v516 = vadd.f32 0.0, %v515
  %v517 = vpop.f32.mrb[0].mxu0
  %518 = vmatprep.mubr.bf16.mxu0 %v237
  %519 = vmatmul.mubr.bf16.gmra.mrb[0].mxu0 %v236
  %v520 = vpop.f32.mrb[0].mxu0
  %v521 = vadd.f32 0.0, %v520
  %v522 = vpop.f32.mrb[0].mxu0
  %v523 = vpop.f32.mrb[0].mxu0
  %v524 = vadd.f32 0.0, %v523
  %v525 = vpop.f32.mrb[0].mxu0
  %526 = vdwg.mxu0
  %v527 = vpack.c.bf16 %v404, %v401
  %v528 = vpack.c.bf16 %v412, %v409
  %v529 = vpack.c.bf16 %v420, %v417
  %v530 = vpack.c.bf16 %v428, %v425
  %v531 = vpack.c.bf16 %v436, %v433
  %v532 = vpack.c.bf16 %v444, %v441
  %v533 = vpack.c.bf16 %v452, %v449
  %v534 = vpack.c.bf16 %v460, %v457
  %v535 = vpack.c.bf16 %v468, %v465
  %v536 = vpack.c.bf16 %v476, %v473
  %v537 = vpack.c.bf16 %v484, %v481
  %v538 = vpack.c.bf16 %v492, %v489
  %v539 = vpack.c.bf16 %v500, %v497
  %v540 = vpack.c.bf16 %v508, %v505
  %v541 = vpack.c.bf16 %v516, %v513
  %v542 = vpack.c.bf16 %v524, %v521
  %v559 = vunpack.c.l.b16 %v527
  %v560 = vunpack.c.h.b16 %v527
  %v561 = vunpack.c.l.b16 %v528
  %v562 = vunpack.c.h.b16 %v528
  %v563 = vunpack.c.l.b16 %v529
  %v564 = vunpack.c.h.b16 %v529
  %v565 = vunpack.c.l.b16 %v530
  %v566 = vunpack.c.h.b16 %v530
  %v567 = vunpack.c.l.b16 %v531
  %v568 = vunpack.c.h.b16 %v531
  %v569 = vunpack.c.l.b16 %v532
  %v570 = vunpack.c.h.b16 %v532
  %v571 = vunpack.c.l.b16 %v533
  %v572 = vunpack.c.h.b16 %v533
  %v573 = vunpack.c.l.b16 %v534
  %v574 = vunpack.c.h.b16 %v534
  %v575 = vunpack.c.l.b16 %v535
  %v576 = vunpack.c.h.b16 %v535
  %v577 = vunpack.c.l.b16 %v536
  %v578 = vunpack.c.h.b16 %v536
  %v579 = vunpack.c.l.b16 %v537
  %v580 = vunpack.c.h.b16 %v537
  %v581 = vunpack.c.l.b16 %v538
  %v582 = vunpack.c.h.b16 %v538
  %v583 = vunpack.c.l.b16 %v539
  %v584 = vunpack.c.h.b16 %v539
  %v585 = vunpack.c.l.b16 %v540
  %v586 = vunpack.c.h.b16 %v540
  %v587 = vunpack.c.l.b16 %v541
  %v588 = vunpack.c.h.b16 %v541
  %v589 = vunpack.c.l.b16 %v542
  %v590 = vunpack.c.h.b16 %v542
  %v591 = vpack.c.b16 %v559, %v559
  %v592 = vpack.c.b16 %v560, %v560
  %v593 = vpack.c.b16 %v561, %v561
  %v594 = vpack.c.b16 %v562, %v562
  %v595 = vpack.c.b16 %v563, %v563
  %v596 = vpack.c.b16 %v564, %v564
  %v597 = vpack.c.b16 %v565, %v565
  %v598 = vpack.c.b16 %v566, %v566
  %v599 = vpack.c.b16 %v567, %v567
  %v600 = vpack.c.b16 %v568, %v568
  %v601 = vpack.c.b16 %v569, %v569
  %v602 = vpack.c.b16 %v570, %v570
  %v603 = vpack.c.b16 %v571, %v571
  %v604 = vpack.c.b16 %v572, %v572
  %v605 = vpack.c.b16 %v573, %v573
  %v606 = vpack.c.b16 %v574, %v574
  %v607 = vpack.c.b16 %v575, %v575
  %v608 = vpack.c.b16 %v576, %v576
  %v609 = vpack.c.b16 %v577, %v577
  %v610 = vpack.c.b16 %v578, %v578
  %v611 = vpack.c.b16 %v579, %v579
  %v612 = vpack.c.b16 %v580, %v580
  %v613 = vpack.c.b16 %v581, %v581
  %v614 = vpack.c.b16 %v582, %v582
  %v615 = vpack.c.b16 %v583, %v583
  %v616 = vpack.c.b16 %v584, %v584
  %v617 = vpack.c.b16 %v585, %v585
  %v618 = vpack.c.b16 %v586, %v586
  %v619 = vpack.c.b16 %v587, %v587
  %v620 = vpack.c.b16 %v588, %v588
  %v621 = vpack.c.b16 %v589, %v589
  %v622 = vpack.c.b16 %v590, %v590
  %655 = vst [vmem:[%s2] sm:$0xf] %v591
  %656 = vst [vmem:[%s2 + $0x4] sm:$0xf] %v592
  %657 = vst [vmem:[%s2 + $0x8] sm:$0xf] %v593
  %658 = vst [vmem:[%s2 + $0xc] sm:$0xf] %v594
  %659 = vst [vmem:[%s2 + $0x10] sm:$0xf] %v595
  %660 = vst [vmem:[%s2 + $0x14] sm:$0xf] %v596
  %661 = vst [vmem:[%s2 + $0x18] sm:$0xf] %v597
  %662 = vst [vmem:[%s2 + $0x1c] sm:$0xf] %v598
  %663 = vst [vmem:[%s2 + $0x20] sm:$0xf] %v599
  %664 = vst [vmem:[%s2 + $0x24] sm:$0xf] %v600
  %665 = vst [vmem:[%s2 + $0x28] sm:$0xf] %v601
  %666 = vst [vmem:[%s2 + $0x2c] sm:$0xf] %v602
  %667 = vst [vmem:[%s2 + $0x30] sm:$0xf] %v603
  %668 = vst [vmem:[%s2 + $0x34] sm:$0xf] %v604
  %669 = vst [vmem:[%s2 + $0x38] sm:$0xf] %v605
  %670 = vst [vmem:[%s2 + $0x3c] sm:$0xf] %v606
  %671 = vst [vmem:[%s2 + $0x40] sm:$0xf] %v607
  %672 = vst [vmem:[%s2 + $0x44] sm:$0xf] %v608
  %673 = vst [vmem:[%s2 + $0x48] sm:$0xf] %v609
  %674 = vst [vmem:[%s2 + $0x4c] sm:$0xf] %v610
  %675 = vst [vmem:[%s2 + $0x50] sm:$0xf] %v611
  %676 = vst [vmem:[%s2 + $0x54] sm:$0xf] %v612
  %677 = vst [vmem:[%s2 + $0x58] sm:$0xf] %v613
  %678 = vst [vmem:[%s2 + $0x5c] sm:$0xf] %v614
  %679 = vst [vmem:[%s2 + $0x60] sm:$0xf] %v615
  %680 = vst [vmem:[%s2 + $0x64] sm:$0xf] %v616
  %681 = vst [vmem:[%s2 + $0x68] sm:$0xf] %v617
  %682 = vst [vmem:[%s2 + $0x6c] sm:$0xf] %v618
  %683 = vst [vmem:[%s2 + $0x70] sm:$0xf] %v619
  %684 = vst [vmem:[%s2 + $0x74] sm:$0xf] %v620
  %685 = vst [vmem:[%s2 + $0x78] sm:$0xf] %v621
  %686 = vst [vmem:[%s2 + $0x7c] sm:$0xf] %v622
  %v687 = vadd.f32 %v401, %v404
  %v688 = vadd.f32 %v687, %v409
  %v689 = vadd.f32 %v688, %v412
  %v690 = vadd.f32 %v689, %v417
  %v691 = vadd.f32 %v690, %v420
  %v692 = vadd.f32 %v691, %v425
  %v693 = vadd.f32 %v692, %v428
  %v694 = vadd.f32 %v693, %v433
  %v695 = vadd.f32 %v694, %v436
  %v696 = vadd.f32 %v695, %v441
  %v697 = vadd.f32 %v696, %v444
  %v698 = vadd.f32 %v697, %v449
  %v699 = vadd.f32 %v698, %v452
  %v700 = vadd.f32 %v699, %v457
  %v701 = vadd.f32 %v700, %v460
  %v702 = vadd.f32 %v701, %v465
  %v703 = vadd.f32 %v702, %v468
  %v704 = vadd.f32 %v703, %v473
  %v705 = vadd.f32 %v704, %v476
  %v706 = vadd.f32 %v705, %v481
  %v707 = vadd.f32 %v706, %v484
  %v708 = vadd.f32 %v707, %v489
  %v709 = vadd.f32 %v708, %v492
  %v710 = vadd.f32 %v709, %v497
  %v711 = vadd.f32 %v710, %v500
  %v712 = vadd.f32 %v711, %v505
  %v713 = vadd.f32 %v712, %v508
  %v714 = vadd.f32 %v713, %v513
  %v715 = vadd.f32 %v714, %v516
  %v716 = vadd.f32 %v715, %v521
  %v717 = vadd.f32 %v716, %v524
  %v718 = vrot.slane %v717, 4
  %v719 = vadd.f32 %v717, %v718
  %v720 = vrot.slane %v719, 2
  %v721 = vadd.f32 %v719, %v720
  %v722 = vrot.slane %v721, 1
  %v723 = vadd.f32 %v721, %v722
  %724 = vst [vmem:[%s3] sm:$0x1] %v723
  %v725 = vmul.f32 %v401, %v401
  %v726 = vmul.f32 %v404, %v404
  %v727 = vmul.f32 %v409, %v409
  %v728 = vmul.f32 %v412, %v412
  %v729 = vmul.f32 %v417, %v417
  %v730 = vmul.f32 %v420, %v420
  %v731 = vmul.f32 %v425, %v425
  %v732 = vmul.f32 %v428, %v428
  %v733 = vmul.f32 %v433, %v433
  %v734 = vmul.f32 %v436, %v436
  %v735 = vmul.f32 %v441, %v441
  %v736 = vmul.f32 %v444, %v444
  %v737 = vmul.f32 %v449, %v449
  %v738 = vmul.f32 %v452, %v452
  %v739 = vmul.f32 %v457, %v457
  %v740 = vmul.f32 %v460, %v460
  %v741 = vmul.f32 %v465, %v465
  %v742 = vmul.f32 %v468, %v468
  %v743 = vmul.f32 %v473, %v473
  %v744 = vmul.f32 %v476, %v476
  %v745 = vmul.f32 %v481, %v481
  %v746 = vmul.f32 %v484, %v484
  %v747 = vmul.f32 %v489, %v489
  %v748 = vmul.f32 %v492, %v492
  %v749 = vmul.f32 %v497, %v497
  %v750 = vmul.f32 %v500, %v500
  %v751 = vmul.f32 %v505, %v505
  %v752 = vmul.f32 %v508, %v508
  %v753 = vmul.f32 %v513, %v513
  %v754 = vmul.f32 %v516, %v516
  %v755 = vmul.f32 %v521, %v521
  %v756 = vmul.f32 %v524, %v524
  %v757 = vadd.f32 %v725, %v726
  %v758 = vadd.f32 %v757, %v727
  %v759 = vadd.f32 %v758, %v728
  %v760 = vadd.f32 %v759, %v729
  %v761 = vadd.f32 %v760, %v730
  %v762 = vadd.f32 %v761, %v731
  %v763 = vadd.f32 %v762, %v732
  %v764 = vadd.f32 %v763, %v733
  %v765 = vadd.f32 %v764, %v734
  %v766 = vadd.f32 %v765, %v735
  %v767 = vadd.f32 %v766, %v736
  %v768 = vadd.f32 %v767, %v737
  %v769 = vadd.f32 %v768, %v738
  %v770 = vadd.f32 %v769, %v739
  %v771 = vadd.f32 %v770, %v740
  %v772 = vadd.f32 %v771, %v741
  %v773 = vadd.f32 %v772, %v742
  %v774 = vadd.f32 %v773, %v743
  %v775 = vadd.f32 %v774, %v744
  %v776 = vadd.f32 %v775, %v745
  %v777 = vadd.f32 %v776, %v746
  %v778 = vadd.f32 %v777, %v747
  %v779 = vadd.f32 %v778, %v748
  %v780 = vadd.f32 %v779, %v749
  %v781 = vadd.f32 %v780, %v750
  %v782 = vadd.f32 %v781, %v751
  %v783 = vadd.f32 %v782, %v752
  %v784 = vadd.f32 %v783, %v753
  %v785 = vadd.f32 %v784, %v754
  %v786 = vadd.f32 %v785, %v755
  %v787 = vadd.f32 %v786, %v756
  %v788 = vrot.slane %v787, 4
  %v789 = vadd.f32 %v787, %v788
  %v790 = vrot.slane %v789, 2
  %v791 = vadd.f32 %v789, %v790
  %v792 = vrot.slane %v791, 1
  %v793 = vadd.f32 %v791, %v792
  %794 = vst [vmem:[%s3 + $0x1] sm:$0x1] %v793
  // Predicated region
  $region10: #{forward.3} parent=0 // pred_check
    _
  $region11: #{forward.3} parent=0 // pred_check_branch
    %796 = sbr.rel (0) target = $region13
  $region12: #{forward.3} parent=0 // pred_region
    _
  $region13: #{forward.3} parent=0 // pred_fallthru
    _
  // Predicated region
  $region14: #{forward.3} parent=0 // pred_check
    _
  $region15: #{forward.3} parent=0 // pred_check_branch
    %798 = sbr.rel (0) target = $region17
  $region16: #{forward.3} parent=0 // pred_region
    _
  $region17: #{forward.3} parent=0 // pred_fallthru
    _
  // Predicated region
  $region18: #{forward.3} parent=0 // pred_check
    _
  $region19: #{forward.3} parent=0 // pred_check_branch
    %800 = sbr.rel (0) target = $region21
  $region20: #{forward.3} parent=0 // pred_region
    _
  $region21: #{forward.3} parent=0 // pred_fallthru
    _
  // Predicated region
  $region22: #{forward.3} parent=0 // pred_check
    _
  $region23: #{forward.3} parent=0 // pred_check_branch
    %802 = sbr.rel (0) target = $region25
  $region24: #{forward.3} parent=0 // pred_region
    _
  $region25: #{forward.3} parent=0 // pred_fallthru
    _

// kernel: forward.5
$region0: #{forward.5}
  #allocation0 [shape = 'u32[]', space=smem, size = 0x4, offset = 0x4, fixed_abs, tag = 'smem constant byte address 0x4 - core index']
  #allocation1 [shape = 'u32[144,128]{1,0:T(1,128)}', space=vmem, size = 0x12000, scoped, tag = 'internal scratch']
  %s0 = inlined_call_operand.vmem [shape: f32[1,128], index: 0, kind: input, shape index: {}]
  %s1 = inlined_call_operand.vmem [shape: f32[1,128], index: 1, kind: input, shape index: {}]
  %s2 = inlined_call_operand.vmem [shape: bf16[64,128], index: 2, kind: input, shape index: {}]
  %s3 = inlined_call_operand.vmem [shape: bf16[128,512], index: 3, kind: input, shape index: {}]
  %s4 = inlined_call_operand.hbm [shape: f32[64,512], index: 4, kind: output, shape index: {}]
  %s5 = sld [smem:[#allocation0]]
  $region26: #{forward.5} parent=0
    _
  %s7 = ssub.s32 1, %s5
  %s8 = scalar_select 0, %s7, %s5
  $region1: #{forward.5} parent=0
    #allocation2 [shape = 'u8[131072]{0}', space=vmem, size = 0x20000, scoped, tag = 'output window, operand 0, single buffered']
    #allocation3 [shape = 's32[1]{0}', space=sflag, size = 0x4, scoped, tag = 'scoped memory for forward.5']
    %9 = vsyncpa [#allocation3], 0
    // Predicated region
    $region2: #{forward.5} parent=1 // pred_check
      _
    $region3: #{forward.5} parent=1 // pred_check_branch
      %11 = sbr.rel (0) target = $region5
    $region4: #{forward.5} parent=1 // pred_region
      _
    $region5: #{forward.5} parent=1 // pred_fallthru
      _
    // Predicated region
    $region6: #{forward.5} parent=1 // pred_check
      _
    $region7: #{forward.5} parent=1 // pred_check_branch
      %13 = sbr.rel (0) target = $region9
    $region8: #{forward.5} parent=1 // pred_region
      _
    $region9: #{forward.5} parent=1 // pred_fallthru
      _
    // Predicated region
    $region10: #{forward.5} parent=1 // pred_check
      _
    $region11: #{forward.5} parent=1 // pred_check_branch
      %15 = sbr.rel (0) target = $region13
    $region12: #{forward.5} parent=1 // pred_region
      _
    $region13: #{forward.5} parent=1 // pred_fallthru
      _
    // Predicated region
    $region14: #{forward.5} parent=1 // pred_check
      _
    $region15: #{forward.5} parent=1 // pred_check_branch
      %17 = sbr.rel (0) target = $region17
    $region16: #{forward.5} parent=1 // pred_region
      _
    $region17: #{forward.5} parent=1 // pred_fallthru
      _
    %v19 = vld [vmem:[%s2] sm:$0xf]
    %v20 = vld [vmem:[%s2 + $0x4] sm:$0xf]
    %v21 = vld [vmem:[%s2 + $0x8] sm:$0xf]
    %v22 = vld [vmem:[%s2 + $0xc] sm:$0xf]
    %v23 = vld [vmem:[%s2 + $0x10] sm:$0xf]
    %v24 = vld [vmem:[%s2 + $0x14] sm:$0xf]
    %v25 = vld [vmem:[%s2 + $0x18] sm:$0xf]
    %v26 = vld [vmem:[%s2 + $0x1c] sm:$0xf]
    %v27 = vunpack.c.l.bf16 %v19
    %v28 = vunpack.c.l.bf16 %v20
    %v29 = vunpack.c.l.bf16 %v21
    %v30 = vunpack.c.l.bf16 %v22
    %v31 = vunpack.c.l.bf16 %v23
    %v32 = vunpack.c.l.bf16 %v24
    %v33 = vunpack.c.l.bf16 %v25
    %v34 = vunpack.c.l.bf16 %v26
    %v35 = vld [vmem:[%s0] sm:$0x1]
    %v37 = vlaneseq
    %v38 = vshrl.u32 %v37, 7
    %v39 = vsub.s32 0, %v38
    %v40 = vrot.slane %v35, %v39
    %v42 = vmul.f32 %v27, %v40
    %v43 = vmul.f32 %v28, %v40
    %v44 = vmul.f32 %v29, %v40
    %v45 = vmul.f32 %v30, %v40
    %v46 = vmul.f32 %v31, %v40
    %v47 = vmul.f32 %v32, %v40
    %v48 = vmul.f32 %v33, %v40
    %v49 = vmul.f32 %v34, %v40
    %v50 = vld [vmem:[%s1] sm:$0x1]
    %v52 = vlaneseq
    %v53 = vshrl.u32 %v52, 7
    %v54 = vsub.s32 0, %v53
    %v55 = vrot.slane %v50, %v54
    %v57 = vadd.f32 %v42, %v55
    %v58 = vadd.f32 %v43, %v55
    %v59 = vadd.f32 %v44, %v55
    %v60 = vadd.f32 %v45, %v55
    %v61 = vadd.f32 %v46, %v55
    %v62 = vadd.f32 %v47, %v55
    %v63 = vadd.f32 %v48, %v55
    %v64 = vadd.f32 %v49, %v55
    %v65 = vmax.f32 %v57, 0.0
    %v66 = vmax.f32 %v58, 0.0
    %v67 = vmax.f32 %v59, 0.0
    %v68 = vmax.f32 %v60, 0.0
    %v69 = vmax.f32 %v61, 0.0
    %v70 = vmax.f32 %v62, 0.0
    %v71 = vmax.f32 %v63, 0.0
    %v72 = vmax.f32 %v64, 0.0
    %v73 = vpack.c.bf16 %v66, %v65
    %v74 = vpack.c.bf16 %v68, %v67
    %v75 = vpack.c.bf16 %v70, %v69
    %v76 = vpack.c.bf16 %v72, %v71
    %v77 = vld [vmem:[%s3] sm:$0xff]
    %v78 = vld [vmem:[%s3 + $0x8] sm:$0xff]
    %v79 = vld [vmem:[%s3 + $0x10] sm:$0xff]
    %v80 = vld [vmem:[%s3 + $0x18] sm:$0xff]
    %v81 = vld [vmem:[%s3 + $0x20] sm:$0xff]
    %v82 = vld [vmem:[%s3 + $0x28] sm:$0xff]
    %v83 = vld [vmem:[%s3 + $0x30] sm:$0xff]
    %v84 = vld [vmem:[%s3 + $0x38] sm:$0xff]
    %v85 = vld [vmem:[%s3 + $0x40] sm:$0xff]
    %v86 = vld [vmem:[%s3 + $0x48] sm:$0xff]
    %v87 = vld [vmem:[%s3 + $0x50] sm:$0xff]
    %v88 = vld [vmem:[%s3 + $0x58] sm:$0xff]
    %v89 = vld [vmem:[%s3 + $0x60] sm:$0xff]
    %v90 = vld [vmem:[%s3 + $0x68] sm:$0xff]
    %v91 = vld [vmem:[%s3 + $0x70] sm:$0xff]
    %v92 = vld [vmem:[%s3 + $0x78] sm:$0xff]
    %v93 = vld [vmem:[%s3 + $0x80] sm:$0xff]
    %v94 = vld [vmem:[%s3 + $0x88] sm:$0xff]
    %v95 = vld [vmem:[%s3 + $0x90] sm:$0xff]
    %v96 = vld [vmem:[%s3 + $0x98] sm:$0xff]
    %v97 = vld [vmem:[%s3 + $0xa0] sm:$0xff]
    %v98 = vld [vmem:[%s3 + $0xa8] sm:$0xff]
    %v99 = vld [vmem:[%s3 + $0xb0] sm:$0xff]
    %v100 = vld [vmem:[%s3 + $0xb8] sm:$0xff]
    %v101 = vld [vmem:[%s3 + $0xc0] sm:$0xff]
    %v102 = vld [vmem:[%s3 + $0xc8] sm:$0xff]
    %v103 = vld [vmem:[%s3 + $0xd0] sm:$0xff]
    %v104 = vld [vmem:[%s3 + $0xd8] sm:$0xff]
    %v105 = vld [vmem:[%s3 + $0xe0] sm:$0xff]
    %v106 = vld [vmem:[%s3 + $0xe8] sm:$0xff]
    %v107 = vld [vmem:[%s3 + $0xf0] sm:$0xff]
    %v108 = vld [vmem:[%s3 + $0xf8] sm:$0xff]
    %v141 = vunpack.c.l.b16 %v77
    %v142 = vunpack.c.h.b16 %v77
    %v143 = vunpack.c.l.b16 %v78
    %v144 = vunpack.c.h.b16 %v78
    %v145 = vunpack.c.l.b16 %v79
    %v146 = vunpack.c.h.b16 %v79
    %v147 = vunpack.c.l.b16 %v80
    %v148 = vunpack.c.h.b16 %v80
    %v149 = vunpack.c.l.b16 %v81
    %v150 = vunpack.c.h.b16 %v81
    %v151 = vunpack.c.l.b16 %v82
    %v152 = vunpack.c.h.b16 %v82
    %v153 = vunpack.c.l.b16 %v83
    %v154 = vunpack.c.h.b16 %v83
    %v155 = vunpack.c.l.b16 %v84
    %v156 = vunpack.c.h.b16 %v84
    %v157 = vunpack.c.l.b16 %v85
    %v158 = vunpack.c.h.b16 %v85
    %v159 = vunpack.c.l.b16 %v86
    %v160 = vunpack.c.h.b16 %v86
    %v161 = vunpack.c.l.b16 %v87
    %v162 = vunpack.c.h.b16 %v87
    %v163 = vunpack.c.l.b16 %v88
    %v164 = vunpack.c.h.b16 %v88
    %v165 = vunpack.c.l.b16 %v89
    %v166 = vunpack.c.h.b16 %v89
    %v167 = vunpack.c.l.b16 %v90
    %v168 = vunpack.c.h.b16 %v90
    %v169 = vunpack.c.l.b16 %v91
    %v170 = vunpack.c.h.b16 %v91
    %v171 = vunpack.c.l.b16 %v92
    %v172 = vunpack.c.h.b16 %v92
    %v173 = vunpack.c.l.b16 %v93
    %v174 = vunpack.c.h.b16 %v93
    %v175 = vunpack.c.l.b16 %v94
    %v176 = vunpack.c.h.b16 %v94
    %v177 = vunpack.c.l.b16 %v95
    %v178 = vunpack.c.h.b16 %v95
    %v179 = vunpack.c.l.b16 %v96
    %v180 = vunpack.c.h.b16 %v96
    %v181 = vunpack.c.l.b16 %v97
    %v182 = vunpack.c.h.b16 %v97
    %v183 = vunpack.c.l.b16 %v98
    %v184 = vunpack.c.h.b16 %v98
    %v185 = vunpack.c.l.b16 %v99
    %v186 = vunpack.c.h.b16 %v99
    %v187 = vunpack.c.l.b16 %v100
    %v188 = vunpack.c.h.b16 %v100
    %v189 = vunpack.c.l.b16 %v101
    %v190 = vunpack.c.h.b16 %v101
    %v191 = vunpack.c.l.b16 %v102
    %v192 = vunpack.c.h.b16 %v102
    %v193 = vunpack.c.l.b16 %v103
    %v194 = vunpack.c.h.b16 %v103
    %v195 = vunpack.c.l.b16 %v104
    %v196 = vunpack.c.h.b16 %v104
    %v197 = vunpack.c.l.b16 %v105
    %v198 = vunpack.c.h.b16 %v105
    %v199 = vunpack.c.l.b16 %v106
    %v200 = vunpack.c.h.b16 %v106
    %v201 = vunpack.c.l.b16 %v107
    %v202 = vunpack.c.h.b16 %v107
    %v203 = vunpack.c.l.b16 %v108
    %v204 = vunpack.c.h.b16 %v108
    %v205 = vpack.c.b16 %v145, %v141
    %v206 = vpack.c.b16 %v146, %v142
    %v207 = vpack.c.b16 %v147, %v143
    %v208 = vpack.c.b16 %v148, %v144
    %v209 = vpack.c.b16 %v153, %v149
    %v210 = vpack.c.b16 %v154, %v150
    %v211 = vpack.c.b16 %v155, %v151
    %v212 = vpack.c.b16 %v156, %v152
    %v213 = vpack.c.b16 %v161, %v157
    %v214 = vpack.c.b16 %v162, %v158
    %v215 = vpack.c.b16 %v163, %v159
    %v216 = vpack.c.b16 %v164, %v160
    %v217 = vpack.c.b16 %v169, %v165
    %v218 = vpack.c.b16 %v170, %v166
    %v219 = vpack.c.b16 %v171, %v167
    %v220 = vpack.c.b16 %v172, %v168
    %v221 = vpack.c.b16 %v177, %v173
    %v222 = vpack.c.b16 %v178, %v174
    %v223 = vpack.c.b16 %v179, %v175
    %v224 = vpack.c.b16 %v180, %v176
    %v225 = vpack.c.b16 %v185, %v181
    %v226 = vpack.c.b16 %v186, %v182
    %v227 = vpack.c.b16 %v187, %v183
    %v228 = vpack.c.b16 %v188, %v184
    %v229 = vpack.c.b16 %v193, %v189
    %v230 = vpack.c.b16 %v194, %v190
    %v231 = vpack.c.b16 %v195, %v191
    %v232 = vpack.c.b16 %v196, %v192
    %v233 = vpack.c.b16 %v201, %v197
    %v234 = vpack.c.b16 %v202, %v198
    %v235 = vpack.c.b16 %v203, %v199
    %v236 = vpack.c.b16 %v204, %v200
    %269 = vmatprep.subr.bf16.mxu0 %v206
    %270 = vmatpush1.bf16.msra.mxu0 %v205
    %271 = vmatprep.subr.bf16.mxu0 %v210
    %272 = vmatpush1.bf16.msra.mxu0 %v209
    %273 = vmatprep.subr.bf16.mxu0 %v214
    %274 = vmatpush1.bf16.msra.mxu0 %v213
    %275 = vmatprep.subr.bf16.mxu0 %v218
    %276 = vmatpush1.bf16.msra.mxu0 %v217
    %277 = vmatprep.subr.bf16.mxu0 %v222
    %278 = vmatpush1.bf16.msra.mxu0 %v221
    %279 = vmatprep.subr.bf16.mxu0 %v226
    %280 = vmatpush1.bf16.msra.mxu0 %v225
    %281 = vmatprep.subr.bf16.mxu0 %v230
    %282 = vmatpush1.bf16.msra.mxu0 %v229
    %283 = vmatprep.subr.bf16.mxu0 %v234
    %284 = vmatpush1.bf16.msra.mxu0 %v233
    %285 = vmatprep.subr.bf16.mxu0 0
    %286 = vmatpush1.bf16.msra.mxu0 0
    %287 = vmatprep.subr.bf16.mxu0 0
    %288 = vmatpush1.bf16.msra.mxu0 0
    %289 = vmatprep.subr.bf16.mxu0 0
    %290 = vmatpush1.bf16.msra.mxu0 0
    %291 = vmatprep.subr.bf16.mxu0 0
    %292 = vmatpush1.bf16.msra.mxu0 0
    %293 = vmatprep.subr.bf16.mxu0 0
    %294 = vmatpush1.bf16.msra.mxu0 0
    %295 = vmatprep.subr.bf16.mxu0 0
    %296 = vmatpush1.bf16.msra.mxu0 0
    %297 = vmatprep.subr.bf16.mxu0 0
    %298 = vmatpush1.bf16.msra.mxu0 0
    %299 = vmatprep.subr.bf16.mxu0 0
    %300 = vmatpush1.bf16.msra.mxu0 0
    %301 = vmatprep.mubr.bf16.mxu0 0
    %302 = vmatmul.mubr.bf16.gmra.mrb[0].mxu0 %v73
    %v303 = vpop.f32.mrb[0].mxu0
    %v304 = vadd.f32 0.0, %v303
    %v305 = vpop.f32.mrb[0].mxu0
    %v306 = vadd.f32 0.0, %v305
    %v307 = vpop.f32.mrb[0].mxu0
    %v308 = vadd.f32 0.0, %v307
    %v309 = vpop.f32.mrb[0].mxu0
    %v310 = vadd.f32 0.0, %v309
    %311 = vmatprep.mubr.bf16.mxu0 0
    %312 = vmatmul.mubr.bf16.gmra.mrb[0].mxu0 %v74
    %v313 = vpop.f32.mrb[0].mxu0
    %v314 = vadd.f32 0.0, %v313
    %v315 = vpop.f32.mrb[0].mxu0
    %v316 = vadd.f32 0.0, %v315
    %v317 = vpop.f32.mrb[0].mxu0
    %v318 = vadd.f32 0.0, %v317
    %v319 = vpop.f32.mrb[0].mxu0
    %v320 = vadd.f32 0.0, %v319
    %321 = vmatprep.mubr.bf16.mxu0 0
    %322 = vmatmul.mubr.bf16.gmra.mrb[0].mxu0 %v75
    %v323 = vpop.f32.mrb[0].mxu0
    %v324 = vadd.f32 0.0, %v323
    %v325 = vpop.f32.mrb[0].mxu0
    %v326 = vadd.f32 0.0, %v325
    %v327 = vpop.f32.mrb[0].mxu0
    %v328 = vadd.f32 0.0, %v327
    %v329 = vpop.f32.mrb[0].mxu0
    %v330 = vadd.f32 0.0, %v329
    %331 = vmatprep.mubr.bf16.mxu0 0
    %332 = vmatmul.mubr.bf16.gmra.mrb[0].mxu0 %v76
    %v333 = vpop.f32.mrb[0].mxu0
    %v334 = vadd.f32 0.0, %v333
    %v335 = vpop.f32.mrb[0].mxu0
    %v336 = vadd.f32 0.0, %v335
    %v337 = vpop.f32.mrb[0].mxu0
    %v338 = vadd.f32 0.0, %v337
    %v339 = vpop.f32.mrb[0].mxu0
    %v340 = vadd.f32 0.0, %v339
    %341 = vdwg.mxu0
    %342 = vmatprep.subr.bf16.mxu0 %v208
    %343 = vmatpush1.bf16.msra.mxu0 %v207
    %344 = vmatprep.subr.bf16.mxu0 %v212
    %345 = vmatpush1.bf16.msra.mxu0 %v211
    %346 = vmatprep.subr.bf16.mxu0 %v216
    %347 = vmatpush1.bf16.msra.mxu0 %v215
    %348 = vmatprep.subr.bf16.mxu0 %v220
    %349 = vmatpush1.bf16.msra.mxu0 %v219
    %350 = vmatprep.subr.bf16.mxu0 %v224
    %351 = vmatpush1.bf16.msra.mxu0 %v223
    %352 = vmatprep.subr.bf16.mxu0 %v228
    %353 = vmatpush1.bf16.msra.mxu0 %v227
    %354 = vmatprep.subr.bf16.mxu0 %v232
    %355 = vmatpush1.bf16.msra.mxu0 %v231
    %356 = vmatprep.subr.bf16.mxu0 %v236
    %357 = vmatpush1.bf16.msra.mxu0 %v235
    %358 = vmatprep.subr.bf16.mxu0 0
    %359 = vmatpush1.bf16.msra.mxu0 0
    %360 = vmatprep.subr.bf16.mxu0 0
    %361 = vmatpush1.bf16.msra.mxu0 0
    %362 = vmatprep.subr.bf16.mxu0 0
    %363 = vmatpush1.bf16.msra.mxu0 0
    %364 = vmatprep.subr.bf16.mxu0 0
    %365 = vmatpush1.bf16.msra.mxu0 0
    %366 = vmatprep.subr.bf16.mxu0 0
    %367 = vmatpush1.bf16.msra.mxu0 0
    %368 = vmatprep.subr.bf16.mxu0 0
    %369 = vmatpush1.bf16.msra.mxu0 0
    %370 = vmatprep.subr.bf16.mxu0 0
    %371 = vmatpush1.bf16.msra.mxu0 0
    %372 = vmatprep.subr.bf16.mxu0 0
    %373 = vmatpush1.bf16.msra.mxu0 0
    %374 = vmatprep.mubr.bf16.mxu0 0
    %375 = vmatmul.mubr.bf16.gmra.mrb[0].mxu0 %v73
    %v376 = vpop.f32.mrb[0].mxu0
    %v377 = vadd.f32 0.0, %v376
    %v378 = vpop.f32.mrb[0].mxu0
    %v379 = vadd.f32 0.0, %v378
    %v380 = vpop.f32.mrb[0].mxu0
    %v381 = vadd.f32 0.0, %v380
    %v382 = vpop.f32.mrb[0].mxu0
    %v383 = vadd.f32 0.0, %v382
    %384 = vmatprep.mubr.bf16.mxu0 0
    %385 = vmatmul.mubr.bf16.gmra.mrb[0].mxu0 %v74
    %v386 = vpop.f32.mrb[0].mxu0
    %v387 = vadd.f32 0.0, %v386
    %v388 = vpop.f32.mrb[0].mxu0
    %v389 = vadd.f32 0.0, %v388
    %v390 = vpop.f32.mrb[0].mxu0
    %v391 = vadd.f32 0.0, %v390
    %v392 = vpop.f32.mrb[0].mxu0
    %v393 = vadd.f32 0.0, %v392
    %394 = vmatprep.mubr.bf16.mxu0 0
    %395 = vmatmul.mubr.bf16.gmra.mrb[0].mxu0 %v75
    %v396 = vpop.f32.mrb[0].mxu0
    %v397 = vadd.f32 0.0, %v396
    %v398 = vpop.f32.mrb[0].mxu0
    %v399 = vadd.f32 0.0, %v398
    %v400 = vpop.f32.mrb[0].mxu0
    %v401 = vadd.f32 0.0, %v400
    %v402 = vpop.f32.mrb[0].mxu0
    %v403 = vadd.f32 0.0, %v402
    %404 = vmatprep.mubr.bf16.mxu0 0
    %405 = vmatmul.mubr.bf16.gmra.mrb[0].mxu0 %v76
    %v406 = vpop.f32.mrb[0].mxu0
    %v407 = vadd.f32 0.0, %v406
    %v408 = vpop.f32.mrb[0].mxu0
    %v409 = vadd.f32 0.0, %v408
    %v410 = vpop.f32.mrb[0].mxu0
    %v411 = vadd.f32 0.0, %v410
    %v412 = vpop.f32.mrb[0].mxu0
    %v413 = vadd.f32 0.0, %v412
    %414 = vdwg.mxu0
    %415 = vst [vmem:[#allocation2] sm:$0xff] %v304
    %416 = vst [vmem:[#allocation2 + $0x8] sm:$0xff] %v306
    %417 = vst [vmem:[#allocation2 + $0x10] sm:$0xff] %v377
    %418 = vst [vmem:[#allocation2 + $0x18] sm:$0xff] %v379
    %419 = vst [vmem:[#allocation2 + $0x20] sm:$0xff] %v308
    %420 = vst [vmem:[#allocation2 + $0x28] sm:$0xff] %v310
    %421 = vst [vmem:[#allocation2 + $0x30] sm:$0xff] %v381
    %422 = vst [vmem:[#allocation2 + $0x38] sm:$0xff] %v383
    %423 = vst [vmem:[#allocation2 + $0x40] sm:$0xff] %v314
    %424 = vst [vmem:[#allocation2 + $0x48] sm:$0xff] %v316
    %425 = vst [vmem:[#allocation2 + $0x50] sm:$0xff] %v387
    %426 = vst [vmem:[#allocation2 + $0x58] sm:$0xff] %v389
    %427 = vst [vmem:[#allocation2 + $0x60] sm:$0xff] %v318
    %428 = vst [vmem:[#allocation2 + $0x68] sm:$0xff] %v320
    %429 = vst [vmem:[#allocation2 + $0x70] sm:$0xff] %v391
    %430 = vst [vmem:[#allocation2 + $0x78] sm:$0xff] %v393
    %431 = vst [vmem:[#allocation2 + $0x80] sm:$0xff] %v324
    %432 = vst [vmem:[#allocation2 + $0x88] sm:$0xff] %v326
    %433 = vst [vmem:[#allocation2 + $0x90] sm:$0xff] %v397
    %434 = vst [vmem:[#allocation2 + $0x98] sm:$0xff] %v399
    %435 = vst [vmem:[#allocation2 + $0xa0] sm:$0xff] %v328
    %436 = vst [vmem:[#allocation2 + $0xa8] sm:$0xff] %v330
    %437 = vst [vmem:[#allocation2 + $0xb0] sm:$0xff] %v401
    %438 = vst [vmem:[#allocation2 + $0xb8] sm:$0xff] %v403
    %439 = vst [vmem:[#allocation2 + $0xc0] sm:$0xff] %v334
    %440 = vst [vmem:[#allocation2 + $0xc8] sm:$0xff] %v336
    %441 = vst [vmem:[#allocation2 + $0xd0] sm:$0xff] %v407
    %442 = vst [vmem:[#allocation2 + $0xd8] sm:$0xff] %v409
    %443 = vst [vmem:[#allocation2 + $0xe0] sm:$0xff] %v338
    %444 = vst [vmem:[#allocation2 + $0xe8] sm:$0xff] %v340
    %445 = vst [vmem:[#allocation2 + $0xf0] sm:$0xff] %v411
    %446 = vst [vmem:[#allocation2 + $0xf8] sm:$0xff] %v413
    // Predicated region
    $region18: #{forward.5} parent=1 // pred_check
      _
    $region19: #{forward.5} parent=1 // pred_check_branch
      %448 = sbr.rel (0) target = $region21
    $region20: #{forward.5} parent=1 // pred_region
      %s450 = ssub.s32 4096, 4096
      %451 = vsyncadd [#allocation3], %s450
      %s452 = sshll.u32 [#allocation2], 4
      %s453 = int_to_ptr.vmem [resolvable:$true] %s452
      %458 = dma.vmem_to_hbm [thread:$0]  %s453, 4096, %s4, [#allocation3], 512, 512, 32
    $region21: #{forward.5} parent=1 // pred_fallthru
      _
    // Predicated region
    $region22: #{forward.5} parent=1 // pred_check
      _
    $region23: #{forward.5} parent=1 // pred_check_branch
      %460 = sbr.rel (0) target = $region25
    $region24: #{forward.5} parent=1 // pred_region
      %461 = dma.done [#allocation3], 4096
    $region25: #{forward.5} parent=1 // pred_fallthru
      _
    %462 = vsyncpa [#allocation3], 1

// kernel: forward.4
$region0: #{forward.4}
  #allocation0 [shape = 'u32[]', space=smem, size = 0x4, offset = 0x4, fixed_abs, tag = 'smem constant byte address 0x4 - core index']
  #allocation1 [shape = 'u32[144,128]{1,0:T(1,128)}', space=vmem, size = 0x12000, scoped, tag = 'internal scratch']
  %s0 = inlined_call_operand.vmem [shape: bf16[1,72,128], index: 0, kind: input, shape index: {}]
  %s1 = inlined_call_operand.vmem [shape: bf16[1,72,128], index: 1, kind: input, shape index: {}]
  %s2 = inlined_call_operand.vmem [shape: bf16[1,72,128], index: 2, kind: input, shape index: {}]
  %s3 = inlined_call_operand.vmem [shape: bf16[1,64,128], index: 3, kind: input, shape index: {}]
  %s4 = inlined_call_operand.vmem [shape: bf16[1,64,128], index: 4, kind: input, shape index: {}]
  %s5 = inlined_call_operand.vmem [shape: bf16[1,64,128], index: 5, kind: input, shape index: {}]
  %s6 = inlined_call_operand.vmem [shape: bf16[9,128,128], index: 6, kind: input, shape index: {}]
  %s7 = inlined_call_operand.vmem [shape: bf16[64,128], index: 7, kind: output, shape index: {0}]
  %s8 = inlined_call_operand.vmem [shape: f32[2,2,128], index: 8, kind: output, shape index: {1}]
  %9 = xla_tuple %s7, %s8
  %s10 = sld [smem:[#allocation0]]
  $region69: #{forward.4} parent=0
    _
  %s12 = ssub.s32 1, %s10
  %s13 = scalar_select 0, %s12, %s10
  loop: start=0, step=1, limit=4
  $region2: #{forward.4} parent=0 // loop_pre_header
    _
  $region3: #{forward.4} parent=0 // loop_header
    %s15 = sphi 0, %s19
    %p16 = scmp.ge.s32.totalorder %s15, 4
    %s22 = sphi 0, %s34
    %s23 = sphi 0, %s30
    %s24 = sphi 0, %s22
    %s25 = sphi 0, %s23
    %s26 = sphi 0, %s24
    %s27 = sphi 0, %s25
    %s37 = sphi 0, %s39
    %s40 = sphi 0, %s37
    %s41 = sphi 0, %s40
    %s57 = sphi 0, %s41
    %s63 = sphi 0, %s65
    %s66 = sphi 0, %s63
    %s67 = sphi 0, %s66
    %s83 = sphi 0, %s67
    %s89 = sphi 0, %s91
    %s92 = sphi 0, %s89
    %s93 = sphi 0, %s92
    %s109 = sphi 0, %s93
    %s115 = sphi 0, %s117
    %s118 = sphi 0, %s115
    %s119 = sphi 0, %s118
    %s135 = sphi 0, %s119
    %s141 = sphi 0, %s143
    %s144 = sphi 0, %s141
    %s145 = sphi 0, %s144
    %s161 = sphi 0, %s145
    %s167 = sphi 0, %s169
    %s170 = sphi 0, %s167
    %s171 = sphi 0, %s170
    %s187 = sphi 0, %s171
    %s191 = sphi 0, %s191
    %s193 = sphi 0, %s191
    %s194 = sphi 0, %s193
    %s208 = sphi 0, %s194
    %s218 = sphi 0, %s220
    %s221 = sphi 0, %s218
    %s222 = sphi 0, %s221
    %s238 = sphi 0, %s222
    %s248 = sphi 0, %s250
    %s251 = sphi 0, %s248
    %s252 = sphi 0, %s251
    %s268 = sphi 0, %s252
  $region4: #{forward.4} parent=0 // loop_header_branch
    %18 = sbr.rel (%p16) target = $region8
  $region5: #{forward.4} parent=0 // loop_body
    %s20 = ssub.s32 %s15, 1
    %s21 = ssub.s32 %s15, 2
    %s28 = sadd.s32 1, %s23
    %p29 = scmp.ge.s32.totalorder %s28, 2
    %s30 = scalar_select %p29, 0, %s28
    %s31 = sadd.s32 1, %s22
    %s32 = scalar_select %p29, %s31, %s22
    %p33 = scmp.ge.s32.totalorder %s32, 1
    %s34 = scalar_select %p33, 0, %s32
    %s35 = ssub.s32 %s22, %s34
    %p36 = scmp.eq.s32.totalorder %s35, 0
    %s38 = sadd.s32 %s37, 1
    %s39 = scalar_select %p36, %s37, %s38
    %p42 = pneg %p36
    %p43 = scmp.eq.s32.totalorder %s15, 1
    %p44 = por %p42, %p43
    %p45 = scmp.ne.s32.totalorder %s37, %s40
    %p46 = scmp.eq.s32.totalorder %s15, 0
    %p47 = por %p45, %p46
    %p48 = scmp.ne.s32.totalorder %s37, %s40
    %p49 = scmp.eq.s32.totalorder %s20, 1
    %p50 = por %p48, %p49
    %p51 = scmp.ne.s32.totalorder %s40, %s41
    %p52 = scmp.eq.s32.totalorder %s20, 0
    %p53 = por %p51, %p52
    %p54 = scmp.ne.s32.totalorder %s40, %s41
    %p55 = scmp.eq.s32.totalorder %s21, 1
    %p56 = por %p54, %p55
    %p58 = scmp.ne.s32.totalorder %s41, %s57
    %p59 = scmp.eq.s32.totalorder %s21, 0
    %p60 = por %p58, %p59
    %s61 = ssub.s32 %s22, %s34
    %p62 = scmp.eq.s32.totalorder %s61, 0
    %s64 = sadd.s32 %s63, 1
    %s65 = scalar_select %p62, %s63, %s64
    %p68 = pneg %p62
    %p69 = scmp.eq.s32.totalorder %s15, 1
    %p70 = por %p68, %p69
    %p71 = scmp.ne.s32.totalorder %s63, %s66
    %p72 = scmp.eq.s32.totalorder %s15, 0
    %p73 = por %p71, %p72
    %p74 = scmp.ne.s32.totalorder %s63, %s66
    %p75 = scmp.eq.s32.totalorder %s20, 1
    %p76 = por %p74, %p75
    %p77 = scmp.ne.s32.totalorder %s66, %s67
    %p78 = scmp.eq.s32.totalorder %s20, 0
    %p79 = por %p77, %p78
    %p80 = scmp.ne.s32.totalorder %s66, %s67
    %p81 = scmp.eq.s32.totalorder %s21, 1
    %p82 = por %p80, %p81
    %p84 = scmp.ne.s32.totalorder %s67, %s83
    %p85 = scmp.eq.s32.totalorder %s21, 0
    %p86 = por %p84, %p85
    %s87 = ssub.s32 %s22, %s34
    %p88 = scmp.eq.s32.totalorder %s87, 0
    %s90 = sadd.s32 %s89, 1
    %s91 = scalar_select %p88, %s89, %s90
    %p94 = pneg %p88
    %p95 = scmp.eq.s32.totalorder %s15, 1
    %p96 = por %p94, %p95
    %p97 = scmp.ne.s32.totalorder %s89, %s92
    %p98 = scmp.eq.s32.totalorder %s15, 0
    %p99 = por %p97, %p98
    %p100 = scmp.ne.s32.totalorder %s89, %s92
    %p101 = scmp.eq.s32.totalorder %s20, 1
    %p102 = por %p100, %p101
    %p103 = scmp.ne.s32.totalorder %s92, %s93
    %p104 = scmp.eq.s32.totalorder %s20, 0
    %p105 = por %p103, %p104
    %p106 = scmp.ne.s32.totalorder %s92, %s93
    %p107 = scmp.eq.s32.totalorder %s21, 1
    %p108 = por %p106, %p107
    %p110 = scmp.ne.s32.totalorder %s93, %s109
    %p111 = scmp.eq.s32.totalorder %s21, 0
    %p112 = por %p110, %p111
    %s113 = ssub.s32 %s22, %s34
    %p114 = scmp.eq.s32.totalorder %s113, 0
    %s116 = sadd.s32 %s115, 1
    %s117 = scalar_select %p114, %s115, %s116
    %p120 = pneg %p114
    %p121 = scmp.eq.s32.totalorder %s15, 1
    %p122 = por %p120, %p121
    %p123 = scmp.ne.s32.totalorder %s115, %s118
    %p124 = scmp.eq.s32.totalorder %s15, 0
    %p125 = por %p123, %p124
    %p126 = scmp.ne.s32.totalorder %s115, %s118
    %p127 = scmp.eq.s32.totalorder %s20, 1
    %p128 = por %p126, %p127
    %p129 = scmp.ne.s32.totalorder %s118, %s119
    %p130 = scmp.eq.s32.totalorder %s20, 0
    %p131 = por %p129, %p130
    %p132 = scmp.ne.s32.totalorder %s118, %s119
    %p133 = scmp.eq.s32.totalorder %s21, 1
    %p134 = por %p132, %p133
    %p136 = scmp.ne.s32.totalorder %s119, %s135
    %p137 = scmp.eq.s32.totalorder %s21, 0
    %p138 = por %p136, %p137
    %s139 = ssub.s32 %s22, %s34
    %p140 = scmp.eq.s32.totalorder %s139, 0
    %s142 = sadd.s32 %s141, 1
    %s143 = scalar_select %p140, %s141, %s142
    %p146 = pneg %p140
    %p147 = scmp.eq.s32.totalorder %s15, 1
    %p148 = por %p146, %p147
    %p149 = scmp.ne.s32.totalorder %s141, %s144
    %p150 = scmp.eq.s32.totalorder %s15, 0
    %p151 = por %p149, %p150
    %p152 = scmp.ne.s32.totalorder %s141, %s144
    %p153 = scmp.eq.s32.totalorder %s20, 1
    %p154 = por %p152, %p153
    %p155 = scmp.ne.s32.totalorder %s144, %s145
    %p156 = scmp.eq.s32.totalorder %s20, 0
    %p157 = por %p155, %p156
    %p158 = scmp.ne.s32.totalorder %s144, %s145
    %p159 = scmp.eq.s32.totalorder %s21, 1
    %p160 = por %p158, %p159
    %p162 = scmp.ne.s32.totalorder %s145, %s161
    %p163 = scmp.eq.s32.totalorder %s21, 0
    %p164 = por %p162, %p163
    %s165 = ssub.s32 %s22, %s34
    %p166 = scmp.eq.s32.totalorder %s165, 0
    %s168 = sadd.s32 %s167, 1
    %s169 = scalar_select %p166, %s167, %s168
    %p172 = pneg %p166
    %p173 = scmp.eq.s32.totalorder %s15, 1
    %p174 = por %p172, %p173
    %p175 = scmp.ne.s32.totalorder %s167, %s170
    %p176 = scmp.eq.s32.totalorder %s15, 0
    %p177 = por %p175, %p176
    %p178 = scmp.ne.s32.totalorder %s167, %s170
    %p179 = scmp.eq.s32.totalorder %s20, 1
    %p180 = por %p178, %p179
    %p181 = scmp.ne.s32.totalorder %s170, %s171
    %p182 = scmp.eq.s32.totalorder %s20, 0
    %p183 = por %p181, %p182
    %p184 = scmp.ne.s32.totalorder %s170, %s171
    %p185 = scmp.eq.s32.totalorder %s21, 1
    %p186 = por %p184, %p185
    %p188 = scmp.ne.s32.totalorder %s171, %s187
    %p189 = scmp.eq.s32.totalorder %s21, 0
    %p190 = por %p188, %p189
    %s192 = sadd.s32 %s191, 1
    %p195 = scmp.eq.s32.totalorder %s15, 1
    %p196 = scmp.ne.s32.totalorder %s191, %s193
    %p197 = scmp.eq.s32.totalorder %s15, 0
    %p198 = por %p196, %p197
    %p199 = scmp.ne.s32.totalorder %s191, %s193
    %p200 = scmp.eq.s32.totalorder %s20, 1
    %p201 = por %p199, %p200
    %p202 = scmp.ne.s32.totalorder %s193, %s194
    %p203 = scmp.eq.s32.totalorder %s20, 0
    %p204 = por %p202, %p203
    %p205 = scmp.ne.s32.totalorder %s193, %s194
    %p206 = scmp.eq.s32.totalorder %s21, 1
    %p207 = por %p205, %p206
    %p209 = scmp.ne.s32.totalorder %s194, %s208
    %p210 = scmp.eq.s32.totalorder %s21, 0
    %p211 = por %p209, %p210
    %s212 = smul.u32 %s22, 2
    %s213 = sadd.s32 %s212, %s23
    %s214 = smul.u32 %s34, 2
    %s215 = sadd.s32 %s214, %s30
    %s216 = ssub.s32 %s213, %s215
    %p217 = scmp.eq.s32.totalorder %s216, 0
    %s219 = sadd.s32 %s218, 1
    %s220 = scalar_select %p217, %s218, %s219
    %p223 = pneg %p217
    %p224 = scmp.eq.s32.totalorder %s15, 1
    %p225 = por %p223, %p224
    %p226 = scmp.ne.s32.totalorder %s218, %s221
    %p227 = scmp.eq.s32.totalorder %s15, 0
    %p228 = por %p226, %p227
    %p229 = scmp.ne.s32.totalorder %s218, %s221
    %p230 = scmp.eq.s32.totalorder %s20, 1
    %p231 = por %p229, %p230
    %p232 = scmp.ne.s32.totalorder %s221, %s222
    %p233 = scmp.eq.s32.totalorder %s20, 0
    %p234 = por %p232, %p233
    %p235 = scmp.ne.s32.totalorder %s221, %s222
    %p236 = scmp.eq.s32.totalorder %s21, 1
    %p237 = por %p235, %p236
    %p239 = scmp.ne.s32.totalorder %s222, %s238
    %p240 = scmp.eq.s32.totalorder %s21, 0
    %p241 = por %p239, %p240
    %s242 = smul.u32 %s22, 2
    %s243 = sadd.s32 %s242, %s23
    %s244 = smul.u32 %s34, 2
    %s245 = sadd.s32 %s244, %s30
    %s246 = ssub.s32 %s243, %s245
    %p247 = scmp.eq.s32.totalorder %s246, 0
    %s249 = sadd.s32 %s248, 1
    %s250 = scalar_select %p247, %s248, %s249
    %p253 = pneg %p247
    %p254 = scmp.eq.s32.totalorder %s15, 1
    %p255 = por %p253, %p254
    %p256 = scmp.ne.s32.totalorder %s248, %s251
    %p257 = scmp.eq.s32.totalorder %s15, 0
    %p258 = por %p256, %p257
    %p259 = scmp.ne.s32.totalorder %s248, %s251
    %p260 = scmp.eq.s32.totalorder %s20, 1
    %p261 = por %p259, %p260
    %p262 = scmp.ne.s32.totalorder %s251, %s252
    %p263 = scmp.eq.s32.totalorder %s20, 0
    %p264 = por %p262, %p263
    %p265 = scmp.ne.s32.totalorder %s251, %s252
    %p266 = scmp.eq.s32.totalorder %s21, 1
    %p267 = por %p265, %p266
    %p269 = scmp.ne.s32.totalorder %s252, %s268
    %p270 = scmp.eq.s32.totalorder %s21, 0
    %p271 = por %p269, %p270
    %p272 = scmp.le.s32.totalorder 1, %s15
    %p273 = scmp.lt.s32.totalorder %s15, 3
    %p274 = pnand %p272, %p273
    %p275 = pneg %p274
    // Predicated region
    $region9: #{forward.4} parent=5 // pred_check
      _
    $region10: #{forward.4} parent=5 // pred_check_branch
      %277 = sbr.rel (%p274) target = $region12
    $region11: #{forward.4} parent=5 // pred_region
      %s278 = ssub.s32 %s15, 1
      // Predicated region
      $region13: #{forward.4} parent=11 // pred_check
        %p279 = pneg %p53
      $region14: #{forward.4} parent=11 // pred_check_branch
        %281 = sbr.rel (%p279) target = $region16
      $region15: #{forward.4} parent=11 // pred_region
        %p282 = scmp.lt.s32.totalorder %s24, 0
        %s283 = scalar_select %p282, %s24, 0
        %s284 = smul.addr %s283, 9
        %s285 = smul.addr %s284, 4
        %s286 = scalar_lea.vmem %s0, %s285
      $region16: #{forward.4} parent=11 // pred_fallthru
        _
      // Predicated region
      $region17: #{forward.4} parent=11 // pred_check
        %p287 = pneg %p79
      $region18: #{forward.4} parent=11 // pred_check_branch
        %289 = sbr.rel (%p287) target = $region20
      $region19: #{forward.4} parent=11 // pred_region
        %p290 = scmp.lt.s32.totalorder %s24, 0
        %s291 = scalar_select %p290, %s24, 0
        %s292 = smul.addr %s291, 9
        %s293 = smul.addr %s292, 4
        %s294 = scalar_lea.vmem %s1, %s293
      $region20: #{forward.4} parent=11 // pred_fallthru
        _
      // Predicated region
      $region21: #{forward.4} parent=11 // pred_check
        %p295 = pneg %p105
      $region22: #{forward.4} parent=11 // pred_check_branch
        %297 = sbr.rel (%p295) target = $region24
      $region23: #{forward.4} parent=11 // pred_region
        %p298 = scmp.lt.s32.totalorder %s24, 0
        %s299 = scalar_select %p298, %s24, 0
        %s300 = smul.addr %s299, 9
        %s301 = smul.addr %s300, 4
        %s302 = scalar_lea.vmem %s2, %s301
      $region24: #{forward.4} parent=11 // pred_fallthru
        _
      // Predicated region
      $region25: #{forward.4} parent=11 // pred_check
        %p303 = pneg %p131
      $region26: #{forward.4} parent=11 // pred_check_branch
        %305 = sbr.rel (%p303) target = $region28
      $region27: #{forward.4} parent=11 // pred_region
        %p306 = scmp.lt.s32.totalorder %s24, 0
        %s307 = scalar_select %p306, %s24, 0
        %s308 = smul.addr %s307, 8
        %s309 = smul.addr %s308, 4
        %s310 = scalar_lea.vmem %s3, %s309
      $region28: #{forward.4} parent=11 // pred_fallthru
        _
      // Predicated region
      $region29: #{forward.4} parent=11 // pred_check
        %p311 = pneg %p157
      $region30: #{forward.4} parent=11 // pred_check_branch
        %313 = sbr.rel (%p311) target = $region32
      $region31: #{forward.4} parent=11 // pred_region
        %p314 = scmp.lt.s32.totalorder %s24, 0
        %s315 = scalar_select %p314, %s24, 0
        %s316 = smul.addr %s315, 8
        %s317 = smul.addr %s316, 4
        %s318 = scalar_lea.vmem %s4, %s317
      $region32: #{forward.4} parent=11 // pred_fallthru
        _
      // Predicated region
      $region33: #{forward.4} parent=11 // pred_check
        %p319 = pneg %p183
      $region34: #{forward.4} parent=11 // pred_check_branch
        %321 = sbr.rel (%p319) target = $region36
      $region35: #{forward.4} parent=11 // pred_region
        %p322 = scmp.lt.s32.totalorder %s24, 0
        %s323 = scalar_select %p322, %s24, 0
        %s324 = smul.addr %s323, 8
        %s325 = smul.addr %s324, 4
        %s326 = scalar_lea.vmem %s5, %s325
      $region36: #{forward.4} parent=11 // pred_fallthru
        _
      // Predicated region
      $region37: #{forward.4} parent=11 // pred_check
        %p327 = pneg %p204
      $region38: #{forward.4} parent=11 // pred_check_branch
        %329 = sbr.rel (%p327) target = $region40
      $region39: #{forward.4} parent=11 // pred_region
        _
      $region40: #{forward.4} parent=11 // pred_fallthru
        _
    $region12: #{forward.4} parent=5 // pred_fallthru
      _
    %p330 = scmp.lt.s32.totalorder %s15, 2
    // Predicated region
    $region41: #{forward.4} parent=5 // pred_check
      %p331 = pneg %p330
    $region42: #{forward.4} parent=5 // pred_check_branch
      %333 = sbr.rel (%p331) target = $region44
    $region43: #{forward.4} parent=5 // pred_region
      _
    $region44: #{forward.4} parent=5 // pred_fallthru
      _
    %p334 = scmp.le.s32.totalorder 1, %s15
    %p335 = scmp.lt.s32.totalorder %s15, 3
    %p336 = pnand %p334, %p335
    %p337 = pneg %p336
    // Predicated region
    $region45: #{forward.4} parent=5 // pred_check
      _
    $region46: #{forward.4} parent=5 // pred_check_branch
      %339 = sbr.rel (%p336) target = $region48
    $region47: #{forward.4} parent=5 // pred_region
      %s340 = ssub.s32 %s15, 1
      %p341 = scmp.lt.s32.totalorder %s24, 0
      %s342 = scalar_select %p341, %s24, 0
      %s343 = smul.addr %s342, 9
      %s344 = smul.addr %s343, 4
      %s345 = scalar_lea.vmem %s0, %s344
      %p346 = pneg %p53
      %p347 = pneg %p50
      %p348 = scmp.lt.s32.totalorder %s24, 0
      %s349 = scalar_select %p348, %s24, 0
      %s350 = smul.addr %s349, 9
      %s351 = smul.addr %s350, 4
      %s352 = scalar_lea.vmem %s1, %s351
      %p353 = pneg %p79
      %p354 = pneg %p76
      %p355 = scmp.lt.s32.totalorder %s24, 0
      %s356 = scalar_select %p355, %s24, 0
      %s357 = smul.addr %s356, 9
      %s358 = smul.addr %s357, 4
      %s359 = scalar_lea.vmem %s2, %s358
      %p360 = pneg %p105
      %p361 = pneg %p102
      %p362 = scmp.lt.s32.totalorder %s24, 0
      %s363 = scalar_select %p362, %s24, 0
      %s364 = smul.addr %s363, 8
      %s365 = smul.addr %s364, 4
      %s366 = scalar_lea.vmem %s3, %s365
      %p367 = pneg %p131
      %p368 = pneg %p128
      %p369 = scmp.lt.s32.totalorder %s24, 0
      %s370 = scalar_select %p369, %s24, 0
      %s371 = smul.addr %s370, 8
      %s372 = smul.addr %s371, 4
      %s373 = scalar_lea.vmem %s4, %s372
      %p374 = pneg %p157
      %p375 = pneg %p154
      %p376 = scmp.lt.s32.totalorder %s24, 0
      %s377 = scalar_select %p376, %s24, 0
      %s378 = smul.addr %s377, 8
      %s379 = smul.addr %s378, 4
      %s380 = scalar_lea.vmem %s5, %s379
      %p381 = pneg %p183
      %p382 = pneg %p180
      %p383 = pneg %p204
      %p384 = pneg %p201
      %p385 = pneg %p234
      %p386 = pneg %p231
      %s387 = smul.u32 %s24, 2
      %s388 = sadd.s32 %s387, %s25
      %s389 = smul.u32 4, %s388
      %p390 = scmp.lt.s32.totalorder %s389, 7
      %s391 = scalar_select %p390, %s389, 7
      %s392 = smul.addr %s391, 4
      %s393 = scalar_lea.vmem %s7, %s392
      %p394 = pneg %p264
      %p395 = pneg %p261
      %s396 = smul.u32 %s24, 2
      %s397 = sadd.s32 %s396, %s25
      %p398 = scmp.lt.s32.totalorder %s397, 1
      %s399 = scalar_select %p398, %s397, 1
      %s400 = smul.addr %s399, 2
      %s401 = scalar_lea.vmem %s8, %s400
      %p402 = scmp.lt.s32.totalorder %s24, 0
      %s403 = scalar_select %p402, %s24, 0
      %s404 = smul.addr %s403, 9
      %s405 = smul.addr %s404, 4
      %s406 = scalar_lea.vmem %s0, %s405
      %p407 = scmp.lt.s32.totalorder %s24, 0
      %s408 = scalar_select %p407, %s24, 0
      %s409 = smul.addr %s408, 9
      %s410 = smul.addr %s409, 4
      %s411 = scalar_lea.vmem %s1, %s410
      %p412 = scmp.lt.s32.totalorder %s24, 0
      %s413 = scalar_select %p412, %s24, 0
      %s414 = smul.addr %s413, 9
      %s415 = smul.addr %s414, 4
      %s416 = scalar_lea.vmem %s2, %s415
      %p417 = scmp.lt.s32.totalorder %s24, 0
      %s418 = scalar_select %p417, %s24, 0
      %s419 = smul.addr %s418, 8
      %s420 = smul.addr %s419, 4
      %s421 = scalar_lea.vmem %s3, %s420
      %p422 = scmp.lt.s32.totalorder %s24, 0
      %s423 = scalar_select %p422, %s24, 0
      %s424 = smul.addr %s423, 8
      %s425 = smul.addr %s424, 4
      %s426 = scalar_lea.vmem %s4, %s425
      %p427 = scmp.lt.s32.totalorder %s24, 0
      %s428 = scalar_select %p427, %s24, 0
      %s429 = smul.addr %s428, 8
      %s430 = smul.addr %s429, 4
      %s431 = scalar_lea.vmem %s5, %s430
      %s432 = smul.u32 %s24, 2
      %s433 = sadd.s32 %s432, %s25
      %s434 = smul.u32 4, %s433
      %p435 = scmp.lt.s32.totalorder %s434, 7
      %s436 = scalar_select %p435, %s434, 7
      %s437 = smul.addr %s436, 4
      %s438 = scalar_lea.vmem %s7, %s437
      %s439 = smul.u32 %s24, 2
      %s440 = sadd.s32 %s439, %s25
      %s441 = smul.u32 4, %s440
      %s442 = smul.u32 %s24, 2
      %s443 = sadd.s32 %s442, %s25
      %p444 = scmp.lt.s32.totalorder %s443, 1
      %s445 = scalar_select %p444, %s443, 1
      %s446 = smul.addr %s445, 2
      %s447 = scalar_lea.vmem %s8, %s446
      %s448 = smul.u32 %s24, 2
      %s449 = sadd.s32 %s448, %s25
      %s451 = smul.u32 %s25, 32
      %s452 = sshra.s32 %s451, 3
      %s453 = sand.u32 %s451, 7
      %s454 = smul.addr %s452, 4
      %s455 = scalar_lea.vmem %s406, %s454
      %v456 = vld [vmem:[%s455] sm:$0xf]
      %v457 = vld [vmem:[%s455 + $0x4] sm:$0xf]
      %v458 = vld [vmem:[%s455 + $0x8] sm:$0xf]
      %v459 = vld [vmem:[%s455 + $0xc] sm:$0xf]
      %v460 = vld [vmem:[%s6] sm:$0xf]
      %v461 = vld [vmem:[%s6 + $0x4] sm:$0xf]
      %v462 = vld [vmem:[%s6 + $0x8] sm:$0xf]
      %v463 = vld [vmem:[%s6 + $0xc] sm:$0xf]
      %v464 = vld [vmem:[%s6 + $0x10] sm:$0xf]
      %v465 = vld [vmem:[%s6 + $0x14] sm:$0xf]
      %v466 = vld [vmem:[%s6 + $0x18] sm:$0xf]
      %v467 = vld [vmem:[%s6 + $0x1c] sm:$0xf]
      %v468 = vld [vmem:[%s6 + $0x20] sm:$0xf]
      %v469 = vld [vmem:[%s6 + $0x24] sm:$0xf]
      %v470 = vld [vmem:[%s6 + $0x28] sm:$0xf]
      %v471 = vld [vmem:[%s6 + $0x2c] sm:$0xf]
      %v472 = vld [vmem:[%s6 + $0x30] sm:$0xf]
      %v473 = vld [vmem:[%s6 + $0x34] sm:$0xf]
      %v474 = vld [vmem:[%s6 + $0x38] sm:$0xf]
      %v475 = vld [vmem:[%s6 + $0x3c] sm:$0xf]
      %s476 = smul.addr %s452, 4
      %s477 = scalar_lea.vmem %s411, %s476
      %v478 = vld [vmem:[%s477] sm:$0xf]
      %v479 = vld [vmem:[%s477 + $0x4] sm:$0xf]
      %v480 = vld [vmem:[%s477 + $0x8] sm:$0xf]
      %v481 = vld [vmem:[%s477 + $0xc] sm:$0xf]
      %s482 = scalar_lea.vmem %s6, 64
      %v483 = vld [vmem:[%s482] sm:$0xf]
      %v484 = vld [vmem:[%s482 + $0x4] sm:$0xf]
      %v485 = vld [vmem:[%s482 + $0x8] sm:$0xf]
      %v486 = vld [vmem:[%s482 + $0xc] sm:$0xf]
      %v487 = vld [vmem:[%s482 + $0x10] sm:$0xf]
      %v488 = vld [vmem:[%s482 + $0x14] sm:$0xf]
      %v489 = vld [vmem:[%s482 + $0x18] sm:$0xf]
      %v490 = vld [vmem:[%s482 + $0x1c] sm:$0xf]
      %v491 = vld [vmem:[%s482 + $0x20] sm:$0xf]
      %v492 = vld [vmem:[%s482 + $0x24] sm:$0xf]
      %v493 = vld [vmem:[%s482 + $0x28] sm:$0xf]
      %v494 = vld [vmem:[%s482 + $0x2c] sm:$0xf]
      %v495 = vld [vmem:[%s482 + $0x30] sm:$0xf]
      %v496 = vld [vmem:[%s482 + $0x34] sm:$0xf]
      %v497 = vld [vmem:[%s482 + $0x38] sm:$0xf]
      %v498 = vld [vmem:[%s482 + $0x3c] sm:$0xf]
      %v503 = vunpack.c.l.b16 %v478
      %v504 = vunpack.c.l.b16 %v479
      %v505 = vunpack.c.l.b16 %v480
      %v506 = vunpack.c.l.b16 %v481
      %v507 = vpack.c.b16 %v504, %v503
      %v508 = vpack.c.b16 %v506, %v505
      %v527 = vunpack.c.l.b16 %v483
      %v528 = vunpack.c.l.b16 %v484
      %v529 = vunpack.c.l.b16 %v485
      %v530 = vunpack.c.l.b16 %v486
      %v531 = vunpack.c.l.b16 %v487
      %v532 = vunpack.c.l.b16 %v488
      %v533 = vunpack.c.l.b16 %v489
      %v534 = vunpack.c.l.b16 %v490
      %v535 = vunpack.c.l.b16 %v491
      %v536 = vunpack.c.l.b16 %v492
      %v537 = vunpack.c.l.b16 %v493
      %v538 = vunpack.c.l.b16 %v494
      %v539 = vunpack.c.l.b16 %v495
      %v540 = vunpack.c.l.b16 %v496
      %v541 = vunpack.c.l.b16 %v497
      %v542 = vunpack.c.l.b16 %v498
      %v543 = vpack.c.b16 %v528, %v527
      %v544 = vpack.c.b16 %v530, %v529
      %v545 = vpack.c.b16 %v532, %v531
      %v546 = vpack.c.b16 %v534, %v533
      %v547 = vpack.c.b16 %v536, %v535
      %v548 = vpack.c.b16 %v538, %v537
      %v549 = vpack.c.b16 %v540, %v539
      %v550 = vpack.c.b16 %v542, %v541
      %559 = vmatprep.subr.bf16.mxu0 0
      %560 = vmatpush1.bf16.msra.mxu0 %v543
      %561 = vmatprep.subr.bf16.mxu0 0
      %562 = vmatpush1.bf16.msra.mxu0 %v544
      %563 = vmatprep.subr.bf16.mxu0 0
      %564 = vmatpush1.bf16.msra.mxu0 %v545
      %565 = vmatprep.subr.bf16.mxu0 0
      %566 = vmatpush1.bf16.msra.mxu0 %v546
      %567 = vmatprep.subr.bf16.mxu0 0
      %568 = vmatpush1.bf16.msra.mxu0 %v547
      %569 = vmatprep.subr.bf16.mxu0 0
      %570 = vmatpush1.bf16.msra.mxu0 %v548
      %571 = vmatprep.subr.bf16.mxu0 0
      %572 = vmatpush1.bf16.msra.mxu0 %v549
      %573 = vmatprep.subr.bf16.mxu0 0
      %574 = vmatpush1.bf16.msra.mxu0 %v550
      %575 = vmatprep.subr.bf16.mxu0 0
      %576 = vmatpush1.bf16.msra.mxu0 0
      %577 = vmatprep.subr.bf16.mxu0 0
      %578 = vmatpush1.bf16.msra.mxu0 0
      %579 = vmatprep.subr.bf16.mxu0 0
      %580 = vmatpush1.bf16.msra.mxu0 0
      %581 = vmatprep.subr.bf16.mxu0 0
      %582 = vmatpush1.bf16.msra.mxu0 0
      %583 = vmatprep.subr.bf16.mxu0 0
      %584 = vmatpush1.bf16.msra.mxu0 0
      %585 = vmatprep.subr.bf16.mxu0 0
      %586 = vmatpush1.bf16.msra.mxu0 0
      %587 = vmatprep.subr.bf16.mxu0 0
      %588 = vmatpush1.bf16.msra.mxu0 0
      %589 = vmatprep.subr.bf16.mxu0 0
      %590 = vmatpush1.bf16.msra.mxu0 0
      %591 = vmatprep.mubr.bf16.mxu0 0
      %592 = vmatmul.mubr.bf16.gmra.mrb[0].mxu0 %v507
      %v593 = vpop.f32.mrb[0].mxu0
      %v594 = vadd.f32 0.0, %v593
      %v595 = vpop.f32.mrb[0].mxu0
      %v596 = vpop.f32.mrb[0].mxu0
      %v597 = vadd.f32 0.0, %v596
      %v598 = vpop.f32.mrb[0].mxu0
      %599 = vmatprep.mubr.bf16.mxu0 0
      %600 = vmatmul.mubr.bf16.gmra.mrb[0].mxu0 %v508
      %v601 = vpop.f32.mrb[0].mxu0
      %v602 = vadd.f32 0.0, %v601
      %v603 = vpop.f32.mrb[0].mxu0
      %v604 = vpop.f32.mrb[0].mxu0
      %v605 = vadd.f32 0.0, %v604
      %v606 = vpop.f32.mrb[0].mxu0
      %607 = vdwg.mxu0
      %v612 = vunpack.c.l.b16 %v456
      %v613 = vunpack.c.l.b16 %v457
      %v614 = vunpack.c.l.b16 %v458
      %v615 = vunpack.c.l.b16 %v459
      %v616 = vpack.c.b16 %v613, %v612
      %v617 = vpack.c.b16 %v615, %v614
      %v636 = vunpack.c.l.b16 %v460
      %v637 = vunpack.c.l.b16 %v461
      %v638 = vunpack.c.l.b16 %v462
      %v639 = vunpack.c.l.b16 %v463
      %v640 = vunpack.c.l.b16 %v464
      %v641 = vunpack.c.l.b16 %v465
      %v642 = vunpack.c.l.b16 %v466
      %v643 = vunpack.c.l.b16 %v467
      %v644 = vunpack.c.l.b16 %v468
      %v645 = vunpack.c.l.b16 %v469
      %v646 = vunpack.c.l.b16 %v470
      %v647 = vunpack.c.l.b16 %v471
      %v648 = vunpack.c.l.b16 %v472
      %v649 = vunpack.c.l.b16 %v473
      %v650 = vunpack.c.l.b16 %v474
      %v651 = vunpack.c.l.b16 %v475
      %v652 = vpack.c.b16 %v637, %v636
      %v653 = vpack.c.b16 %v639, %v638
      %v654 = vpack.c.b16 %v641, %v640
      %v655 = vpack.c.b16 %v643, %v642
      %v656 = vpack.c.b16 %v645, %v644
      %v657 = vpack.c.b16 %v647, %v646
      %v658 = vpack.c.b16 %v649, %v648
      %v659 = vpack.c.b16 %v651, %v650
      %668 = vmatprep.subr.bf16.mxu0 0
      %669 = vmatpush1.bf16.msra.mxu0 %v652
      %670 = vmatprep.subr.bf16.mxu0 0
      %671 = vmatpush1.bf16.msra.mxu0 %v653
      %672 = vmatprep.subr.bf16.mxu0 0
      %673 = vmatpush1.bf16.msra.mxu0 %v654
      %674 = vmatprep.subr.bf16.mxu0 0
      %675 = vmatpush1.bf16.msra.mxu0 %v655
      %676 = vmatprep.subr.bf16.mxu0 0
      %677 = vmatpush1.bf16.msra.mxu0 %v656
      %678 = vmatprep.subr.bf16.mxu0 0
      %679 = vmatpush1.bf16.msra.mxu0 %v657
      %680 = vmatprep.subr.bf16.mxu0 0
      %681 = vmatpush1.bf16.msra.mxu0 %v658
      %682 = vmatprep.subr.bf16.mxu0 0
      %683 = vmatpush1.bf16.msra.mxu0 %v659
      %684 = vmatprep.subr.bf16.mxu0 0
      %685 = vmatpush1.bf16.msra.mxu0 0
      %686 = vmatprep.subr.bf16.mxu0 0
      %687 = vmatpush1.bf16.msra.mxu0 0
      %688 = vmatprep.subr.bf16.mxu0 0
      %689 = vmatpush1.bf16.msra.mxu0 0
      %690 = vmatprep.subr.bf16.mxu0 0
      %691 = vmatpush1.bf16.msra.mxu0 0
      %692 = vmatprep.subr.bf16.mxu0 0
      %693 = vmatpush1.bf16.msra.mxu0 0
      %694 = vmatprep.subr.bf16.mxu0 0
      %695 = vmatpush1.bf16.msra.mxu0 0
      %696 = vmatprep.subr.bf16.mxu0 0
      %697 = vmatpush1.bf16.msra.mxu0 0
      %698 = vmatprep.subr.bf16.mxu0 0
      %699 = vmatpush1.bf16.msra.mxu0 0
      %700 = vmatprep.mubr.bf16.mxu0 0
      %701 = vmatmul.mubr.bf16.gmra.mrb[0].mxu0 %v616
      %v702 = vpop.f32.mrb[0].mxu0
      %v703 = vadd.f32 %v594, %v702
      %v704 = vpop.f32.mrb[0].mxu0
      %v705 = vpop.f32.mrb[0].mxu0
      %v706 = vadd.f32 %v597, %v705
      %v707 = vpop.f32.mrb[0].mxu0
      %708 = vmatprep.mubr.bf16.mxu0 0
      %709 = vmatmul.mubr.bf16.gmra.mrb[0].mxu0 %v617
      %v710 = vpop.f32.mrb[0].mxu0
      %v711 = vadd.f32 %v602, %v710
      %v712 = vpop.f32.mrb[0].mxu0
      %v713 = vpop.f32.mrb[0].mxu0
      %v714 = vadd.f32 %v605, %v713
      %v715 = vpop.f32.mrb[0].mxu0
      %716 = vdwg.mxu0
      %s717 = smul.addr %s452, 4
      %s718 = scalar_lea.vmem %s416, %s717
      %v719 = vld [vmem:[%s718] sm:$0xf]
      %v720 = vld [vmem:[%s718 + $0x4] sm:$0xf]
      %v721 = vld [vmem:[%s718 + $0x8] sm:$0xf]
      %v722 = vld [vmem:[%s718 + $0xc] sm:$0xf]
      %s723 = scalar_lea.vmem %s6, 128
      %v724 = vld [vmem:[%s723] sm:$0xf]
      %v725 = vld [vmem:[%s723 + $0x4] sm:$0xf]
      %v726 = vld [vmem:[%s723 + $0x8] sm:$0xf]
      %v727 = vld [vmem:[%s723 + $0xc] sm:$0xf]
      %v728 = vld [vmem:[%s723 + $0x10] sm:$0xf]
      %v729 = vld [vmem:[%s723 + $0x14] sm:$0xf]
      %v730 = vld [vmem:[%s723 + $0x18] sm:$0xf]
      %v731 = vld [vmem:[%s723 + $0x1c] sm:$0xf]
      %v732 = vld [vmem:[%s723 + $0x20] sm:$0xf]
      %v733 = vld [vmem:[%s723 + $0x24] sm:$0xf]
      %v734 = vld [vmem:[%s723 + $0x28] sm:$0xf]
      %v735 = vld [vmem:[%s723 + $0x2c] sm:$0xf]
      %v736 = vld [vmem:[%s723 + $0x30] sm:$0xf]
      %v737 = vld [vmem:[%s723 + $0x34] sm:$0xf]
      %v738 = vld [vmem:[%s723 + $0x38] sm:$0xf]
      %v739 = vld [vmem:[%s723 + $0x3c] sm:$0xf]
      %v744 = vunpack.c.l.b16 %v719
      %v745 = vunpack.c.l.b16 %v720
      %v746 = vunpack.c.l.b16 %v721
      %v747 = vunpack.c.l.b16 %v722
      %v748 = vpack.c.b16 %v745, %v744
      %v749 = vpack.c.b16 %v747, %v746
      %v768 = vunpack.c.l.b16 %v724
      %v769 = vunpack.c.l.b16 %v725
      %v770 = vunpack.c.l.b16 %v726
      %v771 = vunpack.c.l.b16 %v727
      %v772 = vunpack.c.l.b16 %v728
      %v773 = vunpack.c.l.b16 %v729
      %v774 = vunpack.c.l.b16 %v730
      %v775 = vunpack.c.l.b16 %v731
      %v776 = vunpack.c.l.b16 %v732
      %v777 = vunpack.c.l.b16 %v733
      %v778 = vunpack.c.l.b16 %v734
      %v779 = vunpack.c.l.b16 %v735
      %v780 = vunpack.c.l.b16 %v736
      %v781 = vunpack.c.l.b16 %v737
      %v782 = vunpack.c.l.b16 %v738
      %v783 = vunpack.c.l.b16 %v739
      %v784 = vpack.c.b16 %v769, %v768
      %v785 = vpack.c.b16 %v771, %v770
      %v786 = vpack.c.b16 %v773, %v772
      %v787 = vpack.c.b16 %v775, %v774
      %v788 = vpack.c.b16 %v777, %v776
      %v789 = vpack.c.b16 %v779, %v778
      %v790 = vpack.c.b16 %v781, %v780
      %v791 = vpack.c.b16 %v783, %v782
      %800 = vmatprep.subr.bf16.mxu0 0
      %801 = vmatpush1.bf16.msra.mxu0 %v784
      %802 = vmatprep.subr.bf16.mxu0 0
      %803 = vmatpush1.bf16.msra.mxu0 %v785
      %804 = vmatprep.subr.bf16.mxu0 0
      %805 = vmatpush1.bf16.msra.mxu0 %v786
      %806 = vmatprep.subr.bf16.mxu0 0
      %807 = vmatpush1.bf16.msra.mxu0 %v787
      %808 = vmatprep.subr.bf16.mxu0 0
      %809 = vmatpush1.bf16.msra.mxu0 %v788
      %810 = vmatprep.subr.bf16.mxu0 0
      %811 = vmatpush1.bf16.msra.mxu0 %v789
      %812 = vmatprep.subr.bf16.mxu0 0
      %813 = vmatpush1.bf16.msra.mxu0 %v790
      %814 = vmatprep.subr.bf16.mxu0 0
      %815 = vmatpush1.bf16.msra.mxu0 %v791
      %816 = vmatprep.subr.bf16.mxu0 0
      %817 = vmatpush1.bf16.msra.mxu0 0
      %818 = vmatprep.subr.bf16.mxu0 0
      %819 = vmatpush1.bf16.msra.mxu0 0
      %820 = vmatprep.subr.bf16.mxu0 0
      %821 = vmatpush1.bf16.msra.mxu0 0
      %822 = vmatprep.subr.bf16.mxu0 0
      %823 = vmatpush1.bf16.msra.mxu0 0
      %824 = vmatprep.subr.bf16.mxu0 0
      %825 = vmatpush1.bf16.msra.mxu0 0
      %826 = vmatprep.subr.bf16.mxu0 0
      %827 = vmatpush1.bf16.msra.mxu0 0
      %828 = vmatprep.subr.bf16.mxu0 0
      %829 = vmatpush1.bf16.msra.mxu0 0
      %830 = vmatprep.subr.bf16.mxu0 0
      %831 = vmatpush1.bf16.msra.mxu0 0
      %832 = vmatprep.mubr.bf16.mxu0 0
      %833 = vmatmul.mubr.bf16.gmra.mrb[0].mxu0 %v748
      %v834 = vpop.f32.mrb[0].mxu0
      %v835 = vadd.f32 0.0, %v834
      %v836 = vpop.f32.mrb[0].mxu0
      %v837 = vpop.f32.mrb[0].mxu0
      %v838 = vadd.f32 0.0, %v837
      %v839 = vpop.f32.mrb[0].mxu0
      %840 = vmatprep.mubr.bf16.mxu0 0
      %841 = vmatmul.mubr.bf16.gmra.mrb[0].mxu0 %v749
      %v842 = vpop.f32.mrb[0].mxu0
      %v843 = vadd.f32 0.0, %v842
      %v844 = vpop.f32.mrb[0].mxu0
      %v845 = vpop.f32.mrb[0].mxu0
      %v846 = vadd.f32 0.0, %v845
      %v847 = vpop.f32.mrb[0].mxu0
      %848 = vdwg.mxu0
      %v849 = vadd.f32 %v703, %v835
      %v850 = vadd.f32 %v706, %v838
      %v851 = vadd.f32 %v711, %v843
      %v852 = vadd.f32 %v714, %v846
      %s853 = smul.addr %s452, 4
      %s854 = scalar_lea.vmem %s421, %s853
      %v855 = vld [vmem:[%s854] sm:$0xf]
      %v856 = vld [vmem:[%s854 + $0x4] sm:$0xf]
      %v857 = vld [vmem:[%s854 + $0x8] sm:$0xf]
      %v858 = vld [vmem:[%s854 + $0xc] sm:$0xf]
      %s859 = scalar_lea.vmem %s6, 192
      %v860 = vld [vmem:[%s859] sm:$0xf]
      %v861 = vld [vmem:[%s859 + $0x4] sm:$0xf]
      %v862 = vld [vmem:[%s859 + $0x8] sm:$0xf]
      %v863 = vld [vmem:[%s859 + $0xc] sm:$0xf]
      %v864 = vld [vmem:[%s859 + $0x10] sm:$0xf]
      %v865 = vld [vmem:[%s859 + $0x14] sm:$0xf]
      %v866 = vld [vmem:[%s859 + $0x18] sm:$0xf]
      %v867 = vld [vmem:[%s859 + $0x1c] sm:$0xf]
      %v868 = vld [vmem:[%s859 + $0x20] sm:$0xf]
      %v869 = vld [vmem:[%s859 + $0x24] sm:$0xf]
      %v870 = vld [vmem:[%s859 + $0x28] sm:$0xf]
      %v871 = vld [vmem:[%s859 + $0x2c] sm:$0xf]
      %v872 = vld [vmem:[%s859 + $0x30] sm:$0xf]
      %v873 = vld [vmem:[%s859 + $0x34] sm:$0xf]
      %v874 = vld [vmem:[%s859 + $0x38] sm:$0xf]
      %v875 = vld [vmem:[%s859 + $0x3c] sm:$0xf]
      %v880 = vunpack.c.l.b16 %v855
      %v881 = vunpack.c.l.b16 %v856
      %v882 = vunpack.c.l.b16 %v857
      %v883 = vunpack.c.l.b16 %v858
      %v884 = vpack.c.b16 %v881, %v880
      %v885 = vpack.c.b16 %v883, %v882
      %v904 = vunpack.c.l.b16 %v860
      %v905 = vunpack.c.l.b16 %v861
      %v906 = vunpack.c.l.b16 %v862
      %v907 = vunpack.c.l.b16 %v863
      %v908 = vunpack.c.l.b16 %v864
      %v909 = vunpack.c.l.b16 %v865
      %v910 = vunpack.c.l.b16 %v866
      %v911 = vunpack.c.l.b16 %v867
      %v912 = vunpack.c.l.b16 %v868
      %v913 = vunpack.c.l.b16 %v869
      %v914 = vunpack.c.l.b16 %v870
      %v915 = vunpack.c.l.b16 %v871
      %v916 = vunpack.c.l.b16 %v872
      %v917 = vunpack.c.l.b16 %v873
      %v918 = vunpack.c.l.b16 %v874
      %v919 = vunpack.c.l.b16 %v875
      %v920 = vpack.c.b16 %v905, %v904
      %v921 = vpack.c.b16 %v907, %v906
      %v922 = vpack.c.b16 %v909, %v908
      %v923 = vpack.c.b16 %v911, %v910
      %v924 = vpack.c.b16 %v913, %v912
      %v925 = vpack.c.b16 %v915, %v914
      %v926 = vpack.c.b16 %v917, %v916
      %v927 = vpack.c.b16 %v919, %v918
      %936 = vmatprep.subr.bf16.mxu0 0
      %937 = vmatpush1.bf16.msra.mxu0 %v920
      %938 = vmatprep.subr.bf16.mxu0 0
      %939 = vmatpush1.bf16.msra.mxu0 %v921
      %940 = vmatprep.subr.bf16.mxu0 0
      %941 = vmatpush1.bf16.msra.mxu0 %v922
      %942 = vmatprep.subr.bf16.mxu0 0
      %943 = vmatpush1.bf16.msra.mxu0 %v923
      %944 = vmatprep.subr.bf16.mxu0 0
      %945 = vmatpush1.bf16.msra.mxu0 %v924
      %946 = vmatprep.subr.bf16.mxu0 0
      %947 = vmatpush1.bf16.msra.mxu0 %v925
      %948 = vmatprep.subr.bf16.mxu0 0
      %949 = vmatpush1.bf16.msra.mxu0 %v926
      %950 = vmatprep.subr.bf16.mxu0 0
      %951 = vmatpush1.bf16.msra.mxu0 %v927
      %952 = vmatprep.subr.bf16.mxu0 0
      %953 = vmatpush1.bf16.msra.mxu0 0
      %954 = vmatprep.subr.bf16.mxu0 0
      %955 = vmatpush1.bf16.msra.mxu0 0
      %956 = vmatprep.subr.bf16.mxu0 0
      %957 = vmatpush1.bf16.msra.mxu0 0
      %958 = vmatprep.subr.bf16.mxu0 0
      %959 = vmatpush1.bf16.msra.mxu0 0
      %960 = vmatprep.subr.bf16.mxu0 0
      %961 = vmatpush1.bf16.msra.mxu0 0
      %962 = vmatprep.subr.bf16.mxu0 0
      %963 = vmatpush1.bf16.msra.mxu0 0
      %964 = vmatprep.subr.bf16.mxu0 0
      %965 = vmatpush1.bf16.msra.mxu0 0
      %966 = vmatprep.subr.bf16.mxu0 0
      %967 = vmatpush1.bf16.msra.mxu0 0
      %968 = vmatprep.mubr.bf16.mxu0 0
      %969 = vmatmul.mubr.bf16.gmra.mrb[0].mxu0 %v884
      %v970 = vpop.f32.mrb[0].mxu0
      %v971 = vadd.f32 0.0, %v970
      %v972 = vpop.f32.mrb[0].mxu0
      %v973 = vpop.f32.mrb[0].mxu0
      %v974 = vadd.f32 0.0, %v973
      %v975 = vpop.f32.mrb[0].mxu0
      %976 = vmatprep.mubr.bf16.mxu0 0
      %977 = vmatmul.mubr.bf16.gmra.mrb[0].mxu0 %v885
      %v978 = vpop.f32.mrb[0].mxu0
      %v979 = vadd.f32 0.0, %v978
      %v980 = vpop.f32.mrb[0].mxu0
      %v981 = vpop.f32.mrb[0].mxu0
      %v982 = vadd.f32 0.0, %v981
      %v983 = vpop.f32.mrb[0].mxu0
      %984 = vdwg.mxu0
      %v985 = vadd.f32 %v849, %v971
      %v986 = vadd.f32 %v850, %v974
      %v987 = vadd.f32 %v851, %v979
      %v988 = vadd.f32 %v852, %v982
      %s989 = smul.addr %s452, 4
      %s990 = scalar_lea.vmem %s426, %s989
      %v991 = vld [vmem:[%s990] sm:$0xf]
      %v992 = vld [vmem:[%s990 + $0x4] sm:$0xf]
      %v993 = vld [vmem:[%s990 + $0x8] sm:$0xf]
      %v994 = vld [vmem:[%s990 + $0xc] sm:$0xf]
      %s995 = scalar_lea.vmem %s6, 256
      %v996 = vld [vmem:[%s995] sm:$0xf]
      %v997 = vld [vmem:[%s995 + $0x4] sm:$0xf]
      %v998 = vld [vmem:[%s995 + $0x8] sm:$0xf]
      %v999 = vld [vmem:[%s995 + $0xc] sm:$0xf]
      %v1000 = vld [vmem:[%s995 + $0x10] sm:$0xf]
      %v1001 = vld [vmem:[%s995 + $0x14] sm:$0xf]
      %v1002 = vld [vmem:[%s995 + $0x18] sm:$0xf]
      %v1003 = vld [vmem:[%s995 + $0x1c] sm:$0xf]
      %v1004 = vld [vmem:[%s995 + $0x20] sm:$0xf]
      %v1005 = vld [vmem:[%s995 + $0x24] sm:$0xf]
      %v1006 = vld [vmem:[%s995 + $0x28] sm:$0xf]
      %v1007 = vld [vmem:[%s995 + $0x2c] sm:$0xf]
      %v1008 = vld [vmem:[%s995 + $0x30] sm:$0xf]
      %v1009 = vld [vmem:[%s995 + $0x34] sm:$0xf]
      %v1010 = vld [vmem:[%s995 + $0x38] sm:$0xf]
      %v1011 = vld [vmem:[%s995 + $0x3c] sm:$0xf]
      %v1016 = vunpack.c.l.b16 %v991
      %v1017 = vunpack.c.l.b16 %v992
      %v1018 = vunpack.c.l.b16 %v993
      %v1019 = vunpack.c.l.b16 %v994
      %v1020 = vpack.c.b16 %v1017, %v1016
      %v1021 = vpack.c.b16 %v1019, %v1018
      %v1040 = vunpack.c.l.b16 %v996
      %v1041 = vunpack.c.l.b16 %v997
      %v1042 = vunpack.c.l.b16 %v998
      %v1043 = vunpack.c.l.b16 %v999
      %v1044 = vunpack.c.l.b16 %v1000
      %v1045 = vunpack.c.l.b16 %v1001
      %v1046 = vunpack.c.l.b16 %v1002
      %v1047 = vunpack.c.l.b16 %v1003
      %v1048 = vunpack.c.l.b16 %v1004
      %v1049 = vunpack.c.l.b16 %v1005
      %v1050 = vunpack.c.l.b16 %v1006
      %v1051 = vunpack.c.l.b16 %v1007
      %v1052 = vunpack.c.l.b16 %v1008
      %v1053 = vunpack.c.l.b16 %v1009
      %v1054 = vunpack.c.l.b16 %v1010
      %v1055 = vunpack.c.l.b16 %v1011
      %v1056 = vpack.c.b16 %v1041, %v1040
      %v1057 = vpack.c.b16 %v1043, %v1042
      %v1058 = vpack.c.b16 %v1045, %v1044
      %v1059 = vpack.c.b16 %v1047, %v1046
      %v1060 = vpack.c.b16 %v1049, %v1048
      %v1061 = vpack.c.b16 %v1051, %v1050
      %v1062 = vpack.c.b16 %v1053, %v1052
      %v1063 = vpack.c.b16 %v1055, %v1054
      %1072 = vmatprep.subr.bf16.mxu0 0
      %1073 = vmatpush1.bf16.msra.mxu0 %v1056
      %1074 = vmatprep.subr.bf16.mxu0 0
      %1075 = vmatpush1.bf16.msra.mxu0 %v1057
      %1076 = vmatprep.subr.bf16.mxu0 0
      %1077 = vmatpush1.bf16.msra.mxu0 %v1058
      %1078 = vmatprep.subr.bf16.mxu0 0
      %1079 = vmatpush1.bf16.msra.mxu0 %v1059
      %1080 = vmatprep.subr.bf16.mxu0 0
      %1081 = vmatpush1.bf16.msra.mxu0 %v1060
      %1082 = vmatprep.subr.bf16.mxu0 0
      %1083 = vmatpush1.bf16.msra.mxu0 %v1061
      %1084 = vmatprep.subr.bf16.mxu0 0
      %1085 = vmatpush1.bf16.msra.mxu0 %v1062
      %1086 = vmatprep.subr.bf16.mxu0 0
      %1087 = vmatpush1.bf16.msra.mxu0 %v1063
      %1088 = vmatprep.subr.bf16.mxu0 0
      %1089 = vmatpush1.bf16.msra.mxu0 0
      %1090 = vmatprep.subr.bf16.mxu0 0
      %1091 = vmatpush1.bf16.msra.mxu0 0
      %1092 = vmatprep.subr.bf16.mxu0 0
      %1093 = vmatpush1.bf16.msra.mxu0 0
      %1094 = vmatprep.subr.bf16.mxu0 0
      %1095 = vmatpush1.bf16.msra.mxu0 0
      %1096 = vmatprep.subr.bf16.mxu0 0
      %1097 = vmatpush1.bf16.msra.mxu0 0
      %1098 = vmatprep.subr.bf16.mxu0 0
      %1099 = vmatpush1.bf16.msra.mxu0 0
      %1100 = vmatprep.subr.bf16.mxu0 0
      %1101 = vmatpush1.bf16.msra.mxu0 0
      %1102 = vmatprep.subr.bf16.mxu0 0
      %1103 = vmatpush1.bf16.msra.mxu0 0
      %1104 = vmatprep.mubr.bf16.mxu0 0
      %1105 = vmatmul.mubr.bf16.gmra.mrb[0].mxu0 %v1020
      %v1106 = vpop.f32.mrb[0].mxu0
      %v1107 = vadd.f32 0.0, %v1106
      %v1108 = vpop.f32.mrb[0].mxu0
      %v1109 = vpop.f32.mrb[0].mxu0
      %v1110 = vadd.f32 0.0, %v1109
      %v1111 = vpop.f32.mrb[0].mxu0
      %1112 = vmatprep.mubr.bf16.mxu0 0
      %1113 = vmatmul.mubr.bf16.gmra.mrb[0].mxu0 %v1021
      %v1114 = vpop.f32.mrb[0].mxu0
      %v1115 = vadd.f32 0.0, %v1114
      %v1116 = vpop.f32.mrb[0].mxu0
      %v1117 = vpop.f32.mrb[0].mxu0
      %v1118 = vadd.f32 0.0, %v1117
      %v1119 = vpop.f32.mrb[0].mxu0
      %1120 = vdwg.mxu0
      %v1121 = vadd.f32 %v985, %v1107
      %v1122 = vadd.f32 %v986, %v1110
      %v1123 = vadd.f32 %v987, %v1115
      %v1124 = vadd.f32 %v988, %v1118
      %s1125 = smul.addr %s452, 4
      %s1126 = scalar_lea.vmem %s431, %s1125
      %v1127 = vld [vmem:[%s1126] sm:$0xf]
      %v1128 = vld [vmem:[%s1126 + $0x4] sm:$0xf]
      %v1129 = vld [vmem:[%s1126 + $0x8] sm:$0xf]
      %v1130 = vld [vmem:[%s1126 + $0xc] sm:$0xf]
      %s1131 = scalar_lea.vmem %s6, 320
      %v1132 = vld [vmem:[%s1131] sm:$0xf]
      %v1133 = vld [vmem:[%s1131 + $0x4] sm:$0xf]
      %v1134 = vld [vmem:[%s1131 + $0x8] sm:$0xf]
      %v1135 = vld [vmem:[%s1131 + $0xc] sm:$0xf]
      %v1136 = vld [vmem:[%s1131 + $0x10] sm:$0xf]
      %v1137 = vld [vmem:[%s1131 + $0x14] sm:$0xf]
      %v1138 = vld [vmem:[%s1131 + $0x18] sm:$0xf]
      %v1139 = vld [vmem:[%s1131 + $0x1c] sm:$0xf]
      %v1140 = vld [vmem:[%s1131 + $0x20] sm:$0xf]
      %v1141 = vld [vmem:[%s1131 + $0x24] sm:$0xf]
      %v1142 = vld [vmem:[%s1131 + $0x28] sm:$0xf]
      %v1143 = vld [vmem:[%s1131 + $0x2c] sm:$0xf]
      %v1144 = vld [vmem:[%s1131 + $0x30] sm:$0xf]
      %v1145 = vld [vmem:[%s1131 + $0x34] sm:$0xf]
      %v1146 = vld [vmem:[%s1131 + $0x38] sm:$0xf]
      %v1147 = vld [vmem:[%s1131 + $0x3c] sm:$0xf]
      %v1152 = vunpack.c.l.b16 %v1127
      %v1153 = vunpack.c.l.b16 %v1128
      %v1154 = vunpack.c.l.b16 %v1129
      %v1155 = vunpack.c.l.b16 %v1130
      %v1156 = vpack.c.b16 %v1153, %v1152
      %v1157 = vpack.c.b16 %v1155, %v1154
      %v1176 = vunpack.c.l.b16 %v1132
      %v1177 = vunpack.c.l.b16 %v1133
      %v1178 = vunpack.c.l.b16 %v1134
      %v1179 = vunpack.c.l.b16 %v1135
      %v1180 = vunpack.c.l.b16 %v1136
      %v1181 = vunpack.c.l.b16 %v1137
      %v1182 = vunpack.c.l.b16 %v1138
      %v1183 = vunpack.c.l.b16 %v1139
      %v1184 = vunpack.c.l.b16 %v1140
      %v1185 = vunpack.c.l.b16 %v1141
      %v1186 = vunpack.c.l.b16 %v1142
      %v1187 = vunpack.c.l.b16 %v1143
      %v1188 = vunpack.c.l.b16 %v1144
      %v1189 = vunpack.c.l.b16 %v1145
      %v1190 = vunpack.c.l.b16 %v1146
      %v1191 = vunpack.c.l.b16 %v1147
      %v1192 = vpack.c.b16 %v1177, %v1176
      %v1193 = vpack.c.b16 %v1179, %v1178
      %v1194 = vpack.c.b16 %v1181, %v1180
      %v1195 = vpack.c.b16 %v1183, %v1182
      %v1196 = vpack.c.b16 %v1185, %v1184
      %v1197 = vpack.c.b16 %v1187, %v1186
      %v1198 = vpack.c.b16 %v1189, %v1188
      %v1199 = vpack.c.b16 %v1191, %v1190
      %1208 = vmatprep.subr.bf16.mxu0 0
      %1209 = vmatpush1.bf16.msra.mxu0 %v1192
      %1210 = vmatprep.subr.bf16.mxu0 0
      %1211 = vmatpush1.bf16.msra.mxu0 %v1193
      %1212 = vmatprep.subr.bf16.mxu0 0
      %1213 = vmatpush1.bf16.msra.mxu0 %v1194
      %1214 = vmatprep.subr.bf16.mxu0 0
      %1215 = vmatpush1.bf16.msra.mxu0 %v1195
      %1216 = vmatprep.subr.bf16.mxu0 0
      %1217 = vmatpush1.bf16.msra.mxu0 %v1196
      %1218 = vmatprep.subr.bf16.mxu0 0
      %1219 = vmatpush1.bf16.msra.mxu0 %v1197
      %1220 = vmatprep.subr.bf16.mxu0 0
      %1221 = vmatpush1.bf16.msra.mxu0 %v1198
      %1222 = vmatprep.subr.bf16.mxu0 0
      %1223 = vmatpush1.bf16.msra.mxu0 %v1199
      %1224 = vmatprep.subr.bf16.mxu0 0
      %1225 = vmatpush1.bf16.msra.mxu0 0
      %1226 = vmatprep.subr.bf16.mxu0 0
      %1227 = vmatpush1.bf16.msra.mxu0 0
      %1228 = vmatprep.subr.bf16.mxu0 0
      %1229 = vmatpush1.bf16.msra.mxu0 0
      %1230 = vmatprep.subr.bf16.mxu0 0
      %1231 = vmatpush1.bf16.msra.mxu0 0
      %1232 = vmatprep.subr.bf16.mxu0 0
      %1233 = vmatpush1.bf16.msra.mxu0 0
      %1234 = vmatprep.subr.bf16.mxu0 0
      %1235 = vmatpush1.bf16.msra.mxu0 0
      %1236 = vmatprep.subr.bf16.mxu0 0
      %1237 = vmatpush1.bf16.msra.mxu0 0
      %1238 = vmatprep.subr.bf16.mxu0 0
      %1239 = vmatpush1.bf16.msra.mxu0 0
      %1240 = vmatprep.mubr.bf16.mxu0 0
      %1241 = vmatmul.mubr.bf16.gmra.mrb[0].mxu0 %v1156
      %v1242 = vpop.f32.mrb[0].mxu0
      %v1243 = vadd.f32 0.0, %v1242
      %v1244 = vpop.f32.mrb[0].mxu0
      %v1245 = vpop.f32.mrb[0].mxu0
      %v1246 = vadd.f32 0.0, %v1245
      %v1247 = vpop.f32.mrb[0].mxu0
      %1248 = vmatprep.mubr.bf16.mxu0 0
      %1249 = vmatmul.mubr.bf16.gmra.mrb[0].mxu0 %v1157
      %v1250 = vpop.f32.mrb[0].mxu0
      %v1251 = vadd.f32 0.0, %v1250
      %v1252 = vpop.f32.mrb[0].mxu0
      %v1253 = vpop.f32.mrb[0].mxu0
      %v1254 = vadd.f32 0.0, %v1253
      %v1255 = vpop.f32.mrb[0].mxu0
      %1256 = vdwg.mxu0
      %v1257 = vadd.f32 %v1121, %v1243
      %v1258 = vadd.f32 %v1122, %v1246
      %v1259 = vadd.f32 %v1123, %v1251
      %v1260 = vadd.f32 %v1124, %v1254
      %s1261 = smul.u32 %s25, 4
      %s1262 = sadd.s32 %s1261, 1
      %s1263 = smul.u32 %s1262, 8
      %s1264 = sshra.s32 %s1263, 3
      %s1265 = sand.u32 %s1263, 7
      %s1266 = smul.addr %s1264, 4
      %s1267 = scalar_lea.vmem %s406, %s1266
      %v1268 = vld [vmem:[%s1267] sm:$0xf]
      %v1269 = vld [vmem:[%s1267 + $0x4] sm:$0xf]
      %v1270 = vld [vmem:[%s1267 + $0x8] sm:$0xf]
      %v1271 = vld [vmem:[%s1267 + $0xc] sm:$0xf]
      %s1272 = scalar_lea.vmem %s6, 384
      %v1273 = vld [vmem:[%s1272] sm:$0xf]
      %v1274 = vld [vmem:[%s1272 + $0x4] sm:$0xf]
      %v1275 = vld [vmem:[%s1272 + $0x8] sm:$0xf]
      %v1276 = vld [vmem:[%s1272 + $0xc] sm:$0xf]
      %v1277 = vld [vmem:[%s1272 + $0x10] sm:$0xf]
      %v1278 = vld [vmem:[%s1272 + $0x14] sm:$0xf]
      %v1279 = vld [vmem:[%s1272 + $0x18] sm:$0xf]
      %v1280 = vld [vmem:[%s1272 + $0x1c] sm:$0xf]
      %v1281 = vld [vmem:[%s1272 + $0x20] sm:$0xf]
      %v1282 = vld [vmem:[%s1272 + $0x24] sm:$0xf]
      %v1283 = vld [vmem:[%s1272 + $0x28] sm:$0xf]
      %v1284 = vld [vmem:[%s1272 + $0x2c] sm:$0xf]
      %v1285 = vld [vmem:[%s1272 + $0x30] sm:$0xf]
      %v1286 = vld [vmem:[%s1272 + $0x34] sm:$0xf]
      %v1287 = vld [vmem:[%s1272 + $0x38] sm:$0xf]
      %v1288 = vld [vmem:[%s1272 + $0x3c] sm:$0xf]
      %v1293 = vunpack.c.l.b16 %v1268
      %v1294 = vunpack.c.l.b16 %v1269
      %v1295 = vunpack.c.l.b16 %v1270
      %v1296 = vunpack.c.l.b16 %v1271
      %v1297 = vpack.c.b16 %v1294, %v1293
      %v1298 = vpack.c.b16 %v1296, %v1295
      %v1317 = vunpack.c.l.b16 %v1273
      %v1318 = vunpack.c.l.b16 %v1274
      %v1319 = vunpack.c.l.b16 %v1275
      %v1320 = vunpack.c.l.b16 %v1276
      %v1321 = vunpack.c.l.b16 %v1277
      %v1322 = vunpack.c.l.b16 %v1278
      %v1323 = vunpack.c.l.b16 %v1279
      %v1324 = vunpack.c.l.b16 %v1280
      %v1325 = vunpack.c.l.b16 %v1281
      %v1326 = vunpack.c.l.b16 %v1282
      %v1327 = vunpack.c.l.b16 %v1283
      %v1328 = vunpack.c.l.b16 %v1284
      %v1329 = vunpack.c.l.b16 %v1285
      %v1330 = vunpack.c.l.b16 %v1286
      %v1331 = vunpack.c.l.b16 %v1287
      %v1332 = vunpack.c.l.b16 %v1288
      %v1333 = vpack.c.b16 %v1318, %v1317
      %v1334 = vpack.c.b16 %v1320, %v1319
      %v1335 = vpack.c.b16 %v1322, %v1321
      %v1336 = vpack.c.b16 %v1324, %v1323
      %v1337 = vpack.c.b16 %v1326, %v1325
      %v1338 = vpack.c.b16 %v1328, %v1327
      %v1339 = vpack.c.b16 %v1330, %v1329
      %v1340 = vpack.c.b16 %v1332, %v1331
      %1349 = vmatprep.subr.bf16.mxu0 0
      %1350 = vmatpush1.bf16.msra.mxu0 %v1333
      %1351 = vmatprep.subr.bf16.mxu0 0
      %1352 = vmatpush1.bf16.msra.mxu0 %v1334
      %1353 = vmatprep.subr.bf16.mxu0 0
      %1354 = vmatpush1.bf16.msra.mxu0 %v1335
      %1355 = vmatprep.subr.bf16.mxu0 0
      %1356 = vmatpush1.bf16.msra.mxu0 %v1336
      %1357 = vmatprep.subr.bf16.mxu0 0
      %1358 = vmatpush1.bf16.msra.mxu0 %v1337
      %1359 = vmatprep.subr.bf16.mxu0 0
      %1360 = vmatpush1.bf16.msra.mxu0 %v1338
      %1361 = vmatprep.subr.bf16.mxu0 0
      %1362 = vmatpush1.bf16.msra.mxu0 %v1339
      %1363 = vmatprep.subr.bf16.mxu0 0
      %1364 = vmatpush1.bf16.msra.mxu0 %v1340
      %1365 = vmatprep.subr.bf16.mxu0 0
      %1366 = vmatpush1.bf16.msra.mxu0 0
      %1367 = vmatprep.subr.bf16.mxu0 0
      %1368 = vmatpush1.bf16.msra.mxu0 0
      %1369 = vmatprep.subr.bf16.mxu0 0
      %1370 = vmatpush1.bf16.msra.mxu0 0
      %1371 = vmatprep.subr.bf16.mxu0 0
      %1372 = vmatpush1.bf16.msra.mxu0 0
      %1373 = vmatprep.subr.bf16.mxu0 0
      %1374 = vmatpush1.bf16.msra.mxu0 0
      %1375 = vmatprep.subr.bf16.mxu0 0
      %1376 = vmatpush1.bf16.msra.mxu0 0
      %1377 = vmatprep.subr.bf16.mxu0 0
      %1378 = vmatpush1.bf16.msra.mxu0 0
      %1379 = vmatprep.subr.bf16.mxu0 0
      %1380 = vmatpush1.bf16.msra.mxu0 0
      %1381 = vmatprep.mubr.bf16.mxu0 0
      %1382 = vmatmul.mubr.bf16.gmra.mrb[0].mxu0 %v1297
      %v1383 = vpop.f32.mrb[0].mxu0
      %v1384 = vadd.f32 0.0, %v1383
      %v1385 = vpop.f32.mrb[0].mxu0
      %v1386 = vpop.f32.mrb[0].mxu0
      %v1387 = vadd.f32 0.0, %v1386
      %v1388 = vpop.f32.mrb[0].mxu0
      %1389 = vmatprep.mubr.bf16.mxu0 0
      %1390 = vmatmul.mubr.bf16.gmra.mrb[0].mxu0 %v1298
      %v1391 = vpop.f32.mrb[0].mxu0
      %v1392 = vadd.f32 0.0, %v1391
      %v1393 = vpop.f32.mrb[0].mxu0
      %v1394 = vpop.f32.mrb[0].mxu0
      %v1395 = vadd.f32 0.0, %v1394
      %v1396 = vpop.f32.mrb[0].mxu0
      %1397 = vdwg.mxu0
      %v1398 = vadd.f32 %v1257, %v1384
      %v1399 = vadd.f32 %v1258, %v1387
      %v1400 = vadd.f32 %v1259, %v1392
      %v1401 = vadd.f32 %v1260, %v1395
      %s1402 = smul.addr %s1264, 4
      %s1403 = scalar_lea.vmem %s411, %s1402
      %v1404 = vld [vmem:[%s1403] sm:$0xf]
      %v1405 = vld [vmem:[%s1403 + $0x4] sm:$0xf]
      %v1406 = vld [vmem:[%s1403 + $0x8] sm:$0xf]
      %v1407 = vld [vmem:[%s1403 + $0xc] sm:$0xf]
      %s1408 = scalar_lea.vmem %s6, 448
      %v1409 = vld [vmem:[%s1408] sm:$0xf]
      %v1410 = vld [vmem:[%s1408 + $0x4] sm:$0xf]
      %v1411 = vld [vmem:[%s1408 + $0x8] sm:$0xf]
      %v1412 = vld [vmem:[%s1408 + $0xc] sm:$0xf]
      %v1413 = vld [vmem:[%s1408 + $0x10] sm:$0xf]
      %v1414 = vld [vmem:[%s1408 + $0x14] sm:$0xf]
      %v1415 = vld [vmem:[%s1408 + $0x18] sm:$0xf]
      %v1416 = vld [vmem:[%s1408 + $0x1c] sm:$0xf]
      %v1417 = vld [vmem:[%s1408 + $0x20] sm:$0xf]
      %v1418 = vld [vmem:[%s1408 + $0x24] sm:$0xf]
      %v1419 = vld [vmem:[%s1408 + $0x28] sm:$0xf]
      %v1420 = vld [vmem:[%s1408 + $0x2c] sm:$0xf]
      %v1421 = vld [vmem:[%s1408 + $0x30] sm:$0xf]
      %v1422 = vld [vmem:[%s1408 + $0x34] sm:$0xf]
      %v1423 = vld [vmem:[%s1408 + $0x38] sm:$0xf]
      %v1424 = vld [vmem:[%s1408 + $0x3c] sm:$0xf]
      %v1429 = vunpack.c.l.b16 %v1404
      %v1430 = vunpack.c.l.b16 %v1405
      %v1431 = vunpack.c.l.b16 %v1406
      %v1432 = vunpack.c.l.b16 %v1407
      %v1433 = vpack.c.b16 %v1430, %v1429
      %v1434 = vpack.c.b16 %v1432, %v1431
      %v1453 = vunpack.c.l.b16 %v1409
      %v1454 = vunpack.c.l.b16 %v1410
      %v1455 = vunpack.c.l.b16 %v1411
      %v1456 = vunpack.c.l.b16 %v1412
      %v1457 = vunpack.c.l.b16 %v1413
      %v1458 = vunpack.c.l.b16 %v1414
      %v1459 = vunpack.c.l.b16 %v1415
      %v1460 = vunpack.c.l.b16 %v1416
      %v1461 = vunpack.c.l.b16 %v1417
      %v1462 = vunpack.c.l.b16 %v1418
      %v1463 = vunpack.c.l.b16 %v1419
      %v1464 = vunpack.c.l.b16 %v1420
      %v1465 = vunpack.c.l.b16 %v1421
      %v1466 = vunpack.c.l.b16 %v1422
      %v1467 = vunpack.c.l.b16 %v1423
      %v1468 = vunpack.c.l.b16 %v1424
      %v1469 = vpack.c.b16 %v1454, %v1453
      %v1470 = vpack.c.b16 %v1456, %v1455
      %v1471 = vpack.c.b16 %v1458, %v1457
      %v1472 = vpack.c.b16 %v1460, %v1459
      %v1473 = vpack.c.b16 %v1462, %v1461
      %v1474 = vpack.c.b16 %v1464, %v1463
      %v1475 = vpack.c.b16 %v1466, %v1465
      %v1476 = vpack.c.b16 %v1468, %v1467
      %1485 = vmatprep.subr.bf16.mxu0 0
      %1486 = vmatpush1.bf16.msra.mxu0 %v1469
      %1487 = vmatprep.subr.bf16.mxu0 0
      %1488 = vmatpush1.bf16.msra.mxu0 %v1470
      %1489 = vmatprep.subr.bf16.mxu0 0
      %1490 = vmatpush1.bf16.msra.mxu0 %v1471
      %1491 = vmatprep.subr.bf16.mxu0 0
      %1492 = vmatpush1.bf16.msra.mxu0 %v1472
      %1493 = vmatprep.subr.bf16.mxu0 0
      %1494 = vmatpush1.bf16.msra.mxu0 %v1473
      %1495 = vmatprep.subr.bf16.mxu0 0
      %1496 = vmatpush1.bf16.msra.mxu0 %v1474
      %1497 = vmatprep.subr.bf16.mxu0 0
      %1498 = vmatpush1.bf16.msra.mxu0 %v1475
      %1499 = vmatprep.subr.bf16.mxu0 0
      %1500 = vmatpush1.bf16.msra.mxu0 %v1476
      %1501 = vmatprep.subr.bf16.mxu0 0
      %1502 = vmatpush1.bf16.msra.mxu0 0
      %1503 = vmatprep.subr.bf16.mxu0 0
      %1504 = vmatpush1.bf16.msra.mxu0 0
      %1505 = vmatprep.subr.bf16.mxu0 0
      %1506 = vmatpush1.bf16.msra.mxu0 0
      %1507 = vmatprep.subr.bf16.mxu0 0
      %1508 = vmatpush1.bf16.msra.mxu0 0
      %1509 = vmatprep.subr.bf16.mxu0 0
      %1510 = vmatpush1.bf16.msra.mxu0 0
      %1511 = vmatprep.subr.bf16.mxu0 0
      %1512 = vmatpush1.bf16.msra.mxu0 0
      %1513 = vmatprep.subr.bf16.mxu0 0
      %1514 = vmatpush1.bf16.msra.mxu0 0
      %1515 = vmatprep.subr.bf16.mxu0 0
      %1516 = vmatpush1.bf16.msra.mxu0 0
      %1517 = vmatprep.mubr.bf16.mxu0 0
      %1518 = vmatmul.mubr.bf16.gmra.mrb[0].mxu0 %v1433
      %v1519 = vpop.f32.mrb[0].mxu0
      %v1520 = vadd.f32 0.0, %v1519
      %v1521 = vpop.f32.mrb[0].mxu0
      %v1522 = vpop.f32.mrb[0].mxu0
      %v1523 = vadd.f32 0.0, %v1522
      %v1524 = vpop.f32.mrb[0].mxu0
      %1525 = vmatprep.mubr.bf16.mxu0 0
      %1526 = vmatmul.mubr.bf16.gmra.mrb[0].mxu0 %v1434
      %v1527 = vpop.f32.mrb[0].mxu0
      %v1528 = vadd.f32 0.0, %v1527
      %v1529 = vpop.f32.mrb[0].mxu0
      %v1530 = vpop.f32.mrb[0].mxu0
      %v1531 = vadd.f32 0.0, %v1530
      %v1532 = vpop.f32.mrb[0].mxu0
      %1533 = vdwg.mxu0
      %v1534 = vadd.f32 %v1398, %v1520
      %v1535 = vadd.f32 %v1399, %v1523
      %v1536 = vadd.f32 %v1400, %v1528
      %v1537 = vadd.f32 %v1401, %v1531
      %s1538 = smul.addr %s1264, 4
      %s1539 = scalar_lea.vmem %s416, %s1538
      %v1540 = vld [vmem:[%s1539] sm:$0xf]
      %v1541 = vld [vmem:[%s1539 + $0x4] sm:$0xf]
      %v1542 = vld [vmem:[%s1539 + $0x8] sm:$0xf]
      %v1543 = vld [vmem:[%s1539 + $0xc] sm:$0xf]
      %s1544 = scalar_lea.vmem %s6, 512
      %v1545 = vld [vmem:[%s1544] sm:$0xf]
      %v1546 = vld [vmem:[%s1544 + $0x4] sm:$0xf]
      %v1547 = vld [vmem:[%s1544 + $0x8] sm:$0xf]
      %v1548 = vld [vmem:[%s1544 + $0xc] sm:$0xf]
      %v1549 = vld [vmem:[%s1544 + $0x10] sm:$0xf]
      %v1550 = vld [vmem:[%s1544 + $0x14] sm:$0xf]
      %v1551 = vld [vmem:[%s1544 + $0x18] sm:$0xf]
      %v1552 = vld [vmem:[%s1544 + $0x1c] sm:$0xf]
      %v1553 = vld [vmem:[%s1544 + $0x20] sm:$0xf]
      %v1554 = vld [vmem:[%s1544 + $0x24] sm:$0xf]
      %v1555 = vld [vmem:[%s1544 + $0x28] sm:$0xf]
      %v1556 = vld [vmem:[%s1544 + $0x2c] sm:$0xf]
      %v1557 = vld [vmem:[%s1544 + $0x30] sm:$0xf]
      %v1558 = vld [vmem:[%s1544 + $0x34] sm:$0xf]
      %v1559 = vld [vmem:[%s1544 + $0x38] sm:$0xf]
      %v1560 = vld [vmem:[%s1544 + $0x3c] sm:$0xf]
      %v1565 = vunpack.c.l.b16 %v1540
      %v1566 = vunpack.c.l.b16 %v1541
      %v1567 = vunpack.c.l.b16 %v1542
      %v1568 = vunpack.c.l.b16 %v1543
      %v1569 = vpack.c.b16 %v1566, %v1565
      %v1570 = vpack.c.b16 %v1568, %v1567
      %v1589 = vunpack.c.l.b16 %v1545
      %v1590 = vunpack.c.l.b16 %v1546
      %v1591 = vunpack.c.l.b16 %v1547
      %v1592 = vunpack.c.l.b16 %v1548
      %v1593 = vunpack.c.l.b16 %v1549
      %v1594 = vunpack.c.l.b16 %v1550
      %v1595 = vunpack.c.l.b16 %v1551
      %v1596 = vunpack.c.l.b16 %v1552
      %v1597 = vunpack.c.l.b16 %v1553
      %v1598 = vunpack.c.l.b16 %v1554
      %v1599 = vunpack.c.l.b16 %v1555
      %v1600 = vunpack.c.l.b16 %v1556
      %v1601 = vunpack.c.l.b16 %v1557
      %v1602 = vunpack.c.l.b16 %v1558
      %v1603 = vunpack.c.l.b16 %v1559
      %v1604 = vunpack.c.l.b16 %v1560
      %v1605 = vpack.c.b16 %v1590, %v1589
      %v1606 = vpack.c.b16 %v1592, %v1591
      %v1607 = vpack.c.b16 %v1594, %v1593
      %v1608 = vpack.c.b16 %v1596, %v1595
      %v1609 = vpack.c.b16 %v1598, %v1597
      %v1610 = vpack.c.b16 %v1600, %v1599
      %v1611 = vpack.c.b16 %v1602, %v1601
      %v1612 = vpack.c.b16 %v1604, %v1603
      %1621 = vmatprep.subr.bf16.mxu0 0
      %1622 = vmatpush1.bf16.msra.mxu0 %v1605
      %1623 = vmatprep.subr.bf16.mxu0 0
      %1624 = vmatpush1.bf16.msra.mxu0 %v1606
      %1625 = vmatprep.subr.bf16.mxu0 0
      %1626 = vmatpush1.bf16.msra.mxu0 %v1607
      %1627 = vmatprep.subr.bf16.mxu0 0
      %1628 = vmatpush1.bf16.msra.mxu0 %v1608
      %1629 = vmatprep.subr.bf16.mxu0 0
      %1630 = vmatpush1.bf16.msra.mxu0 %v1609
      %1631 = vmatprep.subr.bf16.mxu0 0
      %1632 = vmatpush1.bf16.msra.mxu0 %v1610
      %1633 = vmatprep.subr.bf16.mxu0 0
      %1634 = vmatpush1.bf16.msra.mxu0 %v1611
      %1635 = vmatprep.subr.bf16.mxu0 0
      %1636 = vmatpush1.bf16.msra.mxu0 %v1612
      %1637 = vmatprep.subr.bf16.mxu0 0
      %1638 = vmatpush1.bf16.msra.mxu0 0
      %1639 = vmatprep.subr.bf16.mxu0 0
      %1640 = vmatpush1.bf16.msra.mxu0 0
      %1641 = vmatprep.subr.bf16.mxu0 0
      %1642 = vmatpush1.bf16.msra.mxu0 0
      %1643 = vmatprep.subr.bf16.mxu0 0
      %1644 = vmatpush1.bf16.msra.mxu0 0
      %1645 = vmatprep.subr.bf16.mxu0 0
      %1646 = vmatpush1.bf16.msra.mxu0 0
      %1647 = vmatprep.subr.bf16.mxu0 0
      %1648 = vmatpush1.bf16.msra.mxu0 0
      %1649 = vmatprep.subr.bf16.mxu0 0
      %1650 = vmatpush1.bf16.msra.mxu0 0
      %1651 = vmatprep.subr.bf16.mxu0 0
      %1652 = vmatpush1.bf16.msra.mxu0 0
      %1653 = vmatprep.mubr.bf16.mxu0 0
      %1654 = vmatmul.mubr.bf16.gmra.mrb[0].mxu0 %v1569
      %v1655 = vpop.f32.mrb[0].mxu0
      %v1656 = vadd.f32 0.0, %v1655
      %v1657 = vpop.f32.mrb[0].mxu0
      %v1658 = vpop.f32.mrb[0].mxu0
      %v1659 = vadd.f32 0.0, %v1658
      %v1660 = vpop.f32.mrb[0].mxu0
      %1661 = vmatprep.mubr.bf16.mxu0 0
      %1662 = vmatmul.mubr.bf16.gmra.mrb[0].mxu0 %v1570
      %v1663 = vpop.f32.mrb[0].mxu0
      %v1664 = vadd.f32 0.0, %v1663
      %v1665 = vpop.f32.mrb[0].mxu0
      %v1666 = vpop.f32.mrb[0].mxu0
      %v1667 = vadd.f32 0.0, %v1666
      %v1668 = vpop.f32.mrb[0].mxu0
      %1669 = vdwg.mxu0
      %v1670 = vadd.f32 %v1534, %v1656
      %v1671 = vadd.f32 %v1535, %v1659
      %v1672 = vadd.f32 %v1536, %v1664
      %v1673 = vadd.f32 %v1537, %v1667
      %v1674 = vpack.c.bf16 %v1671, %v1670
      %v1675 = vpack.c.bf16 %v1673, %v1672
      %v1678 = vunpack.c.l.b16 %v1674
      %v1679 = vunpack.c.h.b16 %v1674
      %v1680 = vunpack.c.l.b16 %v1675
      %v1681 = vunpack.c.h.b16 %v1675
      %v1682 = vpack.c.b16 %v1678, %v1678
      %v1683 = vpack.c.b16 %v1679, %v1679
      %v1684 = vpack.c.b16 %v1680, %v1680
      %v1685 = vpack.c.b16 %v1681, %v1681
      %1690 = vst [vmem:[%s438] sm:$0xf] %v1682
      %1691 = vst [vmem:[%s438 + $0x4] sm:$0xf] %v1683
      %1692 = vst [vmem:[%s438 + $0x8] sm:$0xf] %v1684
      %1693 = vst [vmem:[%s438 + $0xc] sm:$0xf] %v1685
      %v1694 = vadd.f32 %v1670, %v1671
      %v1695 = vadd.f32 %v1694, %v1672
      %v1696 = vadd.f32 %v1695, %v1673
      %v1697 = vrot.slane %v1696, 4
      %v1698 = vadd.f32 %v1696, %v1697
      %v1699 = vrot.slane %v1698, 2
      %v1700 = vadd.f32 %v1698, %v1699
      %v1701 = vrot.slane %v1700, 1
      %v1702 = vadd.f32 %v1700, %v1701
      %1703 = vst [vmem:[%s447] sm:$0x1] %v1702
      %v1704 = vmul.f32 %v1670, %v1670
      %v1705 = vmul.f32 %v1671, %v1671
      %v1706 = vmul.f32 %v1672, %v1672
      %v1707 = vmul.f32 %v1673, %v1673
      %v1708 = vadd.f32 %v1704, %v1705
      %v1709 = vadd.f32 %v1708, %v1706
      %v1710 = vadd.f32 %v1709, %v1707
      %v1711 = vrot.slane %v1710, 4
      %v1712 = vadd.f32 %v1710, %v1711
      %v1713 = vrot.slane %v1712, 2
      %v1714 = vadd.f32 %v1712, %v1713
      %v1715 = vrot.slane %v1714, 1
      %v1716 = vadd.f32 %v1714, %v1715
      %1717 = vst [vmem:[%s447 + $0x1] sm:$0x1] %v1716
      %s1718 = smul.u32 %s24, 2
      %s1719 = sadd.s32 %s1718, %s25
      %s1720 = smul.u32 4, %s1719
      %p1721 = scmp.lt.s32.totalorder %s1720, 7
      %s1722 = scalar_select %p1721, %s1720, 7
      %s1723 = smul.addr %s1722, 4
      %s1724 = scalar_lea.vmem %s7, %s1723
      %s1725 = smul.u32 %s24, 2
      %s1726 = sadd.s32 %s1725, %s25
      %p1727 = scmp.lt.s32.totalorder %s1726, 1
      %s1728 = scalar_select %p1727, %s1726, 1
      %s1729 = smul.addr %s1728, 2
      %s1730 = scalar_lea.vmem %s8, %s1729
      // Predicated region
      $region49: #{forward.4} parent=47 // pred_check
        %p1731 = pneg %p231
      $region50: #{forward.4} parent=47 // pred_check_branch
        %1733 = sbr.rel (%p1731) target = $region52
      $region51: #{forward.4} parent=47 // pred_region
        %s1734 = smul.u32 %s24, 2
        %s1735 = sadd.s32 %s1734, %s25
        %s1736 = smul.u32 4, %s1735
      $region52: #{forward.4} parent=47 // pred_fallthru
        _
      // Predicated region
      $region53: #{forward.4} parent=47 // pred_check
        %p1737 = pneg %p261
      $region54: #{forward.4} parent=47 // pred_check_branch
        %1739 = sbr.rel (%p1737) target = $region56
      $region55: #{forward.4} parent=47 // pred_region
        %s1740 = smul.u32 %s24, 2
        %s1741 = sadd.s32 %s1740, %s25
      $region56: #{forward.4} parent=47 // pred_fallthru
        _
    $region48: #{forward.4} parent=5 // pred_fallthru
      _
    %p1742 = scmp.le.s32.totalorder 2, %s15
    // Predicated region
    $region57: #{forward.4} parent=5 // pred_check
      %p1743 = pneg %p1742
    $region58: #{forward.4} parent=5 // pred_check_branch
      %1745 = sbr.rel (%p1743) target = $region60
    $region59: #{forward.4} parent=5 // pred_region
      %s1746 = ssub.s32 %s15, 2
      // Predicated region
      $region61: #{forward.4} parent=59 // pred_check
        %p1747 = pneg %p237
      $region62: #{forward.4} parent=59 // pred_check_branch
        %1749 = sbr.rel (%p1747) target = $region64
      $region63: #{forward.4} parent=59 // pred_region
        %s1750 = smul.u32 %s26, 2
        %s1751 = sadd.s32 %s1750, %s27
        %s1752 = smul.u32 4, %s1751
        %p1753 = scmp.lt.s32.totalorder %s1752, 7
        %s1754 = scalar_select %p1753, %s1752, 7
        %s1755 = smul.addr %s1754, 4
        %s1756 = scalar_lea.vmem %s7, %s1755
      $region64: #{forward.4} parent=59 // pred_fallthru
        _
      // Predicated region
      $region65: #{forward.4} parent=59 // pred_check
        %p1757 = pneg %p267
      $region66: #{forward.4} parent=59 // pred_check_branch
        %1759 = sbr.rel (%p1757) target = $region68
      $region67: #{forward.4} parent=59 // pred_region
        %s1760 = smul.u32 %s26, 2
        %s1761 = sadd.s32 %s1760, %s27
        %p1762 = scmp.lt.s32.totalorder %s1761, 1
        %s1763 = scalar_select %p1762, %s1761, 1
        %s1764 = smul.addr %s1763, 2
        %s1765 = scalar_lea.vmem %s8, %s1764
      $region68: #{forward.4} parent=59 // pred_fallthru
        _
    $region60: #{forward.4} parent=5 // pred_fallthru
      _
  $region6: #{forward.4} parent=0 // loop_footer
    %s19 = sadd.s32 1, %s15
  $region7: #{forward.4} parent=0 // loop_footer_branch
    %14 = sbr.rel target = $region3
  $region8: #{forward.4} parent=0 // loop_exit
    _

</llo_original>
